<compile_context>
chip_gen: v7x
topology: tpu7x:2x2x1
jax: 0.10.0
libtpu: 0.0.40
codegen_flags: <defaults>
</compile_context>

<pallas_src>
import jax
import jax.numpy as jnp
from jax import lax
from jax.experimental import pallas as pl
from jax.experimental.pallas import tpu as pltpu

_SQRT_HALF = 0.7071067811865476


def _gelu_exact(x):
    # nn.GELU() default is the exact (erf) formulation.
    return 0.5 * x * (1.0 + lax.erf(x * _SQRT_HALF))


def _round_up(x, m):
    return ((x + m - 1) // m) * m


def _pick_time_chunk(T, max_tc=32):
    """Multiple-of-8 divisor of T that is <= max_tc, else the whole T."""
    if T <= max_tc:
        return T
    for cand in range(max_tc - (max_tc % 8), 7, -8):
        if T % cand == 0:
            return cand
    return T


def _pick_row_tile(R, max_tm=512):
    """Largest multiple-of-8 row tile <= max_tm dividing the 8-padded row count."""
    Rp = _round_up(R, 8)
    best = 8
    for cand in range(8, min(max_tm, Rp) + 1, 8):
        if Rp % cand == 0:
            best = cand
    return best, Rp


def _pick_vocab_tile(V, max_tn=2048):
    tn = min(_round_up(V, 128), max_tn)
    Vp = _round_up(V, tn)
    return tn, Vp


def _vmem_budget():
    """3/4 of physical per-core VMEM (compiler scratch headroom)."""
    try:
        cap = int(pltpu.get_tpu_info().vmem_capacity_bytes)
    except Exception:
        cap = 64 << 20
    return max(int(cap * 3 // 4), 32 << 20)


def _clamp_vmem(req_bytes, budget):
    return int(min(max(req_bytes, 32 << 20), budget))


def _num_tensorcores_per_chip():
    """Only split the 'parallel' batch axis on parts with >1 TensorCore."""
    try:
        kind = jax.devices()[0].device_kind.lower()
    except Exception:
        return 1
    return 2 if any(tag in kind for tag in ('v4', 'v5p', 'v7')) else 1


# ---------------------------------------------------------------------------
# Phase 1: sequential tanh-RNN recurrence, tc time steps per grid invocation.
# ---------------------------------------------------------------------------
def _make_rnn_kernel(num_layers, num_steps, has_rest):
    def kernel(*refs):
        if has_rest:
            (emb_ref, h0_ref, wih0_ref, wih_rest_ref, whh_ref, bias_ref,
             rnn_out_ref, h_ref) = refs
        else:
            (emb_ref, h0_ref, wih0_ref, whh_ref, bias_ref,
             rnn_out_ref, h_ref) = refs
            wih_rest_ref = None
        cdt = wih0_ref.dtype

        # Resident output block is the hidden-state carry; seed once per batch
        # tile (no scratch, no final copy-out).
        @pl.when(pl.program_id(1) == 0)
        def _():
            h_ref[...] = h0_ref[...]

        # TODO(synk): fuse the x@Wih + h@Whh pair into one MXU push via a lane
        # concatenation of [x, h] and pre-concatenated weights.
        for s in range(num_steps):                       # statically unrolled
            x = emb_ref[:, s, :]                         # (tb, E), compute dtype
            for l in range(num_layers):                  # L small: unroll
                w_in = wih0_ref[...] if l == 0 else wih_rest_ref[l - 1]
                pre = (jnp.dot(x, w_in, preferred_element_type=jnp.float32)
                       + jnp.dot(h_ref[l].astype(cdt), whh_ref[l],
                                 preferred_element_type=jnp.float32)
                       + bias_ref[l])                    # (tb, H) f32
                h_new = jnp.tanh(pre)
                h_ref[l] = h_new                         # f32 carry
                x = h_new.astype(cdt)
            rnn_out_ref[:, s, :] = x                     # top-layer output

    return kernel


# ---------------------------------------------------------------------------
# Phase 2: residual projection + LayerNorm + GELU + vocab projection (batched).
# ---------------------------------------------------------------------------
def _epilogue_kernel(emb_ref, rnn_ref, pw_ref, pb_ref, lnw_ref, lnb_ref,
                     fcw_ref, fcb_ref, logits_ref, act_scr):
    j = pl.program_id(1)

    # Activation depends only on the row tile i (vocab axis is innermost):
    # compute once per row tile and cache in VMEM scratch.
    @pl.when(j == 0)
    def _():
        identity = (jnp.dot(emb_ref[...], pw_ref[...],
                            preferred_element_type=jnp.float32)
                    + pb_ref[...])                       # (tm, H) f32
        y = rnn_ref[...].astype(jnp.float32) + identity
        mean = jnp.mean(y, axis=-1, keepdims=True)
        var = jnp.mean((y - mean) ** 2, axis=-1, keepdims=True)
        y_n = (y - mean) * lax.rsqrt(var + 1e-5)
        y_n = y_n * lnw_ref[...] + lnb_ref[...]
        act_scr[...] = _gelu_exact(y_n).astype(act_scr.dtype)

    logits_ref[...] = (jnp.dot(act_scr[...], fcw_ref[...],
                               preferred_element_type=jnp.float32)
                       + fcb_ref[...]).astype(logits_ref.dtype)


# ---------------------------------------------------------------------------
# Wrapper
# ---------------------------------------------------------------------------
def slang_rnn_forward(tokens, hidden, params, *, compute_dtype=jnp.bfloat16):
    """tokens (B,T) int32, hidden (L,B,H) f32 -> (logits (B,T,V) f32, hidden (L,B,H) f32)."""
    cdt = jnp.dtype(compute_dtype)
    wb = cdt.itemsize

    V, E = params['embedding'].shape
    L, B, H = hidden.shape
    T = tokens.shape[1]

    # TODO(synk): fuse this embedding gather into phase 1 via
    # PrefetchScalarGridSpec + Element-indexed embedding rows to skip the
    # (B,T,E) HBM round trip.
    emb = jnp.take(params['embedding'], tokens, axis=0).astype(cdt)     # (B,T,E)

    # ---- weight prep: (in, out) layout so kernels compute x @ W -------------
    wih0 = params['rnn_wih0'].T.astype(cdt)                             # (E, H)
    has_rest = L > 1
    if has_rest:
        wih_rest = jnp.transpose(params['rnn_wih_rest'], (0, 2, 1)).astype(cdt)
    whh = jnp.transpose(params['rnn_whh'], (0, 2, 1)).astype(cdt)       # (L, H, H)
    bias = (params['rnn_bih'] + params['rnn_bhh']).reshape(L, 1, H).astype(jnp.float32)
    pw = params['proj_w'].T.astype(cdt)                                 # (E, H)
    pb = params['proj_b'].reshape(1, H).astype(jnp.float32)
    lnw = params['ln_w'].reshape(1, H).astype(jnp.float32)
    lnb = params['ln_b'].reshape(1, H).astype(jnp.float32)
    fcw = params['fc_w'].T.astype(cdt)                                  # (H, V)
    fcb = params['fc_b'].reshape(1, V).astype(jnp.float32)

    budget = _vmem_budget()

    # ---- phase 1: recurrence, grid = (batch tiles, time chunks) -------------
    tb = B // 2 if (_num_tensorcores_per_chip() >= 2 and B % 16 == 0) else B
    nb = B // tb
    tc = _pick_time_chunk(T)
    nt = T // tc

    resident = ((wih0.size + (wih_rest.size if has_rest else 0) + whh.size) * wb
                + bias.size * 4 + 2 * L * tb * H * 4)
    streamed = 2 * (tb * tc * E + tb * tc * H) * wb
    rnn_vmem = _clamp_vmem(int(1.5 * (resident + streamed)), budget)

    rnn_inputs = [emb, hidden, wih0] + ([wih_rest] if has_rest else []) + [whh, bias]
    rnn_in_specs = (
        [pl.BlockSpec((tb, tc, E), lambda b, t: (b, t, 0)),             # streamed chunk
         pl.BlockSpec((L, tb, H), lambda b, t: (0, b, 0)),              # h0
         pl.BlockSpec((E, H), lambda b, t: (0, 0))]                     # resident weights
        + ([pl.BlockSpec((L - 1, H, H), lambda b, t: (0, 0, 0))] if has_rest else [])
        + [pl.BlockSpec((L, H, H), lambda b, t: (0, 0, 0)),
           pl.BlockSpec((L, 1, H), lambda b, t: (0, 0, 0))])

    rnn_out, h_out = pl.pallas_call(
        _make_rnn_kernel(L, tc, has_rest),
        grid=(nb, nt),
        in_specs=rnn_in_specs,
        out_specs=(pl.BlockSpec((tb, tc, H), lambda b, t: (b, t, 0)),   # batch-major
                   pl.BlockSpec((L, tb, H), lambda b, t: (0, b, 0))),   # resident carry
        out_shape=(jax.ShapeDtypeStruct((B, T, H), cdt),
                   jax.ShapeDtypeStruct((L, B, H), jnp.float32)),
        compiler_params=pltpu.CompilerParams(
            dimension_semantics=("parallel", "arbitrary"),
            vmem_limit_bytes=rnn_vmem),
    )(*rnn_inputs)

    # ---- phase 2: batch-major epilogue over R = B*T rows ---------------------
    R = B * T
    tm, R_pad = _pick_row_tile(R)
    tn, V_pad = _pick_vocab_tile(V)
    ni, nj = R_pad // tm, V_pad // tn

    emb_flat = emb.reshape(R, E)
    rnn_flat = rnn_out.reshape(R, H)
    if R_pad != R:
        pad = ((0, R_pad - R), (0, 0))
        emb_flat = jnp.pad(emb_flat, pad)
        rnn_flat = jnp.pad(rnn_flat, pad)
    if V_pad != V:
        fcw = jnp.pad(fcw, ((0, 0), (0, V_pad - V)))
        fcb = jnp.pad(fcb, ((0, 0), (0, V_pad - V)))

    ep_resident = pw.size * wb + (pb.size + lnw.size + lnb.size) * 4 + tm * H * wb
    ep_streamed = 2 * ((tm * E + tm * H + H * tn) * wb + (tn + tm * tn) * 4)
    ep_vmem = _clamp_vmem(int(1.5 * (ep_resident + ep_streamed)), budget)

    logits_flat = pl.pallas_call(
        _epilogue_kernel,
        grid=(ni, nj),
        in_specs=[pl.BlockSpec((tm, E), lambda i, j: (i, 0)),
                  pl.BlockSpec((tm, H), lambda i, j: (i, 0)),
                  pl.BlockSpec((E, H), lambda i, j: (0, 0)),
                  pl.BlockSpec((1, H), lambda i, j: (0, 0)),
                  pl.BlockSpec((1, H), lambda i, j: (0, 0)),
                  pl.BlockSpec((1, H), lambda i, j: (0, 0)),
                  pl.BlockSpec((H, tn), lambda i, j: (0, j)),
                  pl.BlockSpec((1, tn), lambda i, j: (0, j))],
        out_specs=pl.BlockSpec((tm, tn), lambda i, j: (i, j)),
        out_shape=jax.ShapeDtypeStruct((R_pad, V_pad), jnp.float32),
        scratch_shapes=[pltpu.VMEM((tm, H), cdt)],
        compiler_params=pltpu.CompilerParams(
            dimension_semantics=("parallel", "arbitrary"),
            vmem_limit_bytes=ep_vmem),
    )(emb_flat, rnn_flat, pw, pb, lnw, lnb, fcw, fcb)

    logits = logits_flat[:R, :V].reshape(B, T, V)       # batch-major: no transpose
    return logits, h_out


# ---------------------------------------------------------------------------
# Pure-JAX reference (PyTorch eval-mode semantics) and test harness
# ---------------------------------------------------------------------------
def reference_forward(tokens, hidden, params):
    emb = jnp.take(params['embedding'], tokens, axis=0).astype(jnp.float32)
    identity = emb @ params['proj_w'].T + params['proj_b']
    L = hidden.shape[0]
    h = [hidden[l] for l in range(L)]
    B, T, E = emb.shape
    outs = []
    for t in range(T):
        inp = emb[:, t, :]
        for l in range(L):
            wih = params['rnn_wih0'] if l == 0 else params['rnn_wih_rest'][l - 1]
            pre = (inp @ wih.T + h[l] @ params['rnn_whh'][l].T
                   + params['rnn_bih'][l] + params['rnn_bhh'][l])
            h[l] = jnp.tanh(pre)
            inp = h[l]
        outs.append(inp)
    rnn_out = jnp.stack(outs, axis=1)
    y = rnn_out + identity
    mean = y.mean(-1, keepdims=True)
    var = ((y - mean) ** 2).mean(-1, keepdims=True)
    yn = (y - mean) / jnp.sqrt(var + 1e-5) * params['ln_w'] + params['ln_b']
    act = 0.5 * yn * (1.0 + jax.scipy.special.erf(yn * _SQRT_HALF))
    logits = act @ params['fc_w'].T + params['fc_b']
    return logits, jnp.stack(h, axis=0)


def init_params(key, vocab_size, embedding_dim, hidden_dim, num_layers):
    ks = jax.random.split(key, 12)
    s = 0.1
    return {
        'embedding': s * jax.random.normal(ks[0], (vocab_size, embedding_dim), jnp.float32),
        'proj_w': s * jax.random.normal(ks[1], (hidden_dim, embedding_dim), jnp.float32),
        'proj_b': s * jax.random.normal(ks[2], (hidden_dim,), jnp.float32),
        'rnn_wih0': s * jax.random.normal(ks[3], (hidden_dim, embedding_dim), jnp.float32),
        'rnn_wih_rest': s * jax.random.normal(
            ks[4], (max(num_layers - 1, 1), hidden_dim, hidden_dim), jnp.float32),
        'rnn_whh': s * jax.random.normal(ks[5], (num_layers, hidden_dim, hidden_dim), jnp.float32),
        'rnn_bih': s * jax.random.normal(ks[6], (num_layers, hidden_dim), jnp.float32),
        'rnn_bhh': s * jax.random.normal(ks[7], (num_layers, hidden_dim), jnp.float32),
        'ln_w': jnp.ones((hidden_dim,), jnp.float32)
                + 0.01 * jax.random.normal(ks[8], (hidden_dim,), jnp.float32),
        'ln_b': 0.01 * jax.random.normal(ks[9], (hidden_dim,), jnp.float32),
        'fc_w': s * jax.random.normal(ks[10], (vocab_size, hidden_dim), jnp.float32),
        'fc_b': s * jax.random.normal(ks[11], (vocab_size,), jnp.float32),
    }


if __name__ == "__main__":
    VOCAB, EMB, HID, LAYERS = 32, 16, 32, 2
    B, T = 2, 8

    key = jax.random.PRNGKey(0)
    kp, kt = jax.random.split(key)
    params = init_params(kp, VOCAB, EMB, HID, LAYERS)

    tokens = jax.random.randint(kt, (B, T), 0, VOCAB, dtype=jnp.int32)
    hidden0 = jnp.zeros((LAYERS, B, HID), jnp.float32)      # init_hidden

    ref_logits, ref_h = reference_forward(tokens, hidden0, params)

    # Exact-precision path: tight check against the f32 reference.
    fwd_f32 = jax.jit(lambda tok, hid, p: slang_rnn_forward(
        tok, hid, p, compute_dtype=jnp.float32))
    logits, h_out = jax.block_until_ready(fwd_f32(tokens, hidden0, params))
    assert jnp.allclose(logits, ref_logits, rtol=1e-3, atol=1e-3)
    assert jnp.allclose(h_out, ref_h, rtol=1e-3, atol=1e-3)

    # bf16-MXU path (performance default): looser numeric check.
    fwd_bf16 = jax.jit(lambda tok, hid, p: slang_rnn_forward(
        tok, hid, p, compute_dtype=jnp.bfloat16))
    logits_b, h_b = jax.block_until_ready(fwd_bf16(tokens, hidden0, params))
    assert jnp.allclose(logits_b, ref_logits, rtol=5e-2, atol=5e-2)
    assert jnp.allclose(h_b, ref_h, rtol=5e-2, atol=5e-2)

    print("KERNEL_OK")
</pallas_src>

<mosaic_0001>
module attributes {stable_mosaic.version = 11 : i64} {
  func.func @kernel(%arg0: i32, %arg1: i32, %arg2: memref<2x8x16xf32, #tpu.memory_space<vmem>>, %arg3: memref<2x2x32xf32, #tpu.memory_space<vmem>>, %arg4: memref<16x32xf32, #tpu.memory_space<vmem>>, %arg5: memref<1x32x32xf32, #tpu.memory_space<vmem>>, %arg6: memref<2x32x32xf32, #tpu.memory_space<vmem>>, %arg7: memref<2x1x32xf32, #tpu.memory_space<vmem>>, %arg8: memref<2x8x32xf32, #tpu.memory_space<vmem>>, %arg9: memref<2x2x32xf32, #tpu.memory_space<vmem>>) attributes {dimension_semantics = [#tpu.dimension_semantics<parallel>, #tpu.dimension_semantics<arbitrary>], iteration_bounds = array<i64: 1, 1>, scalar_prefetch = 0 : i64, scratch_operands = 0 : i64, tpu.core_type = #tpu.core_type<tc>, window_params = [{transform_indices = @transform_0, window_bounds = array<i64: 2, 8, 16>}, {transform_indices = @transform_1, window_bounds = array<i64: 2, 2, 32>}, {pipeline_mode = #tpu.pipeline_mode<synchronous>, transform_indices = @transform_2, window_bounds = array<i64: 16, 32>}, {pipeline_mode = #tpu.pipeline_mode<synchronous>, transform_indices = @transform_3, window_bounds = array<i64: 1, 32, 32>}, {pipeline_mode = #tpu.pipeline_mode<synchronous>, transform_indices = @transform_4, window_bounds = array<i64: 2, 32, 32>}, {pipeline_mode = #tpu.pipeline_mode<synchronous>, transform_indices = @transform_5, window_bounds = array<i64: 2, 1, 32>}, {transform_indices = @transform_6, window_bounds = array<i64: 2, 8, 32>}, {transform_indices = @transform_7, window_bounds = array<i64: 2, 2, 32>}]} {
    %c0_i32 = arith.constant 0 : i32
    %0 = arith.cmpi eq, %arg1, %c0_i32 : i32
    %1 = arith.extui %0 : i1 to i32
    %c0_i32_0 = arith.constant 0 : i32
    %2 = arith.cmpi ne, %1, %c0_i32_0 : i32
    scf.if %2 {
      %c0_304 = arith.constant 0 : index
      %c0_305 = arith.constant 0 : index
      %c0_306 = arith.constant 0 : index
      %307 = vector.load %arg3[%c0_304, %c0_305, %c0_306] : memref<2x2x32xf32, #tpu.memory_space<vmem>>, vector<2x2x32xf32>
      %c0_307 = arith.constant 0 : index
      %c0_308 = arith.constant 0 : index
      %c0_309 = arith.constant 0 : index
      %308 = vector.load %arg9[%c0_307, %c0_308, %c0_309] : memref<2x2x32xf32, #tpu.memory_space<vmem>>, vector<2x2x32xf32>
      tpu.vector_store %arg9[%c0_307, %c0_308, %c0_309], %307 {strides = array<i32>} : memref<2x2x32xf32, #tpu.memory_space<vmem>>, vector<2x2x32xf32>,
    } else {
    }
    %c0 = arith.constant 0 : index
    %c0_1 = arith.constant 0 : index
    %c0_2 = arith.constant 0 : index
    %3 = vector.load %arg2[%c0, %c0_1, %c0_2] : memref<2x8x16xf32, #tpu.memory_space<vmem>>, vector<2x1x16xf32>
    %4 = vector.shape_cast %3 : vector<2x1x16xf32> to vector<2x16xf32>
    %c0_3 = arith.constant 0 : index
    %c0_4 = arith.constant 0 : index
    %5 = vector.load %arg4[%c0_3, %c0_4] : memref<16x32xf32, #tpu.memory_space<vmem>>, vector<16x32xf32>
    %cst = arith.constant dense<0.000000e+00> : vector<2x32xf32>
    %6 = tpu.matmul %4, %5, %cst {dimension_numbers = #tpu.dot_dimension_numbers<[1], [0], [0], [1], [0, 0, 1, 1], [], []>} : vector<2x16xf32>, vector<16x32xf32>, vector<2x32xf32> -> vector<2x32xf32>
    %c0_5 = arith.constant 0 : index
    %c0_6 = arith.constant 0 : index
    %c0_7 = arith.constant 0 : index
    %7 = vector.load %arg9[%c0_5, %c0_6, %c0_7] : memref<2x2x32xf32, #tpu.memory_space<vmem>>, vector<1x2x32xf32>
    %8 = vector.shape_cast %7 : vector<1x2x32xf32> to vector<2x32xf32>
    %c0_8 = arith.constant 0 : index
    %c0_9 = arith.constant 0 : index
    %c0_10 = arith.constant 0 : index
    %9 = vector.load %arg6[%c0_8, %c0_9, %c0_10] : memref<2x32x32xf32, #tpu.memory_space<vmem>>, vector<1x32x32xf32>
    %10 = vector.shape_cast %9 : vector<1x32x32xf32> to vector<32x32xf32>
    %cst_11 = arith.constant dense<0.000000e+00> : vector<2x32xf32>
    %11 = tpu.matmul %8, %10, %cst_11 {dimension_numbers = #tpu.dot_dimension_numbers<[1], [0], [0], [1], [0, 0, 1, 1], [], []>} : vector<2x32xf32>, vector<32x32xf32>, vector<2x32xf32> -> vector<2x32xf32>
    %12 = arith.addf %6, %11 : vector<2x32xf32>
    %c0_12 = arith.constant 0 : index
    %c0_13 = arith.constant 0 : index
    %c0_14 = arith.constant 0 : index
    %13 = vector.load %arg7[%c0_12, %c0_13, %c0_14] : memref<2x1x32xf32, #tpu.memory_space<vmem>>, vector<1x1x32xf32>
    %14 = vector.shape_cast %13 : vector<1x1x32xf32> to vector<1x32xf32>
    %15 = vector.broadcast %14 : vector<1x32xf32> to vector<2x32xf32>
    %16 = arith.addf %12, %15 : vector<2x32xf32>
    %17 = math.tanh %16 : vector<2x32xf32>
    %c0_15 = arith.constant 0 : index
    %c0_16 = arith.constant 0 : index
    %c0_17 = arith.constant 0 : index
    %18 = vector.load %arg9[%c0_15, %c0_16, %c0_17] : memref<2x2x32xf32, #tpu.memory_space<vmem>>, vector<1x2x32xf32>
    %19 = vector.shape_cast %18 : vector<1x2x32xf32> to vector<2x32xf32>
    %20 = vector.shape_cast %17 : vector<2x32xf32> to vector<1x2x32xf32>
    tpu.vector_store %arg9[%c0_15, %c0_16, %c0_17], %20 {strides = array<i32>} : memref<2x2x32xf32, #tpu.memory_space<vmem>>, vector<1x2x32xf32>,
    %c0_18 = arith.constant 0 : index
    %c0_19 = arith.constant 0 : index
    %c0_20 = arith.constant 0 : index
    %21 = vector.load %arg5[%c0_18, %c0_19, %c0_20] : memref<1x32x32xf32, #tpu.memory_space<vmem>>, vector<1x32x32xf32>
    %22 = vector.shape_cast %21 : vector<1x32x32xf32> to vector<32x32xf32>
    %cst_21 = arith.constant dense<0.000000e+00> : vector<2x32xf32>
    %23 = tpu.matmul %17, %22, %cst_21 {dimension_numbers = #tpu.dot_dimension_numbers<[1], [0], [0], [1], [0, 0, 1, 1], [], []>} : vector<2x32xf32>, vector<32x32xf32>, vector<2x32xf32> -> vector<2x32xf32>
    %c1 = arith.constant 1 : index
    %c0_22 = arith.constant 0 : index
    %c0_23 = arith.constant 0 : index
    %24 = vector.load %arg9[%c1, %c0_22, %c0_23] : memref<2x2x32xf32, #tpu.memory_space<vmem>>, vector<1x2x32xf32>
    %25 = vector.shape_cast %24 : vector<1x2x32xf32> to vector<2x32xf32>
    %c1_24 = arith.constant 1 : index
    %c0_25 = arith.constant 0 : index
    %c0_26 = arith.constant 0 : index
    %26 = vector.load %arg6[%c1_24, %c0_25, %c0_26] : memref<2x32x32xf32, #tpu.memory_space<vmem>>, vector<1x32x32xf32>
    %27 = vector.shape_cast %26 : vector<1x32x32xf32> to vector<32x32xf32>
    %cst_27 = arith.constant dense<0.000000e+00> : vector<2x32xf32>
    %28 = tpu.matmul %25, %27, %cst_27 {dimension_numbers = #tpu.dot_dimension_numbers<[1], [0], [0], [1], [0, 0, 1, 1], [], []>} : vector<2x32xf32>, vector<32x32xf32>, vector<2x32xf32> -> vector<2x32xf32>
    %29 = arith.addf %23, %28 : vector<2x32xf32>
    %c1_28 = arith.constant 1 : index
    %c0_29 = arith.constant 0 : index
    %c0_30 = arith.constant 0 : index
    %30 = vector.load %arg7[%c1_28, %c0_29, %c0_30] : memref<2x1x32xf32, #tpu.memory_space<vmem>>, vector<1x1x32xf32>
    %31 = vector.shape_cast %30 : vector<1x1x32xf32> to vector<1x32xf32>
    %32 = vector.broadcast %31 : vector<1x32xf32> to vector<2x32xf32>
    %33 = arith.addf %29, %32 : vector<2x32xf32>
    %34 = math.tanh %33 : vector<2x32xf32>
    %c1_31 = arith.constant 1 : index
    %c0_32 = arith.constant 0 : index
    %c0_33 = arith.constant 0 : index
    %35 = vector.load %arg9[%c1_31, %c0_32, %c0_33] : memref<2x2x32xf32, #tpu.memory_space<vmem>>, vector<1x2x32xf32>
    %36 = vector.shape_cast %35 : vector<1x2x32xf32> to vector<2x32xf32>
    %37 = vector.shape_cast %34 : vector<2x32xf32> to vector<1x2x32xf32>
    tpu.vector_store %arg9[%c1_31, %c0_32, %c0_33], %37 {strides = array<i32>} : memref<2x2x32xf32, #tpu.memory_space<vmem>>, vector<1x2x32xf32>,
    %c0_34 = arith.constant 0 : index
    %c0_35 = arith.constant 0 : index
    %c0_36 = arith.constant 0 : index
    %38 = vector.load %arg8[%c0_34, %c0_35, %c0_36] : memref<2x8x32xf32, #tpu.memory_space<vmem>>, vector<2x1x32xf32>
    %39 = vector.shape_cast %38 : vector<2x1x32xf32> to vector<2x32xf32>
    %40 = vector.shape_cast %34 : vector<2x32xf32> to vector<2x1x32xf32>
    tpu.vector_store %arg8[%c0_34, %c0_35, %c0_36], %40 {strides = array<i32>} : memref<2x8x32xf32, #tpu.memory_space<vmem>>, vector<2x1x32xf32>,
    %c0_37 = arith.constant 0 : index
    %c1_38 = arith.constant 1 : index
    %c0_39 = arith.constant 0 : index
    %41 = vector.load %arg2[%c0_37, %c1_38, %c0_39] : memref<2x8x16xf32, #tpu.memory_space<vmem>>, vector<2x1x16xf32>
    %42 = vector.shape_cast %41 : vector<2x1x16xf32> to vector<2x16xf32>
    %c0_40 = arith.constant 0 : index
    %c0_41 = arith.constant 0 : index
    %43 = vector.load %arg4[%c0_40, %c0_41] : memref<16x32xf32, #tpu.memory_space<vmem>>, vector<16x32xf32>
    %cst_42 = arith.constant dense<0.000000e+00> : vector<2x32xf32>
    %44 = tpu.matmul %42, %43, %cst_42 {dimension_numbers = #tpu.dot_dimension_numbers<[1], [0], [0], [1], [0, 0, 1, 1], [], []>} : vector<2x16xf32>, vector<16x32xf32>, vector<2x32xf32> -> vector<2x32xf32>
    %c0_43 = arith.constant 0 : index
    %c0_44 = arith.constant 0 : index
    %c0_45 = arith.constant 0 : index
    %45 = vector.load %arg9[%c0_43, %c0_44, %c0_45] : memref<2x2x32xf32, #tpu.memory_space<vmem>>, vector<1x2x32xf32>
    %46 = vector.shape_cast %45 : vector<1x2x32xf32> to vector<2x32xf32>
    %c0_46 = arith.constant 0 : index
    %c0_47 = arith.constant 0 : index
    %c0_48 = arith.constant 0 : index
    %47 = vector.load %arg6[%c0_46, %c0_47, %c0_48] : memref<2x32x32xf32, #tpu.memory_space<vmem>>, vector<1x32x32xf32>
    %48 = vector.shape_cast %47 : vector<1x32x32xf32> to vector<32x32xf32>
    %cst_49 = arith.constant dense<0.000000e+00> : vector<2x32xf32>
    %49 = tpu.matmul %46, %48, %cst_49 {dimension_numbers = #tpu.dot_dimension_numbers<[1], [0], [0], [1], [0, 0, 1, 1], [], []>} : vector<2x32xf32>, vector<32x32xf32>, vector<2x32xf32> -> vector<2x32xf32>
    %50 = arith.addf %44, %49 : vector<2x32xf32>
    %c0_50 = arith.constant 0 : index
    %c0_51 = arith.constant 0 : index
    %c0_52 = arith.constant 0 : index
    %51 = vector.load %arg7[%c0_50, %c0_51, %c0_52] : memref<2x1x32xf32, #tpu.memory_space<vmem>>, vector<1x1x32xf32>
    %52 = vector.shape_cast %51 : vector<1x1x32xf32> to vector<1x32xf32>
    %53 = vector.broadcast %52 : vector<1x32xf32> to vector<2x32xf32>
    %54 = arith.addf %50, %53 : vector<2x32xf32>
    %55 = math.tanh %54 : vector<2x32xf32>
    %c0_53 = arith.constant 0 : index
    %c0_54 = arith.constant 0 : index
    %c0_55 = arith.constant 0 : index
    %56 = vector.load %arg9[%c0_53, %c0_54, %c0_55] : memref<2x2x32xf32, #tpu.memory_space<vmem>>, vector<1x2x32xf32>
    %57 = vector.shape_cast %56 : vector<1x2x32xf32> to vector<2x32xf32>
    %58 = vector.shape_cast %55 : vector<2x32xf32> to vector<1x2x32xf32>
    tpu.vector_store %arg9[%c0_53, %c0_54, %c0_55], %58 {strides = array<i32>} : memref<2x2x32xf32, #tpu.memory_space<vmem>>, vector<1x2x32xf32>,
    %c0_56 = arith.constant 0 : index
    %c0_57 = arith.constant 0 : index
    %c0_58 = arith.constant 0 : index
    %59 = vector.load %arg5[%c0_56, %c0_57, %c0_58] : memref<1x32x32xf32, #tpu.memory_space<vmem>>, vector<1x32x32xf32>
    %60 = vector.shape_cast %59 : vector<1x32x32xf32> to vector<32x32xf32>
    %cst_59 = arith.constant dense<0.000000e+00> : vector<2x32xf32>
    %61 = tpu.matmul %55, %60, %cst_59 {dimension_numbers = #tpu.dot_dimension_numbers<[1], [0], [0], [1], [0, 0, 1, 1], [], []>} : vector<2x32xf32>, vector<32x32xf32>, vector<2x32xf32> -> vector<2x32xf32>
    %c1_60 = arith.constant 1 : index
    %c0_61 = arith.constant 0 : index
    %c0_62 = arith.constant 0 : index
    %62 = vector.load %arg9[%c1_60, %c0_61, %c0_62] : memref<2x2x32xf32, #tpu.memory_space<vmem>>, vector<1x2x32xf32>
    %63 = vector.shape_cast %62 : vector<1x2x32xf32> to vector<2x32xf32>
    %c1_63 = arith.constant 1 : index
    %c0_64 = arith.constant 0 : index
    %c0_65 = arith.constant 0 : index
    %64 = vector.load %arg6[%c1_63, %c0_64, %c0_65] : memref<2x32x32xf32, #tpu.memory_space<vmem>>, vector<1x32x32xf32>
    %65 = vector.shape_cast %64 : vector<1x32x32xf32> to vector<32x32xf32>
    %cst_66 = arith.constant dense<0.000000e+00> : vector<2x32xf32>
    %66 = tpu.matmul %63, %65, %cst_66 {dimension_numbers = #tpu.dot_dimension_numbers<[1], [0], [0], [1], [0, 0, 1, 1], [], []>} : vector<2x32xf32>, vector<32x32xf32>, vector<2x32xf32> -> vector<2x32xf32>
    %67 = arith.addf %61, %66 : vector<2x32xf32>
    %c1_67 = arith.constant 1 : index
    %c0_68 = arith.constant 0 : index
    %c0_69 = arith.constant 0 : index
    %68 = vector.load %arg7[%c1_67, %c0_68, %c0_69] : memref<2x1x32xf32, #tpu.memory_space<vmem>>, vector<1x1x32xf32>
    %69 = vector.shape_cast %68 : vector<1x1x32xf32> to vector<1x32xf32>
    %70 = vector.broadcast %69 : vector<1x32xf32> to vector<2x32xf32>
    %71 = arith.addf %67, %70 : vector<2x32xf32>
    %72 = math.tanh %71 : vector<2x32xf32>
    %c1_70 = arith.constant 1 : index
    %c0_71 = arith.constant 0 : index
    %c0_72 = arith.constant 0 : index
    %73 = vector.load %arg9[%c1_70, %c0_71, %c0_72] : memref<2x2x32xf32, #tpu.memory_space<vmem>>, vector<1x2x32xf32>
    %74 = vector.shape_cast %73 : vector<1x2x32xf32> to vector<2x32xf32>
    %75 = vector.shape_cast %72 : vector<2x32xf32> to vector<1x2x32xf32>
    tpu.vector_store %arg9[%c1_70, %c0_71, %c0_72], %75 {strides = array<i32>} : memref<2x2x32xf32, #tpu.memory_space<vmem>>, vector<1x2x32xf32>,
    %c0_73 = arith.constant 0 : index
    %c1_74 = arith.constant 1 : index
    %c0_75 = arith.constant 0 : index
    %76 = vector.load %arg8[%c0_73, %c1_74, %c0_75] : memref<2x8x32xf32, #tpu.memory_space<vmem>>, vector<2x1x32xf32>
    %77 = vector.shape_cast %76 : vector<2x1x32xf32> to vector<2x32xf32>
    %78 = vector.shape_cast %72 : vector<2x32xf32> to vector<2x1x32xf32>
    tpu.vector_store %arg8[%c0_73, %c1_74, %c0_75], %78 {strides = array<i32>} : memref<2x8x32xf32, #tpu.memory_space<vmem>>, vector<2x1x32xf32>,
    %c0_76 = arith.constant 0 : index
    %c2 = arith.constant 2 : index
    %c0_77 = arith.constant 0 : index
    %79 = vector.load %arg2[%c0_76, %c2, %c0_77] : memref<2x8x16xf32, #tpu.memory_space<vmem>>, vector<2x1x16xf32>
    %80 = vector.shape_cast %79 : vector<2x1x16xf32> to vector<2x16xf32>
    %c0_78 = arith.constant 0 : index
    %c0_79 = arith.constant 0 : index
    %81 = vector.load %arg4[%c0_78, %c0_79] : memref<16x32xf32, #tpu.memory_space<vmem>>, vector<16x32xf32>
    %cst_80 = arith.constant dense<0.000000e+00> : vector<2x32xf32>
    %82 = tpu.matmul %80, %81, %cst_80 {dimension_numbers = #tpu.dot_dimension_numbers<[1], [0], [0], [1], [0, 0, 1, 1], [], []>} : vector<2x16xf32>, vector<16x32xf32>, vector<2x32xf32> -> vector<2x32xf32>
    %c0_81 = arith.constant 0 : index
    %c0_82 = arith.constant 0 : index
    %c0_83 = arith.constant 0 : index
    %83 = vector.load %arg9[%c0_81, %c0_82, %c0_83] : memref<2x2x32xf32, #tpu.memory_space<vmem>>, vector<1x2x32xf32>
    %84 = vector.shape_cast %83 : vector<1x2x32xf32> to vector<2x32xf32>
    %c0_84 = arith.constant 0 : index
    %c0_85 = arith.constant 0 : index
    %c0_86 = arith.constant 0 : index
    %85 = vector.load %arg6[%c0_84, %c0_85, %c0_86] : memref<2x32x32xf32, #tpu.memory_space<vmem>>, vector<1x32x32xf32>
    %86 = vector.shape_cast %85 : vector<1x32x32xf32> to vector<32x32xf32>
    %cst_87 = arith.constant dense<0.000000e+00> : vector<2x32xf32>
    %87 = tpu.matmul %84, %86, %cst_87 {dimension_numbers = #tpu.dot_dimension_numbers<[1], [0], [0], [1], [0, 0, 1, 1], [], []>} : vector<2x32xf32>, vector<32x32xf32>, vector<2x32xf32> -> vector<2x32xf32>
    %88 = arith.addf %82, %87 : vector<2x32xf32>
    %c0_88 = arith.constant 0 : index
    %c0_89 = arith.constant 0 : index
    %c0_90 = arith.constant 0 : index
    %89 = vector.load %arg7[%c0_88, %c0_89, %c0_90] : memref<2x1x32xf32, #tpu.memory_space<vmem>>, vector<1x1x32xf32>
    %90 = vector.shape_cast %89 : vector<1x1x32xf32> to vector<1x32xf32>
    %91 = vector.broadcast %90 : vector<1x32xf32> to vector<2x32xf32>
    %92 = arith.addf %88, %91 : vector<2x32xf32>
    %93 = math.tanh %92 : vector<2x32xf32>
    %c0_91 = arith.constant 0 : index
    %c0_92 = arith.constant 0 : index
    %c0_93 = arith.constant 0 : index
    %94 = vector.load %arg9[%c0_91, %c0_92, %c0_93] : memref<2x2x32xf32, #tpu.memory_space<vmem>>, vector<1x2x32xf32>
    %95 = vector.shape_cast %94 : vector<1x2x32xf32> to vector<2x32xf32>
    %96 = vector.shape_cast %93 : vector<2x32xf32> to vector<1x2x32xf32>
    tpu.vector_store %arg9[%c0_91, %c0_92, %c0_93], %96 {strides = array<i32>} : memref<2x2x32xf32, #tpu.memory_space<vmem>>, vector<1x2x32xf32>,
    %c0_94 = arith.constant 0 : index
    %c0_95 = arith.constant 0 : index
    %c0_96 = arith.constant 0 : index
    %97 = vector.load %arg5[%c0_94, %c0_95, %c0_96] : memref<1x32x32xf32, #tpu.memory_space<vmem>>, vector<1x32x32xf32>
    %98 = vector.shape_cast %97 : vector<1x32x32xf32> to vector<32x32xf32>
    %cst_97 = arith.constant dense<0.000000e+00> : vector<2x32xf32>
    %99 = tpu.matmul %93, %98, %cst_97 {dimension_numbers = #tpu.dot_dimension_numbers<[1], [0], [0], [1], [0, 0, 1, 1], [], []>} : vector<2x32xf32>, vector<32x32xf32>, vector<2x32xf32> -> vector<2x32xf32>
    %c1_98 = arith.constant 1 : index
    %c0_99 = arith.constant 0 : index
    %c0_100 = arith.constant 0 : index
    %100 = vector.load %arg9[%c1_98, %c0_99, %c0_100] : memref<2x2x32xf32, #tpu.memory_space<vmem>>, vector<1x2x32xf32>
    %101 = vector.shape_cast %100 : vector<1x2x32xf32> to vector<2x32xf32>
    %c1_101 = arith.constant 1 : index
    %c0_102 = arith.constant 0 : index
    %c0_103 = arith.constant 0 : index
    %102 = vector.load %arg6[%c1_101, %c0_102, %c0_103] : memref<2x32x32xf32, #tpu.memory_space<vmem>>, vector<1x32x32xf32>
    %103 = vector.shape_cast %102 : vector<1x32x32xf32> to vector<32x32xf32>
    %cst_104 = arith.constant dense<0.000000e+00> : vector<2x32xf32>
    %104 = tpu.matmul %101, %103, %cst_104 {dimension_numbers = #tpu.dot_dimension_numbers<[1], [0], [0], [1], [0, 0, 1, 1], [], []>} : vector<2x32xf32>, vector<32x32xf32>, vector<2x32xf32> -> vector<2x32xf32>
    %105 = arith.addf %99, %104 : vector<2x32xf32>
    %c1_105 = arith.constant 1 : index
    %c0_106 = arith.constant 0 : index
    %c0_107 = arith.constant 0 : index
    %106 = vector.load %arg7[%c1_105, %c0_106, %c0_107] : memref<2x1x32xf32, #tpu.memory_space<vmem>>, vector<1x1x32xf32>
    %107 = vector.shape_cast %106 : vector<1x1x32xf32> to vector<1x32xf32>
    %108 = vector.broadcast %107 : vector<1x32xf32> to vector<2x32xf32>
    %109 = arith.addf %105, %108 : vector<2x32xf32>
    %110 = math.tanh %109 : vector<2x32xf32>
    %c1_108 = arith.constant 1 : index
    %c0_109 = arith.constant 0 : index
    %c0_110 = arith.constant 0 : index
    %111 = vector.load %arg9[%c1_108, %c0_109, %c0_110] : memref<2x2x32xf32, #tpu.memory_space<vmem>>, vector<1x2x32xf32>
    %112 = vector.shape_cast %111 : vector<1x2x32xf32> to vector<2x32xf32>
    %113 = vector.shape_cast %110 : vector<2x32xf32> to vector<1x2x32xf32>
    tpu.vector_store %arg9[%c1_108, %c0_109, %c0_110], %113 {strides = array<i32>} : memref<2x2x32xf32, #tpu.memory_space<vmem>>, vector<1x2x32xf32>,
    %c0_111 = arith.constant 0 : index
    %c2_112 = arith.constant 2 : index
    %c0_113 = arith.constant 0 : index
    %114 = vector.load %arg8[%c0_111, %c2_112, %c0_113] : memref<2x8x32xf32, #tpu.memory_space<vmem>>, vector<2x1x32xf32>
    %115 = vector.shape_cast %114 : vector<2x1x32xf32> to vector<2x32xf32>
    %116 = vector.shape_cast %110 : vector<2x32xf32> to vector<2x1x32xf32>
    tpu.vector_store %arg8[%c0_111, %c2_112, %c0_113], %116 {strides = array<i32>} : memref<2x8x32xf32, #tpu.memory_space<vmem>>, vector<2x1x32xf32>,
    %c0_114 = arith.constant 0 : index
    %c3 = arith.constant 3 : index
    %c0_115 = arith.constant 0 : index
    %117 = vector.load %arg2[%c0_114, %c3, %c0_115] : memref<2x8x16xf32, #tpu.memory_space<vmem>>, vector<2x1x16xf32>
    %118 = vector.shape_cast %117 : vector<2x1x16xf32> to vector<2x16xf32>
    %c0_116 = arith.constant 0 : index
    %c0_117 = arith.constant 0 : index
    %119 = vector.load %arg4[%c0_116, %c0_117] : memref<16x32xf32, #tpu.memory_space<vmem>>, vector<16x32xf32>
    %cst_118 = arith.constant dense<0.000000e+00> : vector<2x32xf32>
    %120 = tpu.matmul %118, %119, %cst_118 {dimension_numbers = #tpu.dot_dimension_numbers<[1], [0], [0], [1], [0, 0, 1, 1], [], []>} : vector<2x16xf32>, vector<16x32xf32>, vector<2x32xf32> -> vector<2x32xf32>
    %c0_119 = arith.constant 0 : index
    %c0_120 = arith.constant 0 : index
    %c0_121 = arith.constant 0 : index
    %121 = vector.load %arg9[%c0_119, %c0_120, %c0_121] : memref<2x2x32xf32, #tpu.memory_space<vmem>>, vector<1x2x32xf32>
    %122 = vector.shape_cast %121 : vector<1x2x32xf32> to vector<2x32xf32>
    %c0_122 = arith.constant 0 : index
    %c0_123 = arith.constant 0 : index
    %c0_124 = arith.constant 0 : index
    %123 = vector.load %arg6[%c0_122, %c0_123, %c0_124] : memref<2x32x32xf32, #tpu.memory_space<vmem>>, vector<1x32x32xf32>
    %124 = vector.shape_cast %123 : vector<1x32x32xf32> to vector<32x32xf32>
    %cst_125 = arith.constant dense<0.000000e+00> : vector<2x32xf32>
    %125 = tpu.matmul %122, %124, %cst_125 {dimension_numbers = #tpu.dot_dimension_numbers<[1], [0], [0], [1], [0, 0, 1, 1], [], []>} : vector<2x32xf32>, vector<32x32xf32>, vector<2x32xf32> -> vector<2x32xf32>
    %126 = arith.addf %120, %125 : vector<2x32xf32>
    %c0_126 = arith.constant 0 : index
    %c0_127 = arith.constant 0 : index
    %c0_128 = arith.constant 0 : index
    %127 = vector.load %arg7[%c0_126, %c0_127, %c0_128] : memref<2x1x32xf32, #tpu.memory_space<vmem>>, vector<1x1x32xf32>
    %128 = vector.shape_cast %127 : vector<1x1x32xf32> to vector<1x32xf32>
    %129 = vector.broadcast %128 : vector<1x32xf32> to vector<2x32xf32>
    %130 = arith.addf %126, %129 : vector<2x32xf32>
    %131 = math.tanh %130 : vector<2x32xf32>
    %c0_129 = arith.constant 0 : index
    %c0_130 = arith.constant 0 : index
    %c0_131 = arith.constant 0 : index
    %132 = vector.load %arg9[%c0_129, %c0_130, %c0_131] : memref<2x2x32xf32, #tpu.memory_space<vmem>>, vector<1x2x32xf32>
    %133 = vector.shape_cast %132 : vector<1x2x32xf32> to vector<2x32xf32>
    %134 = vector.shape_cast %131 : vector<2x32xf32> to vector<1x2x32xf32>
    tpu.vector_store %arg9[%c0_129, %c0_130, %c0_131], %134 {strides = array<i32>} : memref<2x2x32xf32, #tpu.memory_space<vmem>>, vector<1x2x32xf32>,
    %c0_132 = arith.constant 0 : index
    %c0_133 = arith.constant 0 : index
    %c0_134 = arith.constant 0 : index
    %135 = vector.load %arg5[%c0_132, %c0_133, %c0_134] : memref<1x32x32xf32, #tpu.memory_space<vmem>>, vector<1x32x32xf32>
    %136 = vector.shape_cast %135 : vector<1x32x32xf32> to vector<32x32xf32>
    %cst_135 = arith.constant dense<0.000000e+00> : vector<2x32xf32>
    %137 = tpu.matmul %131, %136, %cst_135 {dimension_numbers = #tpu.dot_dimension_numbers<[1], [0], [0], [1], [0, 0, 1, 1], [], []>} : vector<2x32xf32>, vector<32x32xf32>, vector<2x32xf32> -> vector<2x32xf32>
    %c1_136 = arith.constant 1 : index
    %c0_137 = arith.constant 0 : index
    %c0_138 = arith.constant 0 : index
    %138 = vector.load %arg9[%c1_136, %c0_137, %c0_138] : memref<2x2x32xf32, #tpu.memory_space<vmem>>, vector<1x2x32xf32>
    %139 = vector.shape_cast %138 : vector<1x2x32xf32> to vector<2x32xf32>
    %c1_139 = arith.constant 1 : index
    %c0_140 = arith.constant 0 : index
    %c0_141 = arith.constant 0 : index
    %140 = vector.load %arg6[%c1_139, %c0_140, %c0_141] : memref<2x32x32xf32, #tpu.memory_space<vmem>>, vector<1x32x32xf32>
    %141 = vector.shape_cast %140 : vector<1x32x32xf32> to vector<32x32xf32>
    %cst_142 = arith.constant dense<0.000000e+00> : vector<2x32xf32>
    %142 = tpu.matmul %139, %141, %cst_142 {dimension_numbers = #tpu.dot_dimension_numbers<[1], [0], [0], [1], [0, 0, 1, 1], [], []>} : vector<2x32xf32>, vector<32x32xf32>, vector<2x32xf32> -> vector<2x32xf32>
    %143 = arith.addf %137, %142 : vector<2x32xf32>
    %c1_143 = arith.constant 1 : index
    %c0_144 = arith.constant 0 : index
    %c0_145 = arith.constant 0 : index
    %144 = vector.load %arg7[%c1_143, %c0_144, %c0_145] : memref<2x1x32xf32, #tpu.memory_space<vmem>>, vector<1x1x32xf32>
    %145 = vector.shape_cast %144 : vector<1x1x32xf32> to vector<1x32xf32>
    %146 = vector.broadcast %145 : vector<1x32xf32> to vector<2x32xf32>
    %147 = arith.addf %143, %146 : vector<2x32xf32>
    %148 = math.tanh %147 : vector<2x32xf32>
    %c1_146 = arith.constant 1 : index
    %c0_147 = arith.constant 0 : index
    %c0_148 = arith.constant 0 : index
    %149 = vector.load %arg9[%c1_146, %c0_147, %c0_148] : memref<2x2x32xf32, #tpu.memory_space<vmem>>, vector<1x2x32xf32>
    %150 = vector.shape_cast %149 : vector<1x2x32xf32> to vector<2x32xf32>
    %151 = vector.shape_cast %148 : vector<2x32xf32> to vector<1x2x32xf32>
    tpu.vector_store %arg9[%c1_146, %c0_147, %c0_148], %151 {strides = array<i32>} : memref<2x2x32xf32, #tpu.memory_space<vmem>>, vector<1x2x32xf32>,
    %c0_149 = arith.constant 0 : index
    %c3_150 = arith.constant 3 : index
    %c0_151 = arith.constant 0 : index
    %152 = vector.load %arg8[%c0_149, %c3_150, %c0_151] : memref<2x8x32xf32, #tpu.memory_space<vmem>>, vector<2x1x32xf32>
    %153 = vector.shape_cast %152 : vector<2x1x32xf32> to vector<2x32xf32>
    %154 = vector.shape_cast %148 : vector<2x32xf32> to vector<2x1x32xf32>
    tpu.vector_store %arg8[%c0_149, %c3_150, %c0_151], %154 {strides = array<i32>} : memref<2x8x32xf32, #tpu.memory_space<vmem>>, vector<2x1x32xf32>,
    %c0_152 = arith.constant 0 : index
    %c4 = arith.constant 4 : index
    %c0_153 = arith.constant 0 : index
    %155 = vector.load %arg2[%c0_152, %c4, %c0_153] : memref<2x8x16xf32, #tpu.memory_space<vmem>>, vector<2x1x16xf32>
    %156 = vector.shape_cast %155 : vector<2x1x16xf32> to vector<2x16xf32>
    %c0_154 = arith.constant 0 : index
    %c0_155 = arith.constant 0 : index
    %157 = vector.load %arg4[%c0_154, %c0_155] : memref<16x32xf32, #tpu.memory_space<vmem>>, vector<16x32xf32>
    %cst_156 = arith.constant dense<0.000000e+00> : vector<2x32xf32>
    %158 = tpu.matmul %156, %157, %cst_156 {dimension_numbers = #tpu.dot_dimension_numbers<[1], [0], [0], [1], [0, 0, 1, 1], [], []>} : vector<2x16xf32>, vector<16x32xf32>, vector<2x32xf32> -> vector<2x32xf32>
    %c0_157 = arith.constant 0 : index
    %c0_158 = arith.constant 0 : index
    %c0_159 = arith.constant 0 : index
    %159 = vector.load %arg9[%c0_157, %c0_158, %c0_159] : memref<2x2x32xf32, #tpu.memory_space<vmem>>, vector<1x2x32xf32>
    %160 = vector.shape_cast %159 : vector<1x2x32xf32> to vector<2x32xf32>
    %c0_160 = arith.constant 0 : index
    %c0_161 = arith.constant 0 : index
    %c0_162 = arith.constant 0 : index
    %161 = vector.load %arg6[%c0_160, %c0_161, %c0_162] : memref<2x32x32xf32, #tpu.memory_space<vmem>>, vector<1x32x32xf32>
    %162 = vector.shape_cast %161 : vector<1x32x32xf32> to vector<32x32xf32>
    %cst_163 = arith.constant dense<0.000000e+00> : vector<2x32xf32>
    %163 = tpu.matmul %160, %162, %cst_163 {dimension_numbers = #tpu.dot_dimension_numbers<[1], [0], [0], [1], [0, 0, 1, 1], [], []>} : vector<2x32xf32>, vector<32x32xf32>, vector<2x32xf32> -> vector<2x32xf32>
    %164 = arith.addf %158, %163 : vector<2x32xf32>
    %c0_164 = arith.constant 0 : index
    %c0_165 = arith.constant 0 : index
    %c0_166 = arith.constant 0 : index
    %165 = vector.load %arg7[%c0_164, %c0_165, %c0_166] : memref<2x1x32xf32, #tpu.memory_space<vmem>>, vector<1x1x32xf32>
    %166 = vector.shape_cast %165 : vector<1x1x32xf32> to vector<1x32xf32>
    %167 = vector.broadcast %166 : vector<1x32xf32> to vector<2x32xf32>
    %168 = arith.addf %164, %167 : vector<2x32xf32>
    %169 = math.tanh %168 : vector<2x32xf32>
    %c0_167 = arith.constant 0 : index
    %c0_168 = arith.constant 0 : index
    %c0_169 = arith.constant 0 : index
    %170 = vector.load %arg9[%c0_167, %c0_168, %c0_169] : memref<2x2x32xf32, #tpu.memory_space<vmem>>, vector<1x2x32xf32>
    %171 = vector.shape_cast %170 : vector<1x2x32xf32> to vector<2x32xf32>
    %172 = vector.shape_cast %169 : vector<2x32xf32> to vector<1x2x32xf32>
    tpu.vector_store %arg9[%c0_167, %c0_168, %c0_169], %172 {strides = array<i32>} : memref<2x2x32xf32, #tpu.memory_space<vmem>>, vector<1x2x32xf32>,
    %c0_170 = arith.constant 0 : index
    %c0_171 = arith.constant 0 : index
    %c0_172 = arith.constant 0 : index
    %173 = vector.load %arg5[%c0_170, %c0_171, %c0_172] : memref<1x32x32xf32, #tpu.memory_space<vmem>>, vector<1x32x32xf32>
    %174 = vector.shape_cast %173 : vector<1x32x32xf32> to vector<32x32xf32>
    %cst_173 = arith.constant dense<0.000000e+00> : vector<2x32xf32>
    %175 = tpu.matmul %169, %174, %cst_173 {dimension_numbers = #tpu.dot_dimension_numbers<[1], [0], [0], [1], [0, 0, 1, 1], [], []>} : vector<2x32xf32>, vector<32x32xf32>, vector<2x32xf32> -> vector<2x32xf32>
    %c1_174 = arith.constant 1 : index
    %c0_175 = arith.constant 0 : index
    %c0_176 = arith.constant 0 : index
    %176 = vector.load %arg9[%c1_174, %c0_175, %c0_176] : memref<2x2x32xf32, #tpu.memory_space<vmem>>, vector<1x2x32xf32>
    %177 = vector.shape_cast %176 : vector<1x2x32xf32> to vector<2x32xf32>
    %c1_177 = arith.constant 1 : index
    %c0_178 = arith.constant 0 : index
    %c0_179 = arith.constant 0 : index
    %178 = vector.load %arg6[%c1_177, %c0_178, %c0_179] : memref<2x32x32xf32, #tpu.memory_space<vmem>>, vector<1x32x32xf32>
    %179 = vector.shape_cast %178 : vector<1x32x32xf32> to vector<32x32xf32>
    %cst_180 = arith.constant dense<0.000000e+00> : vector<2x32xf32>
    %180 = tpu.matmul %177, %179, %cst_180 {dimension_numbers = #tpu.dot_dimension_numbers<[1], [0], [0], [1], [0, 0, 1, 1], [], []>} : vector<2x32xf32>, vector<32x32xf32>, vector<2x32xf32> -> vector<2x32xf32>
    %181 = arith.addf %175, %180 : vector<2x32xf32>
    %c1_181 = arith.constant 1 : index
    %c0_182 = arith.constant 0 : index
    %c0_183 = arith.constant 0 : index
    %182 = vector.load %arg7[%c1_181, %c0_182, %c0_183] : memref<2x1x32xf32, #tpu.memory_space<vmem>>, vector<1x1x32xf32>
    %183 = vector.shape_cast %182 : vector<1x1x32xf32> to vector<1x32xf32>
    %184 = vector.broadcast %183 : vector<1x32xf32> to vector<2x32xf32>
    %185 = arith.addf %181, %184 : vector<2x32xf32>
    %186 = math.tanh %185 : vector<2x32xf32>
    %c1_184 = arith.constant 1 : index
    %c0_185 = arith.constant 0 : index
    %c0_186 = arith.constant 0 : index
    %187 = vector.load %arg9[%c1_184, %c0_185, %c0_186] : memref<2x2x32xf32, #tpu.memory_space<vmem>>, vector<1x2x32xf32>
    %188 = vector.shape_cast %187 : vector<1x2x32xf32> to vector<2x32xf32>
    %189 = vector.shape_cast %186 : vector<2x32xf32> to vector<1x2x32xf32>
    tpu.vector_store %arg9[%c1_184, %c0_185, %c0_186], %189 {strides = array<i32>} : memref<2x2x32xf32, #tpu.memory_space<vmem>>, vector<1x2x32xf32>,
    %c0_187 = arith.constant 0 : index
    %c4_188 = arith.constant 4 : index
    %c0_189 = arith.constant 0 : index
    %190 = vector.load %arg8[%c0_187, %c4_188, %c0_189] : memref<2x8x32xf32, #tpu.memory_space<vmem>>, vector<2x1x32xf32>
    %191 = vector.shape_cast %190 : vector<2x1x32xf32> to vector<2x32xf32>
    %192 = vector.shape_cast %186 : vector<2x32xf32> to vector<2x1x32xf32>
    tpu.vector_store %arg8[%c0_187, %c4_188, %c0_189], %192 {strides = array<i32>} : memref<2x8x32xf32, #tpu.memory_space<vmem>>, vector<2x1x32xf32>,
    %c0_190 = arith.constant 0 : index
    %c5 = arith.constant 5 : index
    %c0_191 = arith.constant 0 : index
    %193 = vector.load %arg2[%c0_190, %c5, %c0_191] : memref<2x8x16xf32, #tpu.memory_space<vmem>>, vector<2x1x16xf32>
    %194 = vector.shape_cast %193 : vector<2x1x16xf32> to vector<2x16xf32>
    %c0_192 = arith.constant 0 : index
    %c0_193 = arith.constant 0 : index
    %195 = vector.load %arg4[%c0_192, %c0_193] : memref<16x32xf32, #tpu.memory_space<vmem>>, vector<16x32xf32>
    %cst_194 = arith.constant dense<0.000000e+00> : vector<2x32xf32>
    %196 = tpu.matmul %194, %195, %cst_194 {dimension_numbers = #tpu.dot_dimension_numbers<[1], [0], [0], [1], [0, 0, 1, 1], [], []>} : vector<2x16xf32>, vector<16x32xf32>, vector<2x32xf32> -> vector<2x32xf32>
    %c0_195 = arith.constant 0 : index
    %c0_196 = arith.constant 0 : index
    %c0_197 = arith.constant 0 : index
    %197 = vector.load %arg9[%c0_195, %c0_196, %c0_197] : memref<2x2x32xf32, #tpu.memory_space<vmem>>, vector<1x2x32xf32>
    %198 = vector.shape_cast %197 : vector<1x2x32xf32> to vector<2x32xf32>
    %c0_198 = arith.constant 0 : index
    %c0_199 = arith.constant 0 : index
    %c0_200 = arith.constant 0 : index
    %199 = vector.load %arg6[%c0_198, %c0_199, %c0_200] : memref<2x32x32xf32, #tpu.memory_space<vmem>>, vector<1x32x32xf32>
    %200 = vector.shape_cast %199 : vector<1x32x32xf32> to vector<32x32xf32>
    %cst_201 = arith.constant dense<0.000000e+00> : vector<2x32xf32>
    %201 = tpu.matmul %198, %200, %cst_201 {dimension_numbers = #tpu.dot_dimension_numbers<[1], [0], [0], [1], [0, 0, 1, 1], [], []>} : vector<2x32xf32>, vector<32x32xf32>, vector<2x32xf32> -> vector<2x32xf32>
    %202 = arith.addf %196, %201 : vector<2x32xf32>
    %c0_202 = arith.constant 0 : index
    %c0_203 = arith.constant 0 : index
    %c0_204 = arith.constant 0 : index
    %203 = vector.load %arg7[%c0_202, %c0_203, %c0_204] : memref<2x1x32xf32, #tpu.memory_space<vmem>>, vector<1x1x32xf32>
    %204 = vector.shape_cast %203 : vector<1x1x32xf32> to vector<1x32xf32>
    %205 = vector.broadcast %204 : vector<1x32xf32> to vector<2x32xf32>
    %206 = arith.addf %202, %205 : vector<2x32xf32>
    %207 = math.tanh %206 : vector<2x32xf32>
    %c0_205 = arith.constant 0 : index
    %c0_206 = arith.constant 0 : index
    %c0_207 = arith.constant 0 : index
    %208 = vector.load %arg9[%c0_205, %c0_206, %c0_207] : memref<2x2x32xf32, #tpu.memory_space<vmem>>, vector<1x2x32xf32>
    %209 = vector.shape_cast %208 : vector<1x2x32xf32> to vector<2x32xf32>
    %210 = vector.shape_cast %207 : vector<2x32xf32> to vector<1x2x32xf32>
    tpu.vector_store %arg9[%c0_205, %c0_206, %c0_207], %210 {strides = array<i32>} : memref<2x2x32xf32, #tpu.memory_space<vmem>>, vector<1x2x32xf32>,
    %c0_208 = arith.constant 0 : index
    %c0_209 = arith.constant 0 : index
    %c0_210 = arith.constant 0 : index
    %211 = vector.load %arg5[%c0_208, %c0_209, %c0_210] : memref<1x32x32xf32, #tpu.memory_space<vmem>>, vector<1x32x32xf32>
    %212 = vector.shape_cast %211 : vector<1x32x32xf32> to vector<32x32xf32>
    %cst_211 = arith.constant dense<0.000000e+00> : vector<2x32xf32>
    %213 = tpu.matmul %207, %212, %cst_211 {dimension_numbers = #tpu.dot_dimension_numbers<[1], [0], [0], [1], [0, 0, 1, 1], [], []>} : vector<2x32xf32>, vector<32x32xf32>, vector<2x32xf32> -> vector<2x32xf32>
    %c1_212 = arith.constant 1 : index
    %c0_213 = arith.constant 0 : index
    %c0_214 = arith.constant 0 : index
    %214 = vector.load %arg9[%c1_212, %c0_213, %c0_214] : memref<2x2x32xf32, #tpu.memory_space<vmem>>, vector<1x2x32xf32>
    %215 = vector.shape_cast %214 : vector<1x2x32xf32> to vector<2x32xf32>
    %c1_215 = arith.constant 1 : index
    %c0_216 = arith.constant 0 : index
    %c0_217 = arith.constant 0 : index
    %216 = vector.load %arg6[%c1_215, %c0_216, %c0_217] : memref<2x32x32xf32, #tpu.memory_space<vmem>>, vector<1x32x32xf32>
    %217 = vector.shape_cast %216 : vector<1x32x32xf32> to vector<32x32xf32>
    %cst_218 = arith.constant dense<0.000000e+00> : vector<2x32xf32>
    %218 = tpu.matmul %215, %217, %cst_218 {dimension_numbers = #tpu.dot_dimension_numbers<[1], [0], [0], [1], [0, 0, 1, 1], [], []>} : vector<2x32xf32>, vector<32x32xf32>, vector<2x32xf32> -> vector<2x32xf32>
    %219 = arith.addf %213, %218 : vector<2x32xf32>
    %c1_219 = arith.constant 1 : index
    %c0_220 = arith.constant 0 : index
    %c0_221 = arith.constant 0 : index
    %220 = vector.load %arg7[%c1_219, %c0_220, %c0_221] : memref<2x1x32xf32, #tpu.memory_space<vmem>>, vector<1x1x32xf32>
    %221 = vector.shape_cast %220 : vector<1x1x32xf32> to vector<1x32xf32>
    %222 = vector.broadcast %221 : vector<1x32xf32> to vector<2x32xf32>
    %223 = arith.addf %219, %222 : vector<2x32xf32>
    %224 = math.tanh %223 : vector<2x32xf32>
    %c1_222 = arith.constant 1 : index
    %c0_223 = arith.constant 0 : index
    %c0_224 = arith.constant 0 : index
    %225 = vector.load %arg9[%c1_222, %c0_223, %c0_224] : memref<2x2x32xf32, #tpu.memory_space<vmem>>, vector<1x2x32xf32>
    %226 = vector.shape_cast %225 : vector<1x2x32xf32> to vector<2x32xf32>
    %227 = vector.shape_cast %224 : vector<2x32xf32> to vector<1x2x32xf32>
    tpu.vector_store %arg9[%c1_222, %c0_223, %c0_224], %227 {strides = array<i32>} : memref<2x2x32xf32, #tpu.memory_space<vmem>>, vector<1x2x32xf32>,
    %c0_225 = arith.constant 0 : index
    %c5_226 = arith.constant 5 : index
    %c0_227 = arith.constant 0 : index
    %228 = vector.load %arg8[%c0_225, %c5_226, %c0_227] : memref<2x8x32xf32, #tpu.memory_space<vmem>>, vector<2x1x32xf32>
    %229 = vector.shape_cast %228 : vector<2x1x32xf32> to vector<2x32xf32>
    %230 = vector.shape_cast %224 : vector<2x32xf32> to vector<2x1x32xf32>
    tpu.vector_store %arg8[%c0_225, %c5_226, %c0_227], %230 {strides = array<i32>} : memref<2x8x32xf32, #tpu.memory_space<vmem>>, vector<2x1x32xf32>,
    %c0_228 = arith.constant 0 : index
    %c6 = arith.constant 6 : index
    %c0_229 = arith.constant 0 : index
    %231 = vector.load %arg2[%c0_228, %c6, %c0_229] : memref<2x8x16xf32, #tpu.memory_space<vmem>>, vector<2x1x16xf32>
    %232 = vector.shape_cast %231 : vector<2x1x16xf32> to vector<2x16xf32>
    %c0_230 = arith.constant 0 : index
    %c0_231 = arith.constant 0 : index
    %233 = vector.load %arg4[%c0_230, %c0_231] : memref<16x32xf32, #tpu.memory_space<vmem>>, vector<16x32xf32>
    %cst_232 = arith.constant dense<0.000000e+00> : vector<2x32xf32>
    %234 = tpu.matmul %232, %233, %cst_232 {dimension_numbers = #tpu.dot_dimension_numbers<[1], [0], [0], [1], [0, 0, 1, 1], [], []>} : vector<2x16xf32>, vector<16x32xf32>, vector<2x32xf32> -> vector<2x32xf32>
    %c0_233 = arith.constant 0 : index
    %c0_234 = arith.constant 0 : index
    %c0_235 = arith.constant 0 : index
    %235 = vector.load %arg9[%c0_233, %c0_234, %c0_235] : memref<2x2x32xf32, #tpu.memory_space<vmem>>, vector<1x2x32xf32>
    %236 = vector.shape_cast %235 : vector<1x2x32xf32> to vector<2x32xf32>
    %c0_236 = arith.constant 0 : index
    %c0_237 = arith.constant 0 : index
    %c0_238 = arith.constant 0 : index
    %237 = vector.load %arg6[%c0_236, %c0_237, %c0_238] : memref<2x32x32xf32, #tpu.memory_space<vmem>>, vector<1x32x32xf32>
    %238 = vector.shape_cast %237 : vector<1x32x32xf32> to vector<32x32xf32>
    %cst_239 = arith.constant dense<0.000000e+00> : vector<2x32xf32>
    %239 = tpu.matmul %236, %238, %cst_239 {dimension_numbers = #tpu.dot_dimension_numbers<[1], [0], [0], [1], [0, 0, 1, 1], [], []>} : vector<2x32xf32>, vector<32x32xf32>, vector<2x32xf32> -> vector<2x32xf32>
    %240 = arith.addf %234, %239 : vector<2x32xf32>
    %c0_240 = arith.constant 0 : index
    %c0_241 = arith.constant 0 : index
    %c0_242 = arith.constant 0 : index
    %241 = vector.load %arg7[%c0_240, %c0_241, %c0_242] : memref<2x1x32xf32, #tpu.memory_space<vmem>>, vector<1x1x32xf32>
    %242 = vector.shape_cast %241 : vector<1x1x32xf32> to vector<1x32xf32>
    %243 = vector.broadcast %242 : vector<1x32xf32> to vector<2x32xf32>
    %244 = arith.addf %240, %243 : vector<2x32xf32>
    %245 = math.tanh %244 : vector<2x32xf32>
    %c0_243 = arith.constant 0 : index
    %c0_244 = arith.constant 0 : index
    %c0_245 = arith.constant 0 : index
    %246 = vector.load %arg9[%c0_243, %c0_244, %c0_245] : memref<2x2x32xf32, #tpu.memory_space<vmem>>, vector<1x2x32xf32>
    %247 = vector.shape_cast %246 : vector<1x2x32xf32> to vector<2x32xf32>
    %248 = vector.shape_cast %245 : vector<2x32xf32> to vector<1x2x32xf32>
    tpu.vector_store %arg9[%c0_243, %c0_244, %c0_245], %248 {strides = array<i32>} : memref<2x2x32xf32, #tpu.memory_space<vmem>>, vector<1x2x32xf32>,
    %c0_246 = arith.constant 0 : index
    %c0_247 = arith.constant 0 : index
    %c0_248 = arith.constant 0 : index
    %249 = vector.load %arg5[%c0_246, %c0_247, %c0_248] : memref<1x32x32xf32, #tpu.memory_space<vmem>>, vector<1x32x32xf32>
    %250 = vector.shape_cast %249 : vector<1x32x32xf32> to vector<32x32xf32>
    %cst_249 = arith.constant dense<0.000000e+00> : vector<2x32xf32>
    %251 = tpu.matmul %245, %250, %cst_249 {dimension_numbers = #tpu.dot_dimension_numbers<[1], [0], [0], [1], [0, 0, 1, 1], [], []>} : vector<2x32xf32>, vector<32x32xf32>, vector<2x32xf32> -> vector<2x32xf32>
    %c1_250 = arith.constant 1 : index
    %c0_251 = arith.constant 0 : index
    %c0_252 = arith.constant 0 : index
    %252 = vector.load %arg9[%c1_250, %c0_251, %c0_252] : memref<2x2x32xf32, #tpu.memory_space<vmem>>, vector<1x2x32xf32>
    %253 = vector.shape_cast %252 : vector<1x2x32xf32> to vector<2x32xf32>
    %c1_253 = arith.constant 1 : index
    %c0_254 = arith.constant 0 : index
    %c0_255 = arith.constant 0 : index
    %254 = vector.load %arg6[%c1_253, %c0_254, %c0_255] : memref<2x32x32xf32, #tpu.memory_space<vmem>>, vector<1x32x32xf32>
    %255 = vector.shape_cast %254 : vector<1x32x32xf32> to vector<32x32xf32>
    %cst_256 = arith.constant dense<0.000000e+00> : vector<2x32xf32>
    %256 = tpu.matmul %253, %255, %cst_256 {dimension_numbers = #tpu.dot_dimension_numbers<[1], [0], [0], [1], [0, 0, 1, 1], [], []>} : vector<2x32xf32>, vector<32x32xf32>, vector<2x32xf32> -> vector<2x32xf32>
    %257 = arith.addf %251, %256 : vector<2x32xf32>
    %c1_257 = arith.constant 1 : index
    %c0_258 = arith.constant 0 : index
    %c0_259 = arith.constant 0 : index
    %258 = vector.load %arg7[%c1_257, %c0_258, %c0_259] : memref<2x1x32xf32, #tpu.memory_space<vmem>>, vector<1x1x32xf32>
    %259 = vector.shape_cast %258 : vector<1x1x32xf32> to vector<1x32xf32>
    %260 = vector.broadcast %259 : vector<1x32xf32> to vector<2x32xf32>
    %261 = arith.addf %257, %260 : vector<2x32xf32>
    %262 = math.tanh %261 : vector<2x32xf32>
    %c1_260 = arith.constant 1 : index
    %c0_261 = arith.constant 0 : index
    %c0_262 = arith.constant 0 : index
    %263 = vector.load %arg9[%c1_260, %c0_261, %c0_262] : memref<2x2x32xf32, #tpu.memory_space<vmem>>, vector<1x2x32xf32>
    %264 = vector.shape_cast %263 : vector<1x2x32xf32> to vector<2x32xf32>
    %265 = vector.shape_cast %262 : vector<2x32xf32> to vector<1x2x32xf32>
    tpu.vector_store %arg9[%c1_260, %c0_261, %c0_262], %265 {strides = array<i32>} : memref<2x2x32xf32, #tpu.memory_space<vmem>>, vector<1x2x32xf32>,
    %c0_263 = arith.constant 0 : index
    %c6_264 = arith.constant 6 : index
    %c0_265 = arith.constant 0 : index
    %266 = vector.load %arg8[%c0_263, %c6_264, %c0_265] : memref<2x8x32xf32, #tpu.memory_space<vmem>>, vector<2x1x32xf32>
    %267 = vector.shape_cast %266 : vector<2x1x32xf32> to vector<2x32xf32>
    %268 = vector.shape_cast %262 : vector<2x32xf32> to vector<2x1x32xf32>
    tpu.vector_store %arg8[%c0_263, %c6_264, %c0_265], %268 {strides = array<i32>} : memref<2x8x32xf32, #tpu.memory_space<vmem>>, vector<2x1x32xf32>,
    %c0_266 = arith.constant 0 : index
    %c7 = arith.constant 7 : index
    %c0_267 = arith.constant 0 : index
    %269 = vector.load %arg2[%c0_266, %c7, %c0_267] : memref<2x8x16xf32, #tpu.memory_space<vmem>>, vector<2x1x16xf32>
    %270 = vector.shape_cast %269 : vector<2x1x16xf32> to vector<2x16xf32>
    %c0_268 = arith.constant 0 : index
    %c0_269 = arith.constant 0 : index
    %271 = vector.load %arg4[%c0_268, %c0_269] : memref<16x32xf32, #tpu.memory_space<vmem>>, vector<16x32xf32>
    %cst_270 = arith.constant dense<0.000000e+00> : vector<2x32xf32>
    %272 = tpu.matmul %270, %271, %cst_270 {dimension_numbers = #tpu.dot_dimension_numbers<[1], [0], [0], [1], [0, 0, 1, 1], [], []>} : vector<2x16xf32>, vector<16x32xf32>, vector<2x32xf32> -> vector<2x32xf32>
    %c0_271 = arith.constant 0 : index
    %c0_272 = arith.constant 0 : index
    %c0_273 = arith.constant 0 : index
    %273 = vector.load %arg9[%c0_271, %c0_272, %c0_273] : memref<2x2x32xf32, #tpu.memory_space<vmem>>, vector<1x2x32xf32>
    %274 = vector.shape_cast %273 : vector<1x2x32xf32> to vector<2x32xf32>
    %c0_274 = arith.constant 0 : index
    %c0_275 = arith.constant 0 : index
    %c0_276 = arith.constant 0 : index
    %275 = vector.load %arg6[%c0_274, %c0_275, %c0_276] : memref<2x32x32xf32, #tpu.memory_space<vmem>>, vector<1x32x32xf32>
    %276 = vector.shape_cast %275 : vector<1x32x32xf32> to vector<32x32xf32>
    %cst_277 = arith.constant dense<0.000000e+00> : vector<2x32xf32>
    %277 = tpu.matmul %274, %276, %cst_277 {dimension_numbers = #tpu.dot_dimension_numbers<[1], [0], [0], [1], [0, 0, 1, 1], [], []>} : vector<2x32xf32>, vector<32x32xf32>, vector<2x32xf32> -> vector<2x32xf32>
    %278 = arith.addf %272, %277 : vector<2x32xf32>
    %c0_278 = arith.constant 0 : index
    %c0_279 = arith.constant 0 : index
    %c0_280 = arith.constant 0 : index
    %279 = vector.load %arg7[%c0_278, %c0_279, %c0_280] : memref<2x1x32xf32, #tpu.memory_space<vmem>>, vector<1x1x32xf32>
    %280 = vector.shape_cast %279 : vector<1x1x32xf32> to vector<1x32xf32>
    %281 = vector.broadcast %280 : vector<1x32xf32> to vector<2x32xf32>
    %282 = arith.addf %278, %281 : vector<2x32xf32>
    %283 = math.tanh %282 : vector<2x32xf32>
    %c0_281 = arith.constant 0 : index
    %c0_282 = arith.constant 0 : index
    %c0_283 = arith.constant 0 : index
    %284 = vector.load %arg9[%c0_281, %c0_282, %c0_283] : memref<2x2x32xf32, #tpu.memory_space<vmem>>, vector<1x2x32xf32>
    %285 = vector.shape_cast %284 : vector<1x2x32xf32> to vector<2x32xf32>
    %286 = vector.shape_cast %283 : vector<2x32xf32> to vector<1x2x32xf32>
    tpu.vector_store %arg9[%c0_281, %c0_282, %c0_283], %286 {strides = array<i32>} : memref<2x2x32xf32, #tpu.memory_space<vmem>>, vector<1x2x32xf32>,
    %c0_284 = arith.constant 0 : index
    %c0_285 = arith.constant 0 : index
    %c0_286 = arith.constant 0 : index
    %287 = vector.load %arg5[%c0_284, %c0_285, %c0_286] : memref<1x32x32xf32, #tpu.memory_space<vmem>>, vector<1x32x32xf32>
    %288 = vector.shape_cast %287 : vector<1x32x32xf32> to vector<32x32xf32>
    %cst_287 = arith.constant dense<0.000000e+00> : vector<2x32xf32>
    %289 = tpu.matmul %283, %288, %cst_287 {dimension_numbers = #tpu.dot_dimension_numbers<[1], [0], [0], [1], [0, 0, 1, 1], [], []>} : vector<2x32xf32>, vector<32x32xf32>, vector<2x32xf32> -> vector<2x32xf32>
    %c1_288 = arith.constant 1 : index
    %c0_289 = arith.constant 0 : index
    %c0_290 = arith.constant 0 : index
    %290 = vector.load %arg9[%c1_288, %c0_289, %c0_290] : memref<2x2x32xf32, #tpu.memory_space<vmem>>, vector<1x2x32xf32>
    %291 = vector.shape_cast %290 : vector<1x2x32xf32> to vector<2x32xf32>
    %c1_291 = arith.constant 1 : index
    %c0_292 = arith.constant 0 : index
    %c0_293 = arith.constant 0 : index
    %292 = vector.load %arg6[%c1_291, %c0_292, %c0_293] : memref<2x32x32xf32, #tpu.memory_space<vmem>>, vector<1x32x32xf32>
    %293 = vector.shape_cast %292 : vector<1x32x32xf32> to vector<32x32xf32>
    %cst_294 = arith.constant dense<0.000000e+00> : vector<2x32xf32>
    %294 = tpu.matmul %291, %293, %cst_294 {dimension_numbers = #tpu.dot_dimension_numbers<[1], [0], [0], [1], [0, 0, 1, 1], [], []>} : vector<2x32xf32>, vector<32x32xf32>, vector<2x32xf32> -> vector<2x32xf32>
    %295 = arith.addf %289, %294 : vector<2x32xf32>
    %c1_295 = arith.constant 1 : index
    %c0_296 = arith.constant 0 : index
    %c0_297 = arith.constant 0 : index
    %296 = vector.load %arg7[%c1_295, %c0_296, %c0_297] : memref<2x1x32xf32, #tpu.memory_space<vmem>>, vector<1x1x32xf32>
    %297 = vector.shape_cast %296 : vector<1x1x32xf32> to vector<1x32xf32>
    %298 = vector.broadcast %297 : vector<1x32xf32> to vector<2x32xf32>
    %299 = arith.addf %295, %298 : vector<2x32xf32>
    %300 = math.tanh %299 : vector<2x32xf32>
    %c1_298 = arith.constant 1 : index
    %c0_299 = arith.constant 0 : index
    %c0_300 = arith.constant 0 : index
    %301 = vector.load %arg9[%c1_298, %c0_299, %c0_300] : memref<2x2x32xf32, #tpu.memory_space<vmem>>, vector<1x2x32xf32>
    %302 = vector.shape_cast %301 : vector<1x2x32xf32> to vector<2x32xf32>
    %303 = vector.shape_cast %300 : vector<2x32xf32> to vector<1x2x32xf32>
    tpu.vector_store %arg9[%c1_298, %c0_299, %c0_300], %303 {strides = array<i32>} : memref<2x2x32xf32, #tpu.memory_space<vmem>>, vector<1x2x32xf32>,
    %c0_301 = arith.constant 0 : index
    %c7_302 = arith.constant 7 : index
    %c0_303 = arith.constant 0 : index
    %304 = vector.load %arg8[%c0_301, %c7_302, %c0_303] : memref<2x8x32xf32, #tpu.memory_space<vmem>>, vector<2x1x32xf32>
    %305 = vector.shape_cast %304 : vector<2x1x32xf32> to vector<2x32xf32>
    %306 = vector.shape_cast %300 : vector<2x32xf32> to vector<2x1x32xf32>
    tpu.vector_store %arg8[%c0_301, %c7_302, %c0_303], %306 {strides = array<i32>} : memref<2x8x32xf32, #tpu.memory_space<vmem>>, vector<2x1x32xf32>,
    return
  }
  func.func @transform_0(%arg0: i32, %arg1: i32) -> (i32, i32, i32) {
    %c0_i32 = arith.constant 0 : i32
    %c0_i32_0 = arith.constant 0 : i32
    return %arg0, %arg1, %c0_i32 : i32, i32, i32
  }
  func.func @transform_1(%arg0: i32, %arg1: i32) -> (i32, i32, i32) {
    %c0_i32 = arith.constant 0 : i32
    %c0_i32_0 = arith.constant 0 : i32
    %c0_i32_1 = arith.constant 0 : i32
    return %c0_i32, %arg0, %c0_i32_0 : i32, i32, i32
  }
  func.func @transform_2(%arg0: i32, %arg1: i32) -> (i32, i32) {
    %c0_i32 = arith.constant 0 : i32
    %c0_i32_0 = arith.constant 0 : i32
    %c0_i32_1 = arith.constant 0 : i32
    return %c0_i32, %c0_i32_0 : i32, i32
  }
  func.func @transform_3(%arg0: i32, %arg1: i32) -> (i32, i32, i32) {
    %c0_i32 = arith.constant 0 : i32
    %c0_i32_0 = arith.constant 0 : i32
    %c0_i32_1 = arith.constant 0 : i32
    %c0_i32_2 = arith.constant 0 : i32
    return %c0_i32, %c0_i32_0, %c0_i32_1 : i32, i32, i32
  }
  func.func @transform_4(%arg0: i32, %arg1: i32) -> (i32, i32, i32) {
    %c0_i32 = arith.constant 0 : i32
    %c0_i32_0 = arith.constant 0 : i32
    %c0_i32_1 = arith.constant 0 : i32
    %c0_i32_2 = arith.constant 0 : i32
    return %c0_i32, %c0_i32_0, %c0_i32_1 : i32, i32, i32
  }
  func.func @transform_5(%arg0: i32, %arg1: i32) -> (i32, i32, i32) {
    %c0_i32 = arith.constant 0 : i32
    %c0_i32_0 = arith.constant 0 : i32
    %c0_i32_1 = arith.constant 0 : i32
    %c0_i32_2 = arith.constant 0 : i32
    return %c0_i32, %c0_i32_0, %c0_i32_1 : i32, i32, i32
  }
  func.func @transform_6(%arg0: i32, %arg1: i32) -> (i32, i32, i32) {
    %c0_i32 = arith.constant 0 : i32
    %c0_i32_0 = arith.constant 0 : i32
    return %arg0, %arg1, %c0_i32 : i32, i32, i32
  }
  func.func @transform_7(%arg0: i32, %arg1: i32) -> (i32, i32, i32) {
    %c0_i32 = arith.constant 0 : i32
    %c0_i32_0 = arith.constant 0 : i32
    %c0_i32_1 = arith.constant 0 : i32
    return %c0_i32, %arg0, %c0_i32_0 : i32, i32, i32
  }
}

module attributes {stable_mosaic.version = 11 : i64} {
  func.func @_epilogue_kernel(%arg0: i32, %arg1: i32, %arg2: memref<16x16xf32, #tpu.memory_space<vmem>>, %arg3: memref<16x32xf32, #tpu.memory_space<vmem>>, %arg4: memref<16x32xf32, #tpu.memory_space<vmem>>, %arg5: memref<1x32xf32, #tpu.memory_space<vmem>>, %arg6: memref<1x32xf32, #tpu.memory_space<vmem>>, %arg7: memref<1x32xf32, #tpu.memory_space<vmem>>, %arg8: memref<32x128xf32, #tpu.memory_space<vmem>>, %arg9: memref<1x128xf32, #tpu.memory_space<vmem>>, %arg10: memref<16x128xf32, #tpu.memory_space<vmem>>, %arg11: memref<16x32xf32, #tpu.memory_space<vmem>>) attributes {dimension_semantics = [#tpu.dimension_semantics<parallel>, #tpu.dimension_semantics<arbitrary>], iteration_bounds = array<i64: 1, 1>, scalar_prefetch = 0 : i64, scratch_operands = 1 : i64, tpu.core_type = #tpu.core_type<tc>, window_params = [{transform_indices = @transform_0, window_bounds = array<i64: 16, 16>}, {transform_indices = @transform_1, window_bounds = array<i64: 16, 32>}, {pipeline_mode = #tpu.pipeline_mode<synchronous>, transform_indices = @transform_2, window_bounds = array<i64: 16, 32>}, {pipeline_mode = #tpu.pipeline_mode<synchronous>, transform_indices = @transform_3, window_bounds = array<i64: 1, 32>}, {pipeline_mode = #tpu.pipeline_mode<synchronous>, transform_indices = @transform_4, window_bounds = array<i64: 1, 32>}, {pipeline_mode = #tpu.pipeline_mode<synchronous>, transform_indices = @transform_5, window_bounds = array<i64: 1, 32>}, {transform_indices = @transform_6, window_bounds = array<i64: 32, 128>}, {transform_indices = @transform_7, window_bounds = array<i64: 1, 128>}, {transform_indices = @transform_8, window_bounds = array<i64: 16, 128>}]} {
    %c0_i32 = arith.constant 0 : i32
    %0 = arith.cmpi eq, %arg1, %c0_i32 : i32
    %1 = arith.extui %0 : i1 to i32
    %c0_i32_0 = arith.constant 0 : i32
    %2 = arith.cmpi ne, %1, %c0_i32_0 : i32
    scf.if %2 {
      %c0_8 = arith.constant 0 : index
      %c0_9 = arith.constant 0 : index
      %10 = vector.load %arg2[%c0_8, %c0_9] : memref<16x16xf32, #tpu.memory_space<vmem>>, vector<16x16xf32>
      %c0_10 = arith.constant 0 : index
      %c0_11 = arith.constant 0 : index
      %11 = vector.load %arg4[%c0_10, %c0_11] : memref<16x32xf32, #tpu.memory_space<vmem>>, vector<16x32xf32>
      %cst_12 = arith.constant dense<0.000000e+00> : vector<16x32xf32>
      %12 = tpu.matmul %10, %11, %cst_12 {dimension_numbers = #tpu.dot_dimension_numbers<[1], [0], [0], [1], [0, 0, 1, 1], [], []>} : vector<16x16xf32>, vector<16x32xf32>, vector<16x32xf32> -> vector<16x32xf32>
      %c0_13 = arith.constant 0 : index
      %c0_14 = arith.constant 0 : index
      %13 = vector.load %arg5[%c0_13, %c0_14] : memref<1x32xf32, #tpu.memory_space<vmem>>, vector<1x32xf32>
      %14 = vector.broadcast %13 : vector<1x32xf32> to vector<16x32xf32>
      %15 = arith.addf %12, %14 : vector<16x32xf32>
      %c0_15 = arith.constant 0 : index
      %c0_16 = arith.constant 0 : index
      %16 = vector.load %arg3[%c0_15, %c0_16] : memref<16x32xf32, #tpu.memory_space<vmem>>, vector<16x32xf32>
      %17 = arith.addf %16, %15 : vector<16x32xf32>
      %cst_17 = arith.constant dense<0.000000e+00> : vector<16xf32>
      %18 = vector.multi_reduction <add>, %17, %cst_17 [1] : vector<16x32xf32> to vector<16xf32>
      %19 = vector.shape_cast %18 : vector<16xf32> to vector<16x1xf32>
      %cst_18 = arith.constant 3.200000e+01 : f32
      %20 = vector.broadcast %cst_18 : f32 to vector<16x1xf32>
      %21 = arith.divf %19, %20 : vector<16x1xf32>
      %22 = vector.broadcast %21 : vector<16x1xf32> to vector<16x32xf32>
      %23 = arith.subf %17, %22 : vector<16x32xf32>
      %24 = arith.mulf %23, %23 : vector<16x32xf32>
      %cst_19 = arith.constant dense<0.000000e+00> : vector<16xf32>
      %25 = vector.multi_reduction <add>, %24, %cst_19 [1] : vector<16x32xf32> to vector<16xf32>
      %26 = vector.shape_cast %25 : vector<16xf32> to vector<16x1xf32>
      %cst_20 = arith.constant 3.200000e+01 : f32
      %27 = vector.broadcast %cst_20 : f32 to vector<16x1xf32>
      %28 = arith.divf %26, %27 : vector<16x1xf32>
      %29 = vector.broadcast %21 : vector<16x1xf32> to vector<16x32xf32>
      %30 = arith.subf %17, %29 : vector<16x32xf32>
      %cst_21 = arith.constant 9.99999974E-6 : f32
      %31 = vector.broadcast %cst_21 : f32 to vector<16x1xf32>
      %32 = arith.addf %28, %31 : vector<16x1xf32>
      %33 = math.rsqrt %32 : vector<16x1xf32>
      %34 = vector.broadcast %33 : vector<16x1xf32> to vector<16x32xf32>
      %35 = arith.mulf %30, %34 : vector<16x32xf32>
      %c0_22 = arith.constant 0 : index
      %c0_23 = arith.constant 0 : index
      %36 = vector.load %arg6[%c0_22, %c0_23] : memref<1x32xf32, #tpu.memory_space<vmem>>, vector<1x32xf32>
      %37 = vector.broadcast %36 : vector<1x32xf32> to vector<16x32xf32>
      %38 = arith.mulf %35, %37 : vector<16x32xf32>
      %c0_24 = arith.constant 0 : index
      %c0_25 = arith.constant 0 : index
      %39 = vector.load %arg7[%c0_24, %c0_25] : memref<1x32xf32, #tpu.memory_space<vmem>>, vector<1x32xf32>
      %40 = vector.broadcast %39 : vector<1x32xf32> to vector<16x32xf32>
      %41 = arith.addf %38, %40 : vector<16x32xf32>
      %cst_26 = arith.constant 5.000000e-01 : f32
      %42 = vector.broadcast %cst_26 : f32 to vector<16x32xf32>
      %43 = arith.mulf %42, %41 : vector<16x32xf32>
      %cst_27 = arith.constant 0.707106769 : f32
      %44 = vector.broadcast %cst_27 : f32 to vector<16x32xf32>
      %45 = arith.mulf %41, %44 : vector<16x32xf32>
      %46 = math.erf %45 : vector<16x32xf32>
      %cst_28 = arith.constant 1.000000e+00 : f32
      %47 = vector.broadcast %cst_28 : f32 to vector<16x32xf32>
      %48 = arith.addf %47, %46 : vector<16x32xf32>
      %49 = arith.mulf %43, %48 : vector<16x32xf32>
      %c0_29 = arith.constant 0 : index
      %c0_30 = arith.constant 0 : index
      %50 = vector.load %arg11[%c0_29, %c0_30] : memref<16x32xf32, #tpu.memory_space<vmem>>, vector<16x32xf32>
      tpu.vector_store %arg11[%c0_29, %c0_30], %49 {strides = array<i32>} : memref<16x32xf32, #tpu.memory_space<vmem>>, vector<16x32xf32>,
    } else {
    }
    %c0 = arith.constant 0 : index
    %c0_1 = arith.constant 0 : index
    %3 = vector.load %arg11[%c0, %c0_1] : memref<16x32xf32, #tpu.memory_space<vmem>>, vector<16x32xf32>
    %c0_2 = arith.constant 0 : index
    %c0_3 = arith.constant 0 : index
    %4 = vector.load %arg8[%c0_2, %c0_3] : memref<32x128xf32, #tpu.memory_space<vmem>>, vector<32x128xf32>
    %cst = arith.constant dense<0.000000e+00> : vector<16x128xf32>
    %5 = tpu.matmul %3, %4, %cst {dimension_numbers = #tpu.dot_dimension_numbers<[1], [0], [0], [1], [0, 0, 1, 1], [], []>} : vector<16x32xf32>, vector<32x128xf32>, vector<16x128xf32> -> vector<16x128xf32>
    %c0_4 = arith.constant 0 : index
    %c0_5 = arith.constant 0 : index
    %6 = vector.load %arg9[%c0_4, %c0_5] : memref<1x128xf32, #tpu.memory_space<vmem>>, vector<1x128xf32>
    %7 = vector.broadcast %6 : vector<1x128xf32> to vector<16x128xf32>
    %8 = arith.addf %5, %7 : vector<16x128xf32>
    %c0_6 = arith.constant 0 : index
    %c0_7 = arith.constant 0 : index
    %9 = vector.load %arg10[%c0_6, %c0_7] : memref<16x128xf32, #tpu.memory_space<vmem>>, vector<16x128xf32>
    tpu.vector_store %arg10[%c0_6, %c0_7], %8 {strides = array<i32>} : memref<16x128xf32, #tpu.memory_space<vmem>>, vector<16x128xf32>,
    return
  }
  func.func @transform_0(%arg0: i32, %arg1: i32) -> (i32, i32) {
    %c0_i32 = arith.constant 0 : i32
    %c0_i32_0 = arith.constant 0 : i32
    return %arg0, %c0_i32 : i32, i32
  }
  func.func @transform_1(%arg0: i32, %arg1: i32) -> (i32, i32) {
    %c0_i32 = arith.constant 0 : i32
    %c0_i32_0 = arith.constant 0 : i32
    return %arg0, %c0_i32 : i32, i32
  }
  func.func @transform_2(%arg0: i32, %arg1: i32) -> (i32, i32) {
    %c0_i32 = arith.constant 0 : i32
    %c0_i32_0 = arith.constant 0 : i32
    %c0_i32_1 = arith.constant 0 : i32
    return %c0_i32, %c0_i32_0 : i32, i32
  }
  func.func @transform_3(%arg0: i32, %arg1: i32) -> (i32, i32) {
    %c0_i32 = arith.constant 0 : i32
    %c0_i32_0 = arith.constant 0 : i32
    %c0_i32_1 = arith.constant 0 : i32
    return %c0_i32, %c0_i32_0 : i32, i32
  }
  func.func @transform_4(%arg0: i32, %arg1: i32) -> (i32, i32) {
    %c0_i32 = arith.constant 0 : i32
    %c0_i32_0 = arith.constant 0 : i32
    %c0_i32_1 = arith.constant 0 : i32
    return %c0_i32, %c0_i32_0 : i32, i32
  }
  func.func @transform_5(%arg0: i32, %arg1: i32) -> (i32, i32) {
    %c0_i32 = arith.constant 0 : i32
    %c0_i32_0 = arith.constant 0 : i32
    %c0_i32_1 = arith.constant 0 : i32
    return %c0_i32, %c0_i32_0 : i32, i32
  }
  func.func @transform_6(%arg0: i32, %arg1: i32) -> (i32, i32) {
    %c0_i32 = arith.constant 0 : i32
    %c0_i32_0 = arith.constant 0 : i32
    return %c0_i32, %arg1 : i32, i32
  }
  func.func @transform_7(%arg0: i32, %arg1: i32) -> (i32, i32) {
    %c0_i32 = arith.constant 0 : i32
    %c0_i32_0 = arith.constant 0 : i32
    return %c0_i32, %arg1 : i32, i32
  }
  func.func @transform_8(%arg0: i32, %arg1: i32) -> (i32, i32) {
    %c0_i32 = arith.constant 0 : i32
    return %arg0, %arg1 : i32, i32
  }
}

</mosaic_0001>

<llo_original>
// kernel: _lambda_.3
$region0: #{_lambda_.3}
  #allocation0 [shape = 'u32[]', space=smem, size = 0x4, offset = 0x4, fixed_abs, tag = 'smem constant byte address 0x4 - core index']
  #allocation1 [shape = 'u32[144,128]{1,0:T(1,128)}', space=vmem, size = 0x12000, scoped, tag = 'internal scratch']
  #allocation2 [shape = 'f32[16,32]{1,0:T(8,128)}', space=vmem, size = 0x2000, scoped, tag = 'scratch operand']
  %s0 = inlined_call_operand.vmem [shape: f32[16,16], index: 0, kind: input, shape index: {}]
  %s1 = inlined_call_operand.vmem [shape: f32[16,32], index: 1, kind: input, shape index: {}]
  %s2 = inlined_call_operand.vmem [shape: f32[16,32], index: 2, kind: input, shape index: {}]
  %s3 = inlined_call_operand.vmem [shape: f32[1,32], index: 3, kind: input, shape index: {}]
  %s4 = inlined_call_operand.vmem [shape: f32[1,32], index: 4, kind: input, shape index: {}]
  %s5 = inlined_call_operand.vmem [shape: f32[1,32], index: 5, kind: input, shape index: {}]
  %s6 = inlined_call_operand.vmem [shape: f32[32,128], index: 6, kind: input, shape index: {}]
  %s7 = inlined_call_operand.vmem [shape: f32[1,128], index: 7, kind: input, shape index: {}]
  %s8 = inlined_call_operand.vmem [shape: f32[16,128], index: 8, kind: output, shape index: {}]
  %s9 = sld [smem:[#allocation0]]
  $region46: #{_lambda_.3} parent=0
    _
  %s11 = ssub.s32 1, %s9
  %s12 = scalar_select 0, %s11, %s9
  // Predicated region
  $region2: #{_lambda_.3} parent=0 // pred_check
    _
  $region3: #{_lambda_.3} parent=0 // pred_check_branch
    %14 = sbr.rel (0) target = $region5
  $region4: #{_lambda_.3} parent=0 // pred_region
    _
  $region5: #{_lambda_.3} parent=0 // pred_fallthru
    _
  // Predicated region
  $region6: #{_lambda_.3} parent=0 // pred_check
    _
  $region7: #{_lambda_.3} parent=0 // pred_check_branch
    %16 = sbr.rel (0) target = $region9
  $region8: #{_lambda_.3} parent=0 // pred_region
    _
  $region9: #{_lambda_.3} parent=0 // pred_fallthru
    _
  // Predicated region
  $region10: #{_lambda_.3} parent=0 // pred_check
    _
  $region11: #{_lambda_.3} parent=0 // pred_check_branch
    %18 = sbr.rel (0) target = $region13
  $region12: #{_lambda_.3} parent=0 // pred_region
    _
  $region13: #{_lambda_.3} parent=0 // pred_fallthru
    _
  // Predicated region
  $region14: #{_lambda_.3} parent=0 // pred_check
    _
  $region15: #{_lambda_.3} parent=0 // pred_check_branch
    %20 = sbr.rel (0) target = $region17
  $region16: #{_lambda_.3} parent=0 // pred_region
    _
  $region17: #{_lambda_.3} parent=0 // pred_fallthru
    _
  // Predicated region
  $region18: #{_lambda_.3} parent=0 // pred_check
    _
  $region19: #{_lambda_.3} parent=0 // pred_check_branch
    %22 = sbr.rel (0) target = $region21
  $region20: #{_lambda_.3} parent=0 // pred_region
    _
  $region21: #{_lambda_.3} parent=0 // pred_fallthru
    _
  // Predicated region
  $region22: #{_lambda_.3} parent=0 // pred_check
    _
  $region23: #{_lambda_.3} parent=0 // pred_check_branch
    %24 = sbr.rel (0) target = $region25
  $region24: #{_lambda_.3} parent=0 // pred_region
    _
  $region25: #{_lambda_.3} parent=0 // pred_fallthru
    _
  // Predicated region
  $region26: #{_lambda_.3} parent=0 // pred_check
    _
  $region27: #{_lambda_.3} parent=0 // pred_check_branch
    %26 = sbr.rel (0) target = $region29
  $region28: #{_lambda_.3} parent=0 // pred_region
    _
  $region29: #{_lambda_.3} parent=0 // pred_fallthru
    _
  // Predicated region
  $region30: #{_lambda_.3} parent=0 // pred_check
    _
  $region31: #{_lambda_.3} parent=0 // pred_check_branch
    %28 = sbr.rel (0) target = $region33
  $region32: #{_lambda_.3} parent=0 // pred_region
    _
  $region33: #{_lambda_.3} parent=0 // pred_fallthru
    _
  %p29 = scmp.eq.s32.totalorder 0, 0
  // Predicated region
  $region34: #{_lambda_.3} parent=0 // pred_check
    %p30 = pneg %p29
  $region35: #{_lambda_.3} parent=0 // pred_check_branch
    %32 = sbr.rel (%p30) target = $region37
  $region36: #{_lambda_.3} parent=0 // pred_region
    %v33 = vld [vmem:[%s0] sm:$0xff]
    %v34 = vld [vmem:[%s0 + $0x8] sm:$0xff]
    %v35 = vld [vmem:[%s2] sm:$0xff]
    %v36 = vld [vmem:[%s2 + $0x8] sm:$0xff]
    %v37 = vld [vmem:[%s3] sm:$0x1]
    %v39 = vlaneseq
    %v40 = vshrl.u32 %v39, 7
    %v41 = vsub.s32 0, %v40
    %v42 = vrot.slane %v37, %v41
    %vm44 = vcmask 130048
    %v46 = vsel %vm44, %v33, 0
    %v49 = vsel %vm44, %v34, 0
    %51 = vmatprep.subr.mxu0 0.0
    %52 = vmatpush1.msra.mxu0 %v35
    %53 = vmatprep.subr.mxu0 0.0
    %54 = vmatpush1.msra.mxu0 %v36
    %55 = vmatprep.subr.mxu0 0.0
    %56 = vmatpush1.msra.mxu0 0.0
    %57 = vmatprep.subr.mxu0 0.0
    %58 = vmatpush1.msra.mxu0 0.0
    %59 = vmatprep.subr.mxu0 0.0
    %60 = vmatpush1.msra.mxu0 0.0
    %61 = vmatprep.subr.mxu0 0.0
    %62 = vmatpush1.msra.mxu0 0.0
    %63 = vmatprep.subr.mxu0 0.0
    %64 = vmatpush1.msra.mxu0 0.0
    %65 = vmatprep.subr.mxu0 0.0
    %66 = vmatpush1.msra.mxu0 0.0
    %67 = vmatprep.subr.mxu0 0.0
    %68 = vmatpush1.msra.mxu0 0.0
    %69 = vmatprep.subr.mxu0 0.0
    %70 = vmatpush1.msra.mxu0 0.0
    %71 = vmatprep.subr.mxu0 0.0
    %72 = vmatpush1.msra.mxu0 0.0
    %73 = vmatprep.subr.mxu0 0.0
    %74 = vmatpush1.msra.mxu0 0.0
    %75 = vmatprep.subr.mxu0 0.0
    %76 = vmatpush1.msra.mxu0 0.0
    %77 = vmatprep.subr.mxu0 0.0
    %78 = vmatpush1.msra.mxu0 0.0
    %79 = vmatprep.subr.mxu0 0.0
    %80 = vmatpush1.msra.mxu0 0.0
    %81 = vmatprep.subr.mxu0 0.0
    %82 = vmatpush1.msra.mxu0 0.0
    %83 = vmatprep.subr.mxu0 0.0
    %84 = vmatpush1.msra.mxu0 0.0
    %85 = vmatprep.subr.mxu0 0.0
    %86 = vmatpush1.msra.mxu0 0.0
    %87 = vmatprep.subr.mxu0 0.0
    %88 = vmatpush1.msra.mxu0 0.0
    %89 = vmatprep.subr.mxu0 0.0
    %90 = vmatpush1.msra.mxu0 0.0
    %91 = vmatprep.subr.mxu0 0.0
    %92 = vmatpush1.msra.mxu0 0.0
    %93 = vmatprep.subr.mxu0 0.0
    %94 = vmatpush1.msra.mxu0 0.0
    %95 = vmatprep.subr.mxu0 0.0
    %96 = vmatpush1.msra.mxu0 0.0
    %97 = vmatprep.subr.mxu0 0.0
    %98 = vmatpush1.msra.mxu0 0.0
    %99 = vmatprep.subr.mxu0 0.0
    %100 = vmatpush1.msra.mxu0 0.0
    %101 = vmatprep.subr.mxu0 0.0
    %102 = vmatpush1.msra.mxu0 0.0
    %103 = vmatprep.subr.mxu0 0.0
    %104 = vmatpush1.msra.mxu0 0.0
    %105 = vmatprep.subr.mxu0 0.0
    %106 = vmatpush1.msra.mxu0 0.0
    %107 = vmatprep.subr.mxu0 0.0
    %108 = vmatpush1.msra.mxu0 0.0
    %109 = vmatprep.subr.mxu0 0.0
    %110 = vmatpush1.msra.mxu0 0.0
    %111 = vmatprep.subr.mxu0 0.0
    %112 = vmatpush1.msra.mxu0 0.0
    %113 = vmatprep.subr.mxu0 0.0
    %114 = vmatpush1.msra.mxu0 0.0
    %115 = vmatprep.mubr.f32.mxu0 0.0
    %116 = vmatmul.mubr.f32.gmra.mrb[0].mxu0 %v46
    %v117 = vpop.f32.mrb[0].mxu0
    %v118 = vadd.f32 %v42, %v117
    %v119 = vpop.f32.mrb[0].mxu0
    %120 = vmatprep.mubr.f32.mxu0 0.0
    %121 = vmatmul.mubr.f32.gmra.mrb[0].mxu0 %v49
    %v122 = vpop.f32.mrb[0].mxu0
    %v123 = vadd.f32 %v42, %v122
    %v124 = vpop.f32.mrb[0].mxu0
    %125 = vdwg.mxu0
    %v126 = vld [vmem:[%s1] sm:$0xff]
    %v127 = vld [vmem:[%s1 + $0x8] sm:$0xff]
    %v128 = vadd.f32 %v126, %v118
    %v129 = vadd.f32 %v127, %v123
    %vm130 = vcmask 261120
    %v131 = vsel %vm130, %v128, 0.0
    %132 = vadd.xlane.f32.xlu0 %v131
    %v133 = vpop.xlane.xlu0 %132
    %v134 = vsel %vm130, %v129, 0.0
    %135 = vadd.xlane.f32.xlu0 %v134
    %v136 = vpop.xlane.xlu0 %135
    %v137 = vrcp.pop 32.0
    %v138 = vmul.f32 %v133, %v137
    %v139 = vmul.f32 %v136, %v137
    %v140 = vsub.f32 %v128, %v138
    %v141 = vsub.f32 %v129, %v139
    %v142 = vmul.f32 %v140, %v140
    %v143 = vmul.f32 %v141, %v141
    %v144 = vsel %vm130, %v142, 0.0
    %145 = vadd.xlane.f32.xlu0 %v144
    %v146 = vpop.xlane.xlu0 %145
    %v147 = vsel %vm130, %v143, 0.0
    %148 = vadd.xlane.f32.xlu0 %v147
    %v149 = vpop.xlane.xlu0 %148
    %v150 = vmul.f32 %v146, %v137
    %v151 = vmul.f32 %v149, %v137
    %v152 = vadd.f32 %v150, 1e-05
    %v153 = vadd.f32 %v151, 1e-05
    %v154 = vrsqrt.pop %v152
    %v155 = vrsqrt.pop %v153
    %v156 = vmul.f32 %v140, %v154
    %v157 = vmul.f32 %v141, %v155
    %v158 = vld [vmem:[%s4] sm:$0x1]
    %v160 = vlaneseq
    %v161 = vshrl.u32 %v160, 7
    %v162 = vsub.s32 0, %v161
    %v163 = vrot.slane %v158, %v162
    %v165 = vmul.f32 %v156, %v163
    %v166 = vmul.f32 %v157, %v163
    %v167 = vld [vmem:[%s5] sm:$0x1]
    %v169 = vlaneseq
    %v170 = vshrl.u32 %v169, 7
    %v171 = vsub.s32 0, %v170
    %v172 = vrot.slane %v167, %v171
    %v174 = vadd.f32 %v165, %v172
    %v175 = vadd.f32 %v166, %v172
    %v176 = vmul.f32 %v174, 0.5
    %v177 = vmul.f32 %v175, 0.5
    %v178 = vmul.f32 %v174, 0.70710677
    %v179 = vmul.f32 %v175, 0.70710677
    %v180 = verf.f32.pop %v178
    %v181 = verf.f32.pop %v179
    %v182 = vadd.f32 %v180, 1.0
    %v183 = vadd.f32 %v181, 1.0
    %v184 = vmul.f32 %v176, %v182
    %v185 = vmul.f32 %v177, %v183
    %186 = vst.msk [vmem:[#allocation2] sm:$0xff] %vm130, %v184
    %187 = vst.msk [vmem:[#allocation2 + $0x8] sm:$0xff] %vm130, %v185
  $region37: #{_lambda_.3} parent=0 // pred_fallthru
    _
  %v188 = vld [vmem:[#allocation2] sm:$0xff]
  %v189 = vld [vmem:[#allocation2 + $0x8] sm:$0xff]
  %v190 = vld [vmem:[%s6] sm:$0xff]
  %v191 = vld [vmem:[%s6 + $0x8] sm:$0xff]
  %v192 = vld [vmem:[%s6 + $0x10] sm:$0xff]
  %v193 = vld [vmem:[%s6 + $0x18] sm:$0xff]
  %v194 = vld [vmem:[%s7] sm:$0x1]
  %v196 = vlaneseq
  %v197 = vshrl.u32 %v196, 7
  %v198 = vsub.s32 0, %v197
  %v199 = vrot.slane %v194, %v198
  %vm201 = vcmask 261120
  %v203 = vsel %vm201, %v188, 0
  %v206 = vsel %vm201, %v189, 0
  %208 = vmatprep.subr.mxu0 0.0
  %209 = vmatpush1.msra.mxu0 %v190
  %210 = vmatprep.subr.mxu0 0.0
  %211 = vmatpush1.msra.mxu0 %v191
  %212 = vmatprep.subr.mxu0 0.0
  %213 = vmatpush1.msra.mxu0 %v192
  %214 = vmatprep.subr.mxu0 0.0
  %215 = vmatpush1.msra.mxu0 %v193
  %216 = vmatprep.subr.mxu0 0.0
  %217 = vmatpush1.msra.mxu0 0.0
  %218 = vmatprep.subr.mxu0 0.0
  %219 = vmatpush1.msra.mxu0 0.0
  %220 = vmatprep.subr.mxu0 0.0
  %221 = vmatpush1.msra.mxu0 0.0
  %222 = vmatprep.subr.mxu0 0.0
  %223 = vmatpush1.msra.mxu0 0.0
  %224 = vmatprep.subr.mxu0 0.0
  %225 = vmatpush1.msra.mxu0 0.0
  %226 = vmatprep.subr.mxu0 0.0
  %227 = vmatpush1.msra.mxu0 0.0
  %228 = vmatprep.subr.mxu0 0.0
  %229 = vmatpush1.msra.mxu0 0.0
  %230 = vmatprep.subr.mxu0 0.0
  %231 = vmatpush1.msra.mxu0 0.0
  %232 = vmatprep.subr.mxu0 0.0
  %233 = vmatpush1.msra.mxu0 0.0
  %234 = vmatprep.subr.mxu0 0.0
  %235 = vmatpush1.msra.mxu0 0.0
  %236 = vmatprep.subr.mxu0 0.0
  %237 = vmatpush1.msra.mxu0 0.0
  %238 = vmatprep.subr.mxu0 0.0
  %239 = vmatpush1.msra.mxu0 0.0
  %240 = vmatprep.subr.mxu0 0.0
  %241 = vmatpush1.msra.mxu0 0.0
  %242 = vmatprep.subr.mxu0 0.0
  %243 = vmatpush1.msra.mxu0 0.0
  %244 = vmatprep.subr.mxu0 0.0
  %245 = vmatpush1.msra.mxu0 0.0
  %246 = vmatprep.subr.mxu0 0.0
  %247 = vmatpush1.msra.mxu0 0.0
  %248 = vmatprep.subr.mxu0 0.0
  %249 = vmatpush1.msra.mxu0 0.0
  %250 = vmatprep.subr.mxu0 0.0
  %251 = vmatpush1.msra.mxu0 0.0
  %252 = vmatprep.subr.mxu0 0.0
  %253 = vmatpush1.msra.mxu0 0.0
  %254 = vmatprep.subr.mxu0 0.0
  %255 = vmatpush1.msra.mxu0 0.0
  %256 = vmatprep.subr.mxu0 0.0
  %257 = vmatpush1.msra.mxu0 0.0
  %258 = vmatprep.subr.mxu0 0.0
  %259 = vmatpush1.msra.mxu0 0.0
  %260 = vmatprep.subr.mxu0 0.0
  %261 = vmatpush1.msra.mxu0 0.0
  %262 = vmatprep.subr.mxu0 0.0
  %263 = vmatpush1.msra.mxu0 0.0
  %264 = vmatprep.subr.mxu0 0.0
  %265 = vmatpush1.msra.mxu0 0.0
  %266 = vmatprep.subr.mxu0 0.0
  %267 = vmatpush1.msra.mxu0 0.0
  %268 = vmatprep.subr.mxu0 0.0
  %269 = vmatpush1.msra.mxu0 0.0
  %270 = vmatprep.subr.mxu0 0.0
  %271 = vmatpush1.msra.mxu0 0.0
  %272 = vmatprep.mubr.f32.mxu0 0.0
  %273 = vmatmul.mubr.f32.gmra.mrb[0].mxu0 %v203
  %v274 = vpop.f32.mrb[0].mxu0
  %v275 = vadd.f32 %v199, %v274
  %v276 = vpop.f32.mrb[0].mxu0
  %277 = vmatprep.mubr.f32.mxu0 0.0
  %278 = vmatmul.mubr.f32.gmra.mrb[0].mxu0 %v206
  %v279 = vpop.f32.mrb[0].mxu0
  %v280 = vadd.f32 %v199, %v279
  %v281 = vpop.f32.mrb[0].mxu0
  %282 = vdwg.mxu0
  %283 = vst [vmem:[%s8] sm:$0xff] %v275
  %284 = vst [vmem:[%s8 + $0x8] sm:$0xff] %v280
  // Predicated region
  $region38: #{_lambda_.3} parent=0 // pred_check
    _
  $region39: #{_lambda_.3} parent=0 // pred_check_branch
    %286 = sbr.rel (0) target = $region41
  $region40: #{_lambda_.3} parent=0 // pred_region
    _
  $region41: #{_lambda_.3} parent=0 // pred_fallthru
    _
  // Predicated region
  $region42: #{_lambda_.3} parent=0 // pred_check
    _
  $region43: #{_lambda_.3} parent=0 // pred_check_branch
    %288 = sbr.rel (0) target = $region45
  $region44: #{_lambda_.3} parent=0 // pred_region
    _
  $region45: #{_lambda_.3} parent=0 // pred_fallthru
    _

// kernel: _lambda_.2
$region0: #{_lambda_.2}
  #allocation0 [shape = 'u32[]', space=smem, size = 0x4, offset = 0x4, fixed_abs, tag = 'smem constant byte address 0x4 - core index']
  #allocation1 [shape = 'u32[144,128]{1,0:T(1,128)}', space=vmem, size = 0x12000, scoped, tag = 'internal scratch']
  %s0 = inlined_call_operand.vmem [shape: f32[2,8,16], index: 0, kind: input, shape index: {}]
  %s1 = inlined_call_operand.vmem [shape: f32[2,2,32], index: 1, kind: input, shape index: {}]
  %s2 = inlined_call_operand.vmem [shape: f32[16,32], index: 2, kind: input, shape index: {}]
  %s3 = inlined_call_operand.vmem [shape: f32[1,32,32], index: 3, kind: input, shape index: {}]
  %s4 = inlined_call_operand.vmem [shape: f32[2,32,32], index: 4, kind: input, shape index: {}]
  %s5 = inlined_call_operand.vmem [shape: f32[2,1,32], index: 5, kind: input, shape index: {}]
  %s6 = inlined_call_operand.vmem [shape: f32[2,8,32], index: 6, kind: output, shape index: {0}]
  %s7 = inlined_call_operand.hbm [shape: f32[2,2,32], index: 7, kind: output, shape index: {1}]
  %8 = xla_tuple %s6, %s7
  %s9 = sld [smem:[#allocation0]]
  $region46: #{_lambda_.2} parent=0
    _
  %s11 = ssub.s32 1, %s9
  %s12 = scalar_select 0, %s11, %s9
  $region1: #{_lambda_.2} parent=0
    #allocation2 [shape = 'u8[2048]{0}', space=vmem, size = 0x800, scoped, tag = 'output window, operand 1, single buffered']
    #allocation3 [shape = 's32[1]{0}', space=sflag, size = 0x4, scoped, tag = 'scoped memory for _lambda_.2']
    %13 = vsyncpa [#allocation3], 0
    // Predicated region
    $region2: #{_lambda_.2} parent=1 // pred_check
      _
    $region3: #{_lambda_.2} parent=1 // pred_check_branch
      %15 = sbr.rel (0) target = $region5
    $region4: #{_lambda_.2} parent=1 // pred_region
      _
    $region5: #{_lambda_.2} parent=1 // pred_fallthru
      _
    // Predicated region
    $region6: #{_lambda_.2} parent=1 // pred_check
      _
    $region7: #{_lambda_.2} parent=1 // pred_check_branch
      %17 = sbr.rel (0) target = $region9
    $region8: #{_lambda_.2} parent=1 // pred_region
      _
    $region9: #{_lambda_.2} parent=1 // pred_fallthru
      _
    // Predicated region
    $region10: #{_lambda_.2} parent=1 // pred_check
      _
    $region11: #{_lambda_.2} parent=1 // pred_check_branch
      %19 = sbr.rel (0) target = $region13
    $region12: #{_lambda_.2} parent=1 // pred_region
      _
    $region13: #{_lambda_.2} parent=1 // pred_fallthru
      _
    // Predicated region
    $region14: #{_lambda_.2} parent=1 // pred_check
      _
    $region15: #{_lambda_.2} parent=1 // pred_check_branch
      %21 = sbr.rel (0) target = $region17
    $region16: #{_lambda_.2} parent=1 // pred_region
      _
    $region17: #{_lambda_.2} parent=1 // pred_fallthru
      _
    // Predicated region
    $region18: #{_lambda_.2} parent=1 // pred_check
      _
    $region19: #{_lambda_.2} parent=1 // pred_check_branch
      %23 = sbr.rel (0) target = $region21
    $region20: #{_lambda_.2} parent=1 // pred_region
      _
    $region21: #{_lambda_.2} parent=1 // pred_fallthru
      _
    // Predicated region
    $region22: #{_lambda_.2} parent=1 // pred_check
      _
    $region23: #{_lambda_.2} parent=1 // pred_check_branch
      %25 = sbr.rel (0) target = $region25
    $region24: #{_lambda_.2} parent=1 // pred_region
      _
    $region25: #{_lambda_.2} parent=1 // pred_fallthru
      _
    %p26 = scmp.eq.s32.totalorder 0, 0
    // Predicated region
    $region26: #{_lambda_.2} parent=1 // pred_check
      %p27 = pneg %p26
    $region27: #{_lambda_.2} parent=1 // pred_check_branch
      %29 = sbr.rel (%p27) target = $region29
    $region28: #{_lambda_.2} parent=1 // pred_region
      %v30 = vld [vmem:[%s1] sm:$0x3]
      %v31 = vld [vmem:[%s1 + $0x2] sm:$0x3]
      %vm32 = vcmask 254976
      %33 = vst.msk [vmem:[#allocation2] sm:$0x3] %vm32, %v30
      %34 = vst.msk [vmem:[#allocation2 + $0x2] sm:$0x3] %vm32, %v31
    $region29: #{_lambda_.2} parent=1 // pred_fallthru
      _
    %v35 = vld [vmem:[%s0] sm:$0x1]
    %v36 = vld [vmem:[%s0 + $0x8] sm:$0x1]
    %v37 = vld [vmem:[%s2] sm:$0xff]
    %v38 = vld [vmem:[%s2 + $0x8] sm:$0xff]
    %v39 = vld [vmem:[#allocation2] sm:$0x3]
    %v40 = vld [vmem:[%s4] sm:$0xff]
    %v41 = vld [vmem:[%s4 + $0x8] sm:$0xff]
    %v42 = vld [vmem:[%s4 + $0x10] sm:$0xff]
    %v43 = vld [vmem:[%s4 + $0x18] sm:$0xff]
    %vm44 = vcmask 261120
    %v46 = vsel %vm44, %v39, 0
    %48 = vmatprep.subr.mxu0 0.0
    %49 = vmatpush1.msra.mxu0 %v40
    %50 = vmatprep.subr.mxu0 0.0
    %51 = vmatpush1.msra.mxu0 %v41
    %52 = vmatprep.subr.mxu0 0.0
    %53 = vmatpush1.msra.mxu0 %v42
    %54 = vmatprep.subr.mxu0 0.0
    %55 = vmatpush1.msra.mxu0 %v43
    %56 = vmatprep.subr.mxu0 0.0
    %57 = vmatpush1.msra.mxu0 0.0
    %58 = vmatprep.subr.mxu0 0.0
    %59 = vmatpush1.msra.mxu0 0.0
    %60 = vmatprep.subr.mxu0 0.0
    %61 = vmatpush1.msra.mxu0 0.0
    %62 = vmatprep.subr.mxu0 0.0
    %63 = vmatpush1.msra.mxu0 0.0
    %64 = vmatprep.subr.mxu0 0.0
    %65 = vmatpush1.msra.mxu0 0.0
    %66 = vmatprep.subr.mxu0 0.0
    %67 = vmatpush1.msra.mxu0 0.0
    %68 = vmatprep.subr.mxu0 0.0
    %69 = vmatpush1.msra.mxu0 0.0
    %70 = vmatprep.subr.mxu0 0.0
    %71 = vmatpush1.msra.mxu0 0.0
    %72 = vmatprep.subr.mxu0 0.0
    %73 = vmatpush1.msra.mxu0 0.0
    %74 = vmatprep.subr.mxu0 0.0
    %75 = vmatpush1.msra.mxu0 0.0
    %76 = vmatprep.subr.mxu0 0.0
    %77 = vmatpush1.msra.mxu0 0.0
    %78 = vmatprep.subr.mxu0 0.0
    %79 = vmatpush1.msra.mxu0 0.0
    %80 = vmatprep.subr.mxu0 0.0
    %81 = vmatpush1.msra.mxu0 0.0
    %82 = vmatprep.subr.mxu0 0.0
    %83 = vmatpush1.msra.mxu0 0.0
    %84 = vmatprep.subr.mxu0 0.0
    %85 = vmatpush1.msra.mxu0 0.0
    %86 = vmatprep.subr.mxu0 0.0
    %87 = vmatpush1.msra.mxu0 0.0
    %88 = vmatprep.subr.mxu0 0.0
    %89 = vmatpush1.msra.mxu0 0.0
    %90 = vmatprep.subr.mxu0 0.0
    %91 = vmatpush1.msra.mxu0 0.0
    %92 = vmatprep.subr.mxu0 0.0
    %93 = vmatpush1.msra.mxu0 0.0
    %94 = vmatprep.subr.mxu0 0.0
    %95 = vmatpush1.msra.mxu0 0.0
    %96 = vmatprep.subr.mxu0 0.0
    %97 = vmatpush1.msra.mxu0 0.0
    %98 = vmatprep.subr.mxu0 0.0
    %99 = vmatpush1.msra.mxu0 0.0
    %100 = vmatprep.subr.mxu0 0.0
    %101 = vmatpush1.msra.mxu0 0.0
    %102 = vmatprep.subr.mxu0 0.0
    %103 = vmatpush1.msra.mxu0 0.0
    %104 = vmatprep.subr.mxu0 0.0
    %105 = vmatpush1.msra.mxu0 0.0
    %106 = vmatprep.subr.mxu0 0.0
    %107 = vmatpush1.msra.mxu0 0.0
    %108 = vmatprep.subr.mxu0 0.0
    %109 = vmatpush1.msra.mxu0 0.0
    %110 = vmatprep.subr.mxu0 0.0
    %111 = vmatpush1.msra.mxu0 0.0
    %112 = vmatprep.mubr.f32.mxu0 0.0
    %113 = vmatmul.mubr.f32.gmra.mrb[0].mxu0 %v46
    %v114 = vpop.f32.mrb[0].mxu0
    %v115 = vadd.f32 0.0, %v114
    %v116 = vpop.f32.mrb[0].mxu0
    %117 = vdwg.mxu0
    %v120 = vrot.slane %v36, 7
    %vm121 = vcmask 1041409
    %v122 = vsel %vm121, %v120, %v35
    %vm123 = vcmask 130048
    %v124 = vsel %vm123, %v122, 0
    %126 = vmatprep.subr.mxu0 0.0
    %127 = vmatpush1.msra.mxu0 %v37
    %128 = vmatprep.subr.mxu0 0.0
    %129 = vmatpush1.msra.mxu0 %v38
    %130 = vmatprep.subr.mxu0 0.0
    %131 = vmatpush1.msra.mxu0 0.0
    %132 = vmatprep.subr.mxu0 0.0
    %133 = vmatpush1.msra.mxu0 0.0
    %134 = vmatprep.subr.mxu0 0.0
    %135 = vmatpush1.msra.mxu0 0.0
    %136 = vmatprep.subr.mxu0 0.0
    %137 = vmatpush1.msra.mxu0 0.0
    %138 = vmatprep.subr.mxu0 0.0
    %139 = vmatpush1.msra.mxu0 0.0
    %140 = vmatprep.subr.mxu0 0.0
    %141 = vmatpush1.msra.mxu0 0.0
    %142 = vmatprep.subr.mxu0 0.0
    %143 = vmatpush1.msra.mxu0 0.0
    %144 = vmatprep.subr.mxu0 0.0
    %145 = vmatpush1.msra.mxu0 0.0
    %146 = vmatprep.subr.mxu0 0.0
    %147 = vmatpush1.msra.mxu0 0.0
    %148 = vmatprep.subr.mxu0 0.0
    %149 = vmatpush1.msra.mxu0 0.0
    %150 = vmatprep.subr.mxu0 0.0
    %151 = vmatpush1.msra.mxu0 0.0
    %152 = vmatprep.subr.mxu0 0.0
    %153 = vmatpush1.msra.mxu0 0.0
    %154 = vmatprep.subr.mxu0 0.0
    %155 = vmatpush1.msra.mxu0 0.0
    %156 = vmatprep.subr.mxu0 0.0
    %157 = vmatpush1.msra.mxu0 0.0
    %158 = vmatprep.subr.mxu0 0.0
    %159 = vmatpush1.msra.mxu0 0.0
    %160 = vmatprep.subr.mxu0 0.0
    %161 = vmatpush1.msra.mxu0 0.0
    %162 = vmatprep.subr.mxu0 0.0
    %163 = vmatpush1.msra.mxu0 0.0
    %164 = vmatprep.subr.mxu0 0.0
    %165 = vmatpush1.msra.mxu0 0.0
    %166 = vmatprep.subr.mxu0 0.0
    %167 = vmatpush1.msra.mxu0 0.0
    %168 = vmatprep.subr.mxu0 0.0
    %169 = vmatpush1.msra.mxu0 0.0
    %170 = vmatprep.subr.mxu0 0.0
    %171 = vmatpush1.msra.mxu0 0.0
    %172 = vmatprep.subr.mxu0 0.0
    %173 = vmatpush1.msra.mxu0 0.0
    %174 = vmatprep.subr.mxu0 0.0
    %175 = vmatpush1.msra.mxu0 0.0
    %176 = vmatprep.subr.mxu0 0.0
    %177 = vmatpush1.msra.mxu0 0.0
    %178 = vmatprep.subr.mxu0 0.0
    %179 = vmatpush1.msra.mxu0 0.0
    %180 = vmatprep.subr.mxu0 0.0
    %181 = vmatpush1.msra.mxu0 0.0
    %182 = vmatprep.subr.mxu0 0.0
    %183 = vmatpush1.msra.mxu0 0.0
    %184 = vmatprep.subr.mxu0 0.0
    %185 = vmatpush1.msra.mxu0 0.0
    %186 = vmatprep.subr.mxu0 0.0
    %187 = vmatpush1.msra.mxu0 0.0
    %188 = vmatprep.subr.mxu0 0.0
    %189 = vmatpush1.msra.mxu0 0.0
    %190 = vmatprep.mubr.f32.mxu0 0.0
    %191 = vmatmul.mubr.f32.gmra.mrb[0].mxu0 %v124
    %v192 = vpop.f32.mrb[0].mxu0
    %v193 = vadd.f32 %v115, %v192
    %v194 = vpop.f32.mrb[0].mxu0
    %195 = vdwg.mxu0
    %v196 = vld [vmem:[%s5] sm:$0x1]
    %v198 = vlaneseq
    %v199 = vshrl.u32 %v198, 7
    %v200 = vsub.s32 0, %v199
    %v201 = vrot.slane %v196, %v200
    %v203 = vadd.f32 %v193, %v201
    %v204 = vtanh.pop %v203
    %vm205 = vcmask 254976
    %206 = vst.msk [vmem:[#allocation2] sm:$0x3] %vm205, %v204
    %v207 = vld [vmem:[%s3] sm:$0xff]
    %v208 = vld [vmem:[%s3 + $0x8] sm:$0xff]
    %v209 = vld [vmem:[%s3 + $0x10] sm:$0xff]
    %v210 = vld [vmem:[%s3 + $0x18] sm:$0xff]
    %s211 = scalar_lea.vmem [#allocation2], 2
    %v212 = vld [vmem:[%s211] sm:$0x3]
    %s213 = scalar_lea.vmem %s4, 32
    %v214 = vld [vmem:[%s213] sm:$0xff]
    %v215 = vld [vmem:[%s213 + $0x8] sm:$0xff]
    %v216 = vld [vmem:[%s213 + $0x10] sm:$0xff]
    %v217 = vld [vmem:[%s213 + $0x18] sm:$0xff]
    %v219 = vsel %vm44, %v212, 0
    %221 = vmatprep.subr.mxu0 0.0
    %222 = vmatpush1.msra.mxu0 %v214
    %223 = vmatprep.subr.mxu0 0.0
    %224 = vmatpush1.msra.mxu0 %v215
    %225 = vmatprep.subr.mxu0 0.0
    %226 = vmatpush1.msra.mxu0 %v216
    %227 = vmatprep.subr.mxu0 0.0
    %228 = vmatpush1.msra.mxu0 %v217
    %229 = vmatprep.subr.mxu0 0.0
    %230 = vmatpush1.msra.mxu0 0.0
    %231 = vmatprep.subr.mxu0 0.0
    %232 = vmatpush1.msra.mxu0 0.0
    %233 = vmatprep.subr.mxu0 0.0
    %234 = vmatpush1.msra.mxu0 0.0
    %235 = vmatprep.subr.mxu0 0.0
    %236 = vmatpush1.msra.mxu0 0.0
    %237 = vmatprep.subr.mxu0 0.0
    %238 = vmatpush1.msra.mxu0 0.0
    %239 = vmatprep.subr.mxu0 0.0
    %240 = vmatpush1.msra.mxu0 0.0
    %241 = vmatprep.subr.mxu0 0.0
    %242 = vmatpush1.msra.mxu0 0.0
    %243 = vmatprep.subr.mxu0 0.0
    %244 = vmatpush1.msra.mxu0 0.0
    %245 = vmatprep.subr.mxu0 0.0
    %246 = vmatpush1.msra.mxu0 0.0
    %247 = vmatprep.subr.mxu0 0.0
    %248 = vmatpush1.msra.mxu0 0.0
    %249 = vmatprep.subr.mxu0 0.0
    %250 = vmatpush1.msra.mxu0 0.0
    %251 = vmatprep.subr.mxu0 0.0
    %252 = vmatpush1.msra.mxu0 0.0
    %253 = vmatprep.subr.mxu0 0.0
    %254 = vmatpush1.msra.mxu0 0.0
    %255 = vmatprep.subr.mxu0 0.0
    %256 = vmatpush1.msra.mxu0 0.0
    %257 = vmatprep.subr.mxu0 0.0
    %258 = vmatpush1.msra.mxu0 0.0
    %259 = vmatprep.subr.mxu0 0.0
    %260 = vmatpush1.msra.mxu0 0.0
    %261 = vmatprep.subr.mxu0 0.0
    %262 = vmatpush1.msra.mxu0 0.0
    %263 = vmatprep.subr.mxu0 0.0
    %264 = vmatpush1.msra.mxu0 0.0
    %265 = vmatprep.subr.mxu0 0.0
    %266 = vmatpush1.msra.mxu0 0.0
    %267 = vmatprep.subr.mxu0 0.0
    %268 = vmatpush1.msra.mxu0 0.0
    %269 = vmatprep.subr.mxu0 0.0
    %270 = vmatpush1.msra.mxu0 0.0
    %271 = vmatprep.subr.mxu0 0.0
    %272 = vmatpush1.msra.mxu0 0.0
    %273 = vmatprep.subr.mxu0 0.0
    %274 = vmatpush1.msra.mxu0 0.0
    %275 = vmatprep.subr.mxu0 0.0
    %276 = vmatpush1.msra.mxu0 0.0
    %277 = vmatprep.subr.mxu0 0.0
    %278 = vmatpush1.msra.mxu0 0.0
    %279 = vmatprep.subr.mxu0 0.0
    %280 = vmatpush1.msra.mxu0 0.0
    %281 = vmatprep.subr.mxu0 0.0
    %282 = vmatpush1.msra.mxu0 0.0
    %283 = vmatprep.subr.mxu0 0.0
    %284 = vmatpush1.msra.mxu0 0.0
    %285 = vmatprep.mubr.f32.mxu0 0.0
    %286 = vmatmul.mubr.f32.gmra.mrb[0].mxu0 %v219
    %v287 = vpop.f32.mrb[0].mxu0
    %v288 = vadd.f32 0.0, %v287
    %v289 = vpop.f32.mrb[0].mxu0
    %290 = vdwg.mxu0
    %v292 = vsel %vm44, %v204, 0
    %294 = vmatprep.subr.mxu0 0.0
    %295 = vmatpush1.msra.mxu0 %v207
    %296 = vmatprep.subr.mxu0 0.0
    %297 = vmatpush1.msra.mxu0 %v208
    %298 = vmatprep.subr.mxu0 0.0
    %299 = vmatpush1.msra.mxu0 %v209
    %300 = vmatprep.subr.mxu0 0.0
    %301 = vmatpush1.msra.mxu0 %v210
    %302 = vmatprep.subr.mxu0 0.0
    %303 = vmatpush1.msra.mxu0 0.0
    %304 = vmatprep.subr.mxu0 0.0
    %305 = vmatpush1.msra.mxu0 0.0
    %306 = vmatprep.subr.mxu0 0.0
    %307 = vmatpush1.msra.mxu0 0.0
    %308 = vmatprep.subr.mxu0 0.0
    %309 = vmatpush1.msra.mxu0 0.0
    %310 = vmatprep.subr.mxu0 0.0
    %311 = vmatpush1.msra.mxu0 0.0
    %312 = vmatprep.subr.mxu0 0.0
    %313 = vmatpush1.msra.mxu0 0.0
    %314 = vmatprep.subr.mxu0 0.0
    %315 = vmatpush1.msra.mxu0 0.0
    %316 = vmatprep.subr.mxu0 0.0
    %317 = vmatpush1.msra.mxu0 0.0
    %318 = vmatprep.subr.mxu0 0.0
    %319 = vmatpush1.msra.mxu0 0.0
    %320 = vmatprep.subr.mxu0 0.0
    %321 = vmatpush1.msra.mxu0 0.0
    %322 = vmatprep.subr.mxu0 0.0
    %323 = vmatpush1.msra.mxu0 0.0
    %324 = vmatprep.subr.mxu0 0.0
    %325 = vmatpush1.msra.mxu0 0.0
    %326 = vmatprep.subr.mxu0 0.0
    %327 = vmatpush1.msra.mxu0 0.0
    %328 = vmatprep.subr.mxu0 0.0
    %329 = vmatpush1.msra.mxu0 0.0
    %330 = vmatprep.subr.mxu0 0.0
    %331 = vmatpush1.msra.mxu0 0.0
    %332 = vmatprep.subr.mxu0 0.0
    %333 = vmatpush1.msra.mxu0 0.0
    %334 = vmatprep.subr.mxu0 0.0
    %335 = vmatpush1.msra.mxu0 0.0
    %336 = vmatprep.subr.mxu0 0.0
    %337 = vmatpush1.msra.mxu0 0.0
    %338 = vmatprep.subr.mxu0 0.0
    %339 = vmatpush1.msra.mxu0 0.0
    %340 = vmatprep.subr.mxu0 0.0
    %341 = vmatpush1.msra.mxu0 0.0
    %342 = vmatprep.subr.mxu0 0.0
    %343 = vmatpush1.msra.mxu0 0.0
    %344 = vmatprep.subr.mxu0 0.0
    %345 = vmatpush1.msra.mxu0 0.0
    %346 = vmatprep.subr.mxu0 0.0
    %347 = vmatpush1.msra.mxu0 0.0
    %348 = vmatprep.subr.mxu0 0.0
    %349 = vmatpush1.msra.mxu0 0.0
    %350 = vmatprep.subr.mxu0 0.0
    %351 = vmatpush1.msra.mxu0 0.0
    %352 = vmatprep.subr.mxu0 0.0
    %353 = vmatpush1.msra.mxu0 0.0
    %354 = vmatprep.subr.mxu0 0.0
    %355 = vmatpush1.msra.mxu0 0.0
    %356 = vmatprep.subr.mxu0 0.0
    %357 = vmatpush1.msra.mxu0 0.0
    %358 = vmatprep.mubr.f32.mxu0 0.0
    %359 = vmatmul.mubr.f32.gmra.mrb[0].mxu0 %v292
    %v360 = vpop.f32.mrb[0].mxu0
    %v361 = vadd.f32 %v288, %v360
    %v362 = vpop.f32.mrb[0].mxu0
    %363 = vdwg.mxu0
    %s364 = scalar_lea.vmem %s5, 1
    %v365 = vld [vmem:[%s364] sm:$0x1]
    %v367 = vlaneseq
    %v368 = vshrl.u32 %v367, 7
    %v369 = vsub.s32 0, %v368
    %v370 = vrot.slane %v365, %v369
    %v372 = vadd.f32 %v361, %v370
    %v373 = vtanh.pop %v372
    %374 = vst.msk [vmem:[%s211] sm:$0x3] %vm205, %v373
    %v377 = vunpack.c.l.s4 1966171168
    %v378 = vunpack.c.0.s8 %v377
    %v379 = vlaneseq
    %v380 = vshrl.u32 %v379, 7
    %v381 = vsub.s32 %v378, %v380
    %v382 = vrot.slane %v373, %v381
    %v383 = vcombine.high %v382, %v382
    %v385 = vunpack.c.l.s4 1966171168
    %v386 = vunpack.c.0.s8 %v385
    %v387 = vlaneseq
    %v388 = vshrl.u32 %v387, 7
    %v389 = vsub.s32 %v386, %v388
    %v390 = vrot.slane %v382, %v389
    %v392 = vunpack.c.l.s4 1966171168
    %v393 = vunpack.c.0.s8 %v392
    %v394 = vlaneseq
    %v395 = vshrl.u32 %v394, 7
    %v396 = vsub.s32 %v393, %v395
    %v397 = vrot.slane %v383, %v396
    %vm400 = vcmask 253952
    %401 = vst.msk [vmem:[%s6] sm:$0x1] %vm400, %v390
    %402 = vst.msk [vmem:[%s6 + $0x8] sm:$0x1] %vm400, %v397
    %v403 = vld [vmem:[%s0 + $0x1] sm:$0x1]
    %v404 = vld [vmem:[%s0 + $0x9] sm:$0x1]
    %v405 = vld [vmem:[%s2] sm:$0xff]
    %v406 = vld [vmem:[%s2 + $0x8] sm:$0xff]
    %v407 = vld [vmem:[#allocation2] sm:$0x3]
    %v408 = vld [vmem:[%s4] sm:$0xff]
    %v409 = vld [vmem:[%s4 + $0x8] sm:$0xff]
    %v410 = vld [vmem:[%s4 + $0x10] sm:$0xff]
    %v411 = vld [vmem:[%s4 + $0x18] sm:$0xff]
    %v413 = vsel %vm44, %v407, 0
    %415 = vmatprep.subr.mxu0 0.0
    %416 = vmatpush1.msra.mxu0 %v408
    %417 = vmatprep.subr.mxu0 0.0
    %418 = vmatpush1.msra.mxu0 %v409
    %419 = vmatprep.subr.mxu0 0.0
    %420 = vmatpush1.msra.mxu0 %v410
    %421 = vmatprep.subr.mxu0 0.0
    %422 = vmatpush1.msra.mxu0 %v411
    %423 = vmatprep.subr.mxu0 0.0
    %424 = vmatpush1.msra.mxu0 0.0
    %425 = vmatprep.subr.mxu0 0.0
    %426 = vmatpush1.msra.mxu0 0.0
    %427 = vmatprep.subr.mxu0 0.0
    %428 = vmatpush1.msra.mxu0 0.0
    %429 = vmatprep.subr.mxu0 0.0
    %430 = vmatpush1.msra.mxu0 0.0
    %431 = vmatprep.subr.mxu0 0.0
    %432 = vmatpush1.msra.mxu0 0.0
    %433 = vmatprep.subr.mxu0 0.0
    %434 = vmatpush1.msra.mxu0 0.0
    %435 = vmatprep.subr.mxu0 0.0
    %436 = vmatpush1.msra.mxu0 0.0
    %437 = vmatprep.subr.mxu0 0.0
    %438 = vmatpush1.msra.mxu0 0.0
    %439 = vmatprep.subr.mxu0 0.0
    %440 = vmatpush1.msra.mxu0 0.0
    %441 = vmatprep.subr.mxu0 0.0
    %442 = vmatpush1.msra.mxu0 0.0
    %443 = vmatprep.subr.mxu0 0.0
    %444 = vmatpush1.msra.mxu0 0.0
    %445 = vmatprep.subr.mxu0 0.0
    %446 = vmatpush1.msra.mxu0 0.0
    %447 = vmatprep.subr.mxu0 0.0
    %448 = vmatpush1.msra.mxu0 0.0
    %449 = vmatprep.subr.mxu0 0.0
    %450 = vmatpush1.msra.mxu0 0.0
    %451 = vmatprep.subr.mxu0 0.0
    %452 = vmatpush1.msra.mxu0 0.0
    %453 = vmatprep.subr.mxu0 0.0
    %454 = vmatpush1.msra.mxu0 0.0
    %455 = vmatprep.subr.mxu0 0.0
    %456 = vmatpush1.msra.mxu0 0.0
    %457 = vmatprep.subr.mxu0 0.0
    %458 = vmatpush1.msra.mxu0 0.0
    %459 = vmatprep.subr.mxu0 0.0
    %460 = vmatpush1.msra.mxu0 0.0
    %461 = vmatprep.subr.mxu0 0.0
    %462 = vmatpush1.msra.mxu0 0.0
    %463 = vmatprep.subr.mxu0 0.0
    %464 = vmatpush1.msra.mxu0 0.0
    %465 = vmatprep.subr.mxu0 0.0
    %466 = vmatpush1.msra.mxu0 0.0
    %467 = vmatprep.subr.mxu0 0.0
    %468 = vmatpush1.msra.mxu0 0.0
    %469 = vmatprep.subr.mxu0 0.0
    %470 = vmatpush1.msra.mxu0 0.0
    %471 = vmatprep.subr.mxu0 0.0
    %472 = vmatpush1.msra.mxu0 0.0
    %473 = vmatprep.subr.mxu0 0.0
    %474 = vmatpush1.msra.mxu0 0.0
    %475 = vmatprep.subr.mxu0 0.0
    %476 = vmatpush1.msra.mxu0 0.0
    %477 = vmatprep.subr.mxu0 0.0
    %478 = vmatpush1.msra.mxu0 0.0
    %479 = vmatprep.mubr.f32.mxu0 0.0
    %480 = vmatmul.mubr.f32.gmra.mrb[0].mxu0 %v413
    %v481 = vpop.f32.mrb[0].mxu0
    %v482 = vadd.f32 0.0, %v481
    %v483 = vpop.f32.mrb[0].mxu0
    %484 = vdwg.mxu0
    %v487 = vrot.slane %v404, 7
    %v488 = vsel %vm121, %v487, %v403
    %v489 = vsel %vm123, %v488, 0
    %491 = vmatprep.subr.mxu0 0.0
    %492 = vmatpush1.msra.mxu0 %v405
    %493 = vmatprep.subr.mxu0 0.0
    %494 = vmatpush1.msra.mxu0 %v406
    %495 = vmatprep.subr.mxu0 0.0
    %496 = vmatpush1.msra.mxu0 0.0
    %497 = vmatprep.subr.mxu0 0.0
    %498 = vmatpush1.msra.mxu0 0.0
    %499 = vmatprep.subr.mxu0 0.0
    %500 = vmatpush1.msra.mxu0 0.0
    %501 = vmatprep.subr.mxu0 0.0
    %502 = vmatpush1.msra.mxu0 0.0
    %503 = vmatprep.subr.mxu0 0.0
    %504 = vmatpush1.msra.mxu0 0.0
    %505 = vmatprep.subr.mxu0 0.0
    %506 = vmatpush1.msra.mxu0 0.0
    %507 = vmatprep.subr.mxu0 0.0
    %508 = vmatpush1.msra.mxu0 0.0
    %509 = vmatprep.subr.mxu0 0.0
    %510 = vmatpush1.msra.mxu0 0.0
    %511 = vmatprep.subr.mxu0 0.0
    %512 = vmatpush1.msra.mxu0 0.0
    %513 = vmatprep.subr.mxu0 0.0
    %514 = vmatpush1.msra.mxu0 0.0
    %515 = vmatprep.subr.mxu0 0.0
    %516 = vmatpush1.msra.mxu0 0.0
    %517 = vmatprep.subr.mxu0 0.0
    %518 = vmatpush1.msra.mxu0 0.0
    %519 = vmatprep.subr.mxu0 0.0
    %520 = vmatpush1.msra.mxu0 0.0
    %521 = vmatprep.subr.mxu0 0.0
    %522 = vmatpush1.msra.mxu0 0.0
    %523 = vmatprep.subr.mxu0 0.0
    %524 = vmatpush1.msra.mxu0 0.0
    %525 = vmatprep.subr.mxu0 0.0
    %526 = vmatpush1.msra.mxu0 0.0
    %527 = vmatprep.subr.mxu0 0.0
    %528 = vmatpush1.msra.mxu0 0.0
    %529 = vmatprep.subr.mxu0 0.0
    %530 = vmatpush1.msra.mxu0 0.0
    %531 = vmatprep.subr.mxu0 0.0
    %532 = vmatpush1.msra.mxu0 0.0
    %533 = vmatprep.subr.mxu0 0.0
    %534 = vmatpush1.msra.mxu0 0.0
    %535 = vmatprep.subr.mxu0 0.0
    %536 = vmatpush1.msra.mxu0 0.0
    %537 = vmatprep.subr.mxu0 0.0
    %538 = vmatpush1.msra.mxu0 0.0
    %539 = vmatprep.subr.mxu0 0.0
    %540 = vmatpush1.msra.mxu0 0.0
    %541 = vmatprep.subr.mxu0 0.0
    %542 = vmatpush1.msra.mxu0 0.0
    %543 = vmatprep.subr.mxu0 0.0
    %544 = vmatpush1.msra.mxu0 0.0
    %545 = vmatprep.subr.mxu0 0.0
    %546 = vmatpush1.msra.mxu0 0.0
    %547 = vmatprep.subr.mxu0 0.0
    %548 = vmatpush1.msra.mxu0 0.0
    %549 = vmatprep.subr.mxu0 0.0
    %550 = vmatpush1.msra.mxu0 0.0
    %551 = vmatprep.subr.mxu0 0.0
    %552 = vmatpush1.msra.mxu0 0.0
    %553 = vmatprep.subr.mxu0 0.0
    %554 = vmatpush1.msra.mxu0 0.0
    %555 = vmatprep.mubr.f32.mxu0 0.0
    %556 = vmatmul.mubr.f32.gmra.mrb[0].mxu0 %v489
    %v557 = vpop.f32.mrb[0].mxu0
    %v558 = vadd.f32 %v482, %v557
    %v559 = vpop.f32.mrb[0].mxu0
    %560 = vdwg.mxu0
    %v561 = vld [vmem:[%s5] sm:$0x1]
    %v563 = vlaneseq
    %v564 = vshrl.u32 %v563, 7
    %v565 = vsub.s32 0, %v564
    %v566 = vrot.slane %v561, %v565
    %v568 = vadd.f32 %v558, %v566
    %v569 = vtanh.pop %v568
    %570 = vst.msk [vmem:[#allocation2] sm:$0x3] %vm205, %v569
    %v571 = vld [vmem:[%s3] sm:$0xff]
    %v572 = vld [vmem:[%s3 + $0x8] sm:$0xff]
    %v573 = vld [vmem:[%s3 + $0x10] sm:$0xff]
    %v574 = vld [vmem:[%s3 + $0x18] sm:$0xff]
    %v575 = vld [vmem:[%s211] sm:$0x3]
    %v576 = vld [vmem:[%s213] sm:$0xff]
    %v577 = vld [vmem:[%s213 + $0x8] sm:$0xff]
    %v578 = vld [vmem:[%s213 + $0x10] sm:$0xff]
    %v579 = vld [vmem:[%s213 + $0x18] sm:$0xff]
    %v581 = vsel %vm44, %v575, 0
    %583 = vmatprep.subr.mxu0 0.0
    %584 = vmatpush1.msra.mxu0 %v576
    %585 = vmatprep.subr.mxu0 0.0
    %586 = vmatpush1.msra.mxu0 %v577
    %587 = vmatprep.subr.mxu0 0.0
    %588 = vmatpush1.msra.mxu0 %v578
    %589 = vmatprep.subr.mxu0 0.0
    %590 = vmatpush1.msra.mxu0 %v579
    %591 = vmatprep.subr.mxu0 0.0
    %592 = vmatpush1.msra.mxu0 0.0
    %593 = vmatprep.subr.mxu0 0.0
    %594 = vmatpush1.msra.mxu0 0.0
    %595 = vmatprep.subr.mxu0 0.0
    %596 = vmatpush1.msra.mxu0 0.0
    %597 = vmatprep.subr.mxu0 0.0
    %598 = vmatpush1.msra.mxu0 0.0
    %599 = vmatprep.subr.mxu0 0.0
    %600 = vmatpush1.msra.mxu0 0.0
    %601 = vmatprep.subr.mxu0 0.0
    %602 = vmatpush1.msra.mxu0 0.0
    %603 = vmatprep.subr.mxu0 0.0
    %604 = vmatpush1.msra.mxu0 0.0
    %605 = vmatprep.subr.mxu0 0.0
    %606 = vmatpush1.msra.mxu0 0.0
    %607 = vmatprep.subr.mxu0 0.0
    %608 = vmatpush1.msra.mxu0 0.0
    %609 = vmatprep.subr.mxu0 0.0
    %610 = vmatpush1.msra.mxu0 0.0
    %611 = vmatprep.subr.mxu0 0.0
    %612 = vmatpush1.msra.mxu0 0.0
    %613 = vmatprep.subr.mxu0 0.0
    %614 = vmatpush1.msra.mxu0 0.0
    %615 = vmatprep.subr.mxu0 0.0
    %616 = vmatpush1.msra.mxu0 0.0
    %617 = vmatprep.subr.mxu0 0.0
    %618 = vmatpush1.msra.mxu0 0.0
    %619 = vmatprep.subr.mxu0 0.0
    %620 = vmatpush1.msra.mxu0 0.0
    %621 = vmatprep.subr.mxu0 0.0
    %622 = vmatpush1.msra.mxu0 0.0
    %623 = vmatprep.subr.mxu0 0.0
    %624 = vmatpush1.msra.mxu0 0.0
    %625 = vmatprep.subr.mxu0 0.0
    %626 = vmatpush1.msra.mxu0 0.0
    %627 = vmatprep.subr.mxu0 0.0
    %628 = vmatpush1.msra.mxu0 0.0
    %629 = vmatprep.subr.mxu0 0.0
    %630 = vmatpush1.msra.mxu0 0.0
    %631 = vmatprep.subr.mxu0 0.0
    %632 = vmatpush1.msra.mxu0 0.0
    %633 = vmatprep.subr.mxu0 0.0
    %634 = vmatpush1.msra.mxu0 0.0
    %635 = vmatprep.subr.mxu0 0.0
    %636 = vmatpush1.msra.mxu0 0.0
    %637 = vmatprep.subr.mxu0 0.0
    %638 = vmatpush1.msra.mxu0 0.0
    %639 = vmatprep.subr.mxu0 0.0
    %640 = vmatpush1.msra.mxu0 0.0
    %641 = vmatprep.subr.mxu0 0.0
    %642 = vmatpush1.msra.mxu0 0.0
    %643 = vmatprep.subr.mxu0 0.0
    %644 = vmatpush1.msra.mxu0 0.0
    %645 = vmatprep.subr.mxu0 0.0
    %646 = vmatpush1.msra.mxu0 0.0
    %647 = vmatprep.mubr.f32.mxu0 0.0
    %648 = vmatmul.mubr.f32.gmra.mrb[0].mxu0 %v581
    %v649 = vpop.f32.mrb[0].mxu0
    %v650 = vadd.f32 0.0, %v649
    %v651 = vpop.f32.mrb[0].mxu0
    %652 = vdwg.mxu0
    %v654 = vsel %vm44, %v569, 0
    %656 = vmatprep.subr.mxu0 0.0
    %657 = vmatpush1.msra.mxu0 %v571
    %658 = vmatprep.subr.mxu0 0.0
    %659 = vmatpush1.msra.mxu0 %v572
    %660 = vmatprep.subr.mxu0 0.0
    %661 = vmatpush1.msra.mxu0 %v573
    %662 = vmatprep.subr.mxu0 0.0
    %663 = vmatpush1.msra.mxu0 %v574
    %664 = vmatprep.subr.mxu0 0.0
    %665 = vmatpush1.msra.mxu0 0.0
    %666 = vmatprep.subr.mxu0 0.0
    %667 = vmatpush1.msra.mxu0 0.0
    %668 = vmatprep.subr.mxu0 0.0
    %669 = vmatpush1.msra.mxu0 0.0
    %670 = vmatprep.subr.mxu0 0.0
    %671 = vmatpush1.msra.mxu0 0.0
    %672 = vmatprep.subr.mxu0 0.0
    %673 = vmatpush1.msra.mxu0 0.0
    %674 = vmatprep.subr.mxu0 0.0
    %675 = vmatpush1.msra.mxu0 0.0
    %676 = vmatprep.subr.mxu0 0.0
    %677 = vmatpush1.msra.mxu0 0.0
    %678 = vmatprep.subr.mxu0 0.0
    %679 = vmatpush1.msra.mxu0 0.0
    %680 = vmatprep.subr.mxu0 0.0
    %681 = vmatpush1.msra.mxu0 0.0
    %682 = vmatprep.subr.mxu0 0.0
    %683 = vmatpush1.msra.mxu0 0.0
    %684 = vmatprep.subr.mxu0 0.0
    %685 = vmatpush1.msra.mxu0 0.0
    %686 = vmatprep.subr.mxu0 0.0
    %687 = vmatpush1.msra.mxu0 0.0
    %688 = vmatprep.subr.mxu0 0.0
    %689 = vmatpush1.msra.mxu0 0.0
    %690 = vmatprep.subr.mxu0 0.0
    %691 = vmatpush1.msra.mxu0 0.0
    %692 = vmatprep.subr.mxu0 0.0
    %693 = vmatpush1.msra.mxu0 0.0
    %694 = vmatprep.subr.mxu0 0.0
    %695 = vmatpush1.msra.mxu0 0.0
    %696 = vmatprep.subr.mxu0 0.0
    %697 = vmatpush1.msra.mxu0 0.0
    %698 = vmatprep.subr.mxu0 0.0
    %699 = vmatpush1.msra.mxu0 0.0
    %700 = vmatprep.subr.mxu0 0.0
    %701 = vmatpush1.msra.mxu0 0.0
    %702 = vmatprep.subr.mxu0 0.0
    %703 = vmatpush1.msra.mxu0 0.0
    %704 = vmatprep.subr.mxu0 0.0
    %705 = vmatpush1.msra.mxu0 0.0
    %706 = vmatprep.subr.mxu0 0.0
    %707 = vmatpush1.msra.mxu0 0.0
    %708 = vmatprep.subr.mxu0 0.0
    %709 = vmatpush1.msra.mxu0 0.0
    %710 = vmatprep.subr.mxu0 0.0
    %711 = vmatpush1.msra.mxu0 0.0
    %712 = vmatprep.subr.mxu0 0.0
    %713 = vmatpush1.msra.mxu0 0.0
    %714 = vmatprep.subr.mxu0 0.0
    %715 = vmatpush1.msra.mxu0 0.0
    %716 = vmatprep.subr.mxu0 0.0
    %717 = vmatpush1.msra.mxu0 0.0
    %718 = vmatprep.subr.mxu0 0.0
    %719 = vmatpush1.msra.mxu0 0.0
    %720 = vmatprep.mubr.f32.mxu0 0.0
    %721 = vmatmul.mubr.f32.gmra.mrb[0].mxu0 %v654
    %v722 = vpop.f32.mrb[0].mxu0
    %v723 = vadd.f32 %v650, %v722
    %v724 = vpop.f32.mrb[0].mxu0
    %725 = vdwg.mxu0
    %v726 = vld [vmem:[%s364] sm:$0x1]
    %v728 = vlaneseq
    %v729 = vshrl.u32 %v728, 7
    %v730 = vsub.s32 0, %v729
    %v731 = vrot.slane %v726, %v730
    %v733 = vadd.f32 %v723, %v731
    %v734 = vtanh.pop %v733
    %735 = vst.msk [vmem:[%s211] sm:$0x3] %vm205, %v734
    %v738 = vunpack.c.l.s4 1966171168
    %v739 = vunpack.c.0.s8 %v738
    %v740 = vlaneseq
    %v741 = vshrl.u32 %v740, 7
    %v742 = vsub.s32 %v739, %v741
    %v743 = vrot.slane %v734, %v742
    %v744 = vcombine.high %v743, %v743
    %v746 = vunpack.c.l.s4 1966171168
    %v747 = vunpack.c.0.s8 %v746
    %v748 = vlaneseq
    %v749 = vshrl.u32 %v748, 7
    %v750 = vsub.s32 %v747, %v749
    %v751 = vrot.slane %v743, %v750
    %v753 = vunpack.c.l.s4 1966171168
    %v754 = vunpack.c.0.s8 %v753
    %v755 = vlaneseq
    %v756 = vshrl.u32 %v755, 7
    %v757 = vsub.s32 %v754, %v756
    %v758 = vrot.slane %v744, %v757
    %761 = vst.msk [vmem:[%s6 + $0x1] sm:$0x1] %vm400, %v751
    %762 = vst.msk [vmem:[%s6 + $0x9] sm:$0x1] %vm400, %v758
    %v763 = vld [vmem:[%s0 + $0x2] sm:$0x1]
    %v764 = vld [vmem:[%s0 + $0xa] sm:$0x1]
    %v765 = vld [vmem:[%s2] sm:$0xff]
    %v766 = vld [vmem:[%s2 + $0x8] sm:$0xff]
    %v767 = vld [vmem:[#allocation2] sm:$0x3]
    %v768 = vld [vmem:[%s4] sm:$0xff]
    %v769 = vld [vmem:[%s4 + $0x8] sm:$0xff]
    %v770 = vld [vmem:[%s4 + $0x10] sm:$0xff]
    %v771 = vld [vmem:[%s4 + $0x18] sm:$0xff]
    %v773 = vsel %vm44, %v767, 0
    %775 = vmatprep.subr.mxu0 0.0
    %776 = vmatpush1.msra.mxu0 %v768
    %777 = vmatprep.subr.mxu0 0.0
    %778 = vmatpush1.msra.mxu0 %v769
    %779 = vmatprep.subr.mxu0 0.0
    %780 = vmatpush1.msra.mxu0 %v770
    %781 = vmatprep.subr.mxu0 0.0
    %782 = vmatpush1.msra.mxu0 %v771
    %783 = vmatprep.subr.mxu0 0.0
    %784 = vmatpush1.msra.mxu0 0.0
    %785 = vmatprep.subr.mxu0 0.0
    %786 = vmatpush1.msra.mxu0 0.0
    %787 = vmatprep.subr.mxu0 0.0
    %788 = vmatpush1.msra.mxu0 0.0
    %789 = vmatprep.subr.mxu0 0.0
    %790 = vmatpush1.msra.mxu0 0.0
    %791 = vmatprep.subr.mxu0 0.0
    %792 = vmatpush1.msra.mxu0 0.0
    %793 = vmatprep.subr.mxu0 0.0
    %794 = vmatpush1.msra.mxu0 0.0
    %795 = vmatprep.subr.mxu0 0.0
    %796 = vmatpush1.msra.mxu0 0.0
    %797 = vmatprep.subr.mxu0 0.0
    %798 = vmatpush1.msra.mxu0 0.0
    %799 = vmatprep.subr.mxu0 0.0
    %800 = vmatpush1.msra.mxu0 0.0
    %801 = vmatprep.subr.mxu0 0.0
    %802 = vmatpush1.msra.mxu0 0.0
    %803 = vmatprep.subr.mxu0 0.0
    %804 = vmatpush1.msra.mxu0 0.0
    %805 = vmatprep.subr.mxu0 0.0
    %806 = vmatpush1.msra.mxu0 0.0
    %807 = vmatprep.subr.mxu0 0.0
    %808 = vmatpush1.msra.mxu0 0.0
    %809 = vmatprep.subr.mxu0 0.0
    %810 = vmatpush1.msra.mxu0 0.0
    %811 = vmatprep.subr.mxu0 0.0
    %812 = vmatpush1.msra.mxu0 0.0
    %813 = vmatprep.subr.mxu0 0.0
    %814 = vmatpush1.msra.mxu0 0.0
    %815 = vmatprep.subr.mxu0 0.0
    %816 = vmatpush1.msra.mxu0 0.0
    %817 = vmatprep.subr.mxu0 0.0
    %818 = vmatpush1.msra.mxu0 0.0
    %819 = vmatprep.subr.mxu0 0.0
    %820 = vmatpush1.msra.mxu0 0.0
    %821 = vmatprep.subr.mxu0 0.0
    %822 = vmatpush1.msra.mxu0 0.0
    %823 = vmatprep.subr.mxu0 0.0
    %824 = vmatpush1.msra.mxu0 0.0
    %825 = vmatprep.subr.mxu0 0.0
    %826 = vmatpush1.msra.mxu0 0.0
    %827 = vmatprep.subr.mxu0 0.0
    %828 = vmatpush1.msra.mxu0 0.0
    %829 = vmatprep.subr.mxu0 0.0
    %830 = vmatpush1.msra.mxu0 0.0
    %831 = vmatprep.subr.mxu0 0.0
    %832 = vmatpush1.msra.mxu0 0.0
    %833 = vmatprep.subr.mxu0 0.0
    %834 = vmatpush1.msra.mxu0 0.0
    %835 = vmatprep.subr.mxu0 0.0
    %836 = vmatpush1.msra.mxu0 0.0
    %837 = vmatprep.subr.mxu0 0.0
    %838 = vmatpush1.msra.mxu0 0.0
    %839 = vmatprep.mubr.f32.mxu0 0.0
    %840 = vmatmul.mubr.f32.gmra.mrb[0].mxu0 %v773
    %v841 = vpop.f32.mrb[0].mxu0
    %v842 = vadd.f32 0.0, %v841
    %v843 = vpop.f32.mrb[0].mxu0
    %844 = vdwg.mxu0
    %v847 = vrot.slane %v764, 7
    %v848 = vsel %vm121, %v847, %v763
    %v849 = vsel %vm123, %v848, 0
    %851 = vmatprep.subr.mxu0 0.0
    %852 = vmatpush1.msra.mxu0 %v765
    %853 = vmatprep.subr.mxu0 0.0
    %854 = vmatpush1.msra.mxu0 %v766
    %855 = vmatprep.subr.mxu0 0.0
    %856 = vmatpush1.msra.mxu0 0.0
    %857 = vmatprep.subr.mxu0 0.0
    %858 = vmatpush1.msra.mxu0 0.0
    %859 = vmatprep.subr.mxu0 0.0
    %860 = vmatpush1.msra.mxu0 0.0
    %861 = vmatprep.subr.mxu0 0.0
    %862 = vmatpush1.msra.mxu0 0.0
    %863 = vmatprep.subr.mxu0 0.0
    %864 = vmatpush1.msra.mxu0 0.0
    %865 = vmatprep.subr.mxu0 0.0
    %866 = vmatpush1.msra.mxu0 0.0
    %867 = vmatprep.subr.mxu0 0.0
    %868 = vmatpush1.msra.mxu0 0.0
    %869 = vmatprep.subr.mxu0 0.0
    %870 = vmatpush1.msra.mxu0 0.0
    %871 = vmatprep.subr.mxu0 0.0
    %872 = vmatpush1.msra.mxu0 0.0
    %873 = vmatprep.subr.mxu0 0.0
    %874 = vmatpush1.msra.mxu0 0.0
    %875 = vmatprep.subr.mxu0 0.0
    %876 = vmatpush1.msra.mxu0 0.0
    %877 = vmatprep.subr.mxu0 0.0
    %878 = vmatpush1.msra.mxu0 0.0
    %879 = vmatprep.subr.mxu0 0.0
    %880 = vmatpush1.msra.mxu0 0.0
    %881 = vmatprep.subr.mxu0 0.0
    %882 = vmatpush1.msra.mxu0 0.0
    %883 = vmatprep.subr.mxu0 0.0
    %884 = vmatpush1.msra.mxu0 0.0
    %885 = vmatprep.subr.mxu0 0.0
    %886 = vmatpush1.msra.mxu0 0.0
    %887 = vmatprep.subr.mxu0 0.0
    %888 = vmatpush1.msra.mxu0 0.0
    %889 = vmatprep.subr.mxu0 0.0
    %890 = vmatpush1.msra.mxu0 0.0
    %891 = vmatprep.subr.mxu0 0.0
    %892 = vmatpush1.msra.mxu0 0.0
    %893 = vmatprep.subr.mxu0 0.0
    %894 = vmatpush1.msra.mxu0 0.0
    %895 = vmatprep.subr.mxu0 0.0
    %896 = vmatpush1.msra.mxu0 0.0
    %897 = vmatprep.subr.mxu0 0.0
    %898 = vmatpush1.msra.mxu0 0.0
    %899 = vmatprep.subr.mxu0 0.0
    %900 = vmatpush1.msra.mxu0 0.0
    %901 = vmatprep.subr.mxu0 0.0
    %902 = vmatpush1.msra.mxu0 0.0
    %903 = vmatprep.subr.mxu0 0.0
    %904 = vmatpush1.msra.mxu0 0.0
    %905 = vmatprep.subr.mxu0 0.0
    %906 = vmatpush1.msra.mxu0 0.0
    %907 = vmatprep.subr.mxu0 0.0
    %908 = vmatpush1.msra.mxu0 0.0
    %909 = vmatprep.subr.mxu0 0.0
    %910 = vmatpush1.msra.mxu0 0.0
    %911 = vmatprep.subr.mxu0 0.0
    %912 = vmatpush1.msra.mxu0 0.0
    %913 = vmatprep.subr.mxu0 0.0
    %914 = vmatpush1.msra.mxu0 0.0
    %915 = vmatprep.mubr.f32.mxu0 0.0
    %916 = vmatmul.mubr.f32.gmra.mrb[0].mxu0 %v849
    %v917 = vpop.f32.mrb[0].mxu0
    %v918 = vadd.f32 %v842, %v917
    %v919 = vpop.f32.mrb[0].mxu0
    %920 = vdwg.mxu0
    %v921 = vld [vmem:[%s5] sm:$0x1]
    %v923 = vlaneseq
    %v924 = vshrl.u32 %v923, 7
    %v925 = vsub.s32 0, %v924
    %v926 = vrot.slane %v921, %v925
    %v928 = vadd.f32 %v918, %v926
    %v929 = vtanh.pop %v928
    %930 = vst.msk [vmem:[#allocation2] sm:$0x3] %vm205, %v929
    %v931 = vld [vmem:[%s3] sm:$0xff]
    %v932 = vld [vmem:[%s3 + $0x8] sm:$0xff]
    %v933 = vld [vmem:[%s3 + $0x10] sm:$0xff]
    %v934 = vld [vmem:[%s3 + $0x18] sm:$0xff]
    %v935 = vld [vmem:[%s211] sm:$0x3]
    %v936 = vld [vmem:[%s213] sm:$0xff]
    %v937 = vld [vmem:[%s213 + $0x8] sm:$0xff]
    %v938 = vld [vmem:[%s213 + $0x10] sm:$0xff]
    %v939 = vld [vmem:[%s213 + $0x18] sm:$0xff]
    %v941 = vsel %vm44, %v935, 0
    %943 = vmatprep.subr.mxu0 0.0
    %944 = vmatpush1.msra.mxu0 %v936
    %945 = vmatprep.subr.mxu0 0.0
    %946 = vmatpush1.msra.mxu0 %v937
    %947 = vmatprep.subr.mxu0 0.0
    %948 = vmatpush1.msra.mxu0 %v938
    %949 = vmatprep.subr.mxu0 0.0
    %950 = vmatpush1.msra.mxu0 %v939
    %951 = vmatprep.subr.mxu0 0.0
    %952 = vmatpush1.msra.mxu0 0.0
    %953 = vmatprep.subr.mxu0 0.0
    %954 = vmatpush1.msra.mxu0 0.0
    %955 = vmatprep.subr.mxu0 0.0
    %956 = vmatpush1.msra.mxu0 0.0
    %957 = vmatprep.subr.mxu0 0.0
    %958 = vmatpush1.msra.mxu0 0.0
    %959 = vmatprep.subr.mxu0 0.0
    %960 = vmatpush1.msra.mxu0 0.0
    %961 = vmatprep.subr.mxu0 0.0
    %962 = vmatpush1.msra.mxu0 0.0
    %963 = vmatprep.subr.mxu0 0.0
    %964 = vmatpush1.msra.mxu0 0.0
    %965 = vmatprep.subr.mxu0 0.0
    %966 = vmatpush1.msra.mxu0 0.0
    %967 = vmatprep.subr.mxu0 0.0
    %968 = vmatpush1.msra.mxu0 0.0
    %969 = vmatprep.subr.mxu0 0.0
    %970 = vmatpush1.msra.mxu0 0.0
    %971 = vmatprep.subr.mxu0 0.0
    %972 = vmatpush1.msra.mxu0 0.0
    %973 = vmatprep.subr.mxu0 0.0
    %974 = vmatpush1.msra.mxu0 0.0
    %975 = vmatprep.subr.mxu0 0.0
    %976 = vmatpush1.msra.mxu0 0.0
    %977 = vmatprep.subr.mxu0 0.0
    %978 = vmatpush1.msra.mxu0 0.0
    %979 = vmatprep.subr.mxu0 0.0
    %980 = vmatpush1.msra.mxu0 0.0
    %981 = vmatprep.subr.mxu0 0.0
    %982 = vmatpush1.msra.mxu0 0.0
    %983 = vmatprep.subr.mxu0 0.0
    %984 = vmatpush1.msra.mxu0 0.0
    %985 = vmatprep.subr.mxu0 0.0
    %986 = vmatpush1.msra.mxu0 0.0
    %987 = vmatprep.subr.mxu0 0.0
    %988 = vmatpush1.msra.mxu0 0.0
    %989 = vmatprep.subr.mxu0 0.0
    %990 = vmatpush1.msra.mxu0 0.0
    %991 = vmatprep.subr.mxu0 0.0
    %992 = vmatpush1.msra.mxu0 0.0
    %993 = vmatprep.subr.mxu0 0.0
    %994 = vmatpush1.msra.mxu0 0.0
    %995 = vmatprep.subr.mxu0 0.0
    %996 = vmatpush1.msra.mxu0 0.0
    %997 = vmatprep.subr.mxu0 0.0
    %998 = vmatpush1.msra.mxu0 0.0
    %999 = vmatprep.subr.mxu0 0.0
    %1000 = vmatpush1.msra.mxu0 0.0
    %1001 = vmatprep.subr.mxu0 0.0
    %1002 = vmatpush1.msra.mxu0 0.0
    %1003 = vmatprep.subr.mxu0 0.0
    %1004 = vmatpush1.msra.mxu0 0.0
    %1005 = vmatprep.subr.mxu0 0.0
    %1006 = vmatpush1.msra.mxu0 0.0
    %1007 = vmatprep.mubr.f32.mxu0 0.0
    %1008 = vmatmul.mubr.f32.gmra.mrb[0].mxu0 %v941
    %v1009 = vpop.f32.mrb[0].mxu0
    %v1010 = vadd.f32 0.0, %v1009
    %v1011 = vpop.f32.mrb[0].mxu0
    %1012 = vdwg.mxu0
    %v1014 = vsel %vm44, %v929, 0
    %1016 = vmatprep.subr.mxu0 0.0
    %1017 = vmatpush1.msra.mxu0 %v931
    %1018 = vmatprep.subr.mxu0 0.0
    %1019 = vmatpush1.msra.mxu0 %v932
    %1020 = vmatprep.subr.mxu0 0.0
    %1021 = vmatpush1.msra.mxu0 %v933
    %1022 = vmatprep.subr.mxu0 0.0
    %1023 = vmatpush1.msra.mxu0 %v934
    %1024 = vmatprep.subr.mxu0 0.0
    %1025 = vmatpush1.msra.mxu0 0.0
    %1026 = vmatprep.subr.mxu0 0.0
    %1027 = vmatpush1.msra.mxu0 0.0
    %1028 = vmatprep.subr.mxu0 0.0
    %1029 = vmatpush1.msra.mxu0 0.0
    %1030 = vmatprep.subr.mxu0 0.0
    %1031 = vmatpush1.msra.mxu0 0.0
    %1032 = vmatprep.subr.mxu0 0.0
    %1033 = vmatpush1.msra.mxu0 0.0
    %1034 = vmatprep.subr.mxu0 0.0
    %1035 = vmatpush1.msra.mxu0 0.0
    %1036 = vmatprep.subr.mxu0 0.0
    %1037 = vmatpush1.msra.mxu0 0.0
    %1038 = vmatprep.subr.mxu0 0.0
    %1039 = vmatpush1.msra.mxu0 0.0
    %1040 = vmatprep.subr.mxu0 0.0
    %1041 = vmatpush1.msra.mxu0 0.0
    %1042 = vmatprep.subr.mxu0 0.0
    %1043 = vmatpush1.msra.mxu0 0.0
    %1044 = vmatprep.subr.mxu0 0.0
    %1045 = vmatpush1.msra.mxu0 0.0
    %1046 = vmatprep.subr.mxu0 0.0
    %1047 = vmatpush1.msra.mxu0 0.0
    %1048 = vmatprep.subr.mxu0 0.0
    %1049 = vmatpush1.msra.mxu0 0.0
    %1050 = vmatprep.subr.mxu0 0.0
    %1051 = vmatpush1.msra.mxu0 0.0
    %1052 = vmatprep.subr.mxu0 0.0
    %1053 = vmatpush1.msra.mxu0 0.0
    %1054 = vmatprep.subr.mxu0 0.0
    %1055 = vmatpush1.msra.mxu0 0.0
    %1056 = vmatprep.subr.mxu0 0.0
    %1057 = vmatpush1.msra.mxu0 0.0
    %1058 = vmatprep.subr.mxu0 0.0
    %1059 = vmatpush1.msra.mxu0 0.0
    %1060 = vmatprep.subr.mxu0 0.0
    %1061 = vmatpush1.msra.mxu0 0.0
    %1062 = vmatprep.subr.mxu0 0.0
    %1063 = vmatpush1.msra.mxu0 0.0
    %1064 = vmatprep.subr.mxu0 0.0
    %1065 = vmatpush1.msra.mxu0 0.0
    %1066 = vmatprep.subr.mxu0 0.0
    %1067 = vmatpush1.msra.mxu0 0.0
    %1068 = vmatprep.subr.mxu0 0.0
    %1069 = vmatpush1.msra.mxu0 0.0
    %1070 = vmatprep.subr.mxu0 0.0
    %1071 = vmatpush1.msra.mxu0 0.0
    %1072 = vmatprep.subr.mxu0 0.0
    %1073 = vmatpush1.msra.mxu0 0.0
    %1074 = vmatprep.subr.mxu0 0.0
    %1075 = vmatpush1.msra.mxu0 0.0
    %1076 = vmatprep.subr.mxu0 0.0
    %1077 = vmatpush1.msra.mxu0 0.0
    %1078 = vmatprep.subr.mxu0 0.0
    %1079 = vmatpush1.msra.mxu0 0.0
    %1080 = vmatprep.mubr.f32.mxu0 0.0
    %1081 = vmatmul.mubr.f32.gmra.mrb[0].mxu0 %v1014
    %v1082 = vpop.f32.mrb[0].mxu0
    %v1083 = vadd.f32 %v1010, %v1082
    %v1084 = vpop.f32.mrb[0].mxu0
    %1085 = vdwg.mxu0
    %v1086 = vld [vmem:[%s364] sm:$0x1]
    %v1088 = vlaneseq
    %v1089 = vshrl.u32 %v1088, 7
    %v1090 = vsub.s32 0, %v1089
    %v1091 = vrot.slane %v1086, %v1090
    %v1093 = vadd.f32 %v1083, %v1091
    %v1094 = vtanh.pop %v1093
    %1095 = vst.msk [vmem:[%s211] sm:$0x3] %vm205, %v1094
    %v1098 = vunpack.c.l.s4 1966171168
    %v1099 = vunpack.c.0.s8 %v1098
    %v1100 = vlaneseq
    %v1101 = vshrl.u32 %v1100, 7
    %v1102 = vsub.s32 %v1099, %v1101
    %v1103 = vrot.slane %v1094, %v1102
    %v1104 = vcombine.high %v1103, %v1103
    %v1106 = vunpack.c.l.s4 1966171168
    %v1107 = vunpack.c.0.s8 %v1106
    %v1108 = vlaneseq
    %v1109 = vshrl.u32 %v1108, 7
    %v1110 = vsub.s32 %v1107, %v1109
    %v1111 = vrot.slane %v1103, %v1110
    %v1113 = vunpack.c.l.s4 1966171168
    %v1114 = vunpack.c.0.s8 %v1113
    %v1115 = vlaneseq
    %v1116 = vshrl.u32 %v1115, 7
    %v1117 = vsub.s32 %v1114, %v1116
    %v1118 = vrot.slane %v1104, %v1117
    %1121 = vst.msk [vmem:[%s6 + $0x2] sm:$0x1] %vm400, %v1111
    %1122 = vst.msk [vmem:[%s6 + $0xa] sm:$0x1] %vm400, %v1118
    %v1123 = vld [vmem:[%s0 + $0x3] sm:$0x1]
    %v1124 = vld [vmem:[%s0 + $0xb] sm:$0x1]
    %v1125 = vld [vmem:[%s2] sm:$0xff]
    %v1126 = vld [vmem:[%s2 + $0x8] sm:$0xff]
    %v1127 = vld [vmem:[#allocation2] sm:$0x3]
    %v1128 = vld [vmem:[%s4] sm:$0xff]
    %v1129 = vld [vmem:[%s4 + $0x8] sm:$0xff]
    %v1130 = vld [vmem:[%s4 + $0x10] sm:$0xff]
    %v1131 = vld [vmem:[%s4 + $0x18] sm:$0xff]
    %v1133 = vsel %vm44, %v1127, 0
    %1135 = vmatprep.subr.mxu0 0.0
    %1136 = vmatpush1.msra.mxu0 %v1128
    %1137 = vmatprep.subr.mxu0 0.0
    %1138 = vmatpush1.msra.mxu0 %v1129
    %1139 = vmatprep.subr.mxu0 0.0
    %1140 = vmatpush1.msra.mxu0 %v1130
    %1141 = vmatprep.subr.mxu0 0.0
    %1142 = vmatpush1.msra.mxu0 %v1131
    %1143 = vmatprep.subr.mxu0 0.0
    %1144 = vmatpush1.msra.mxu0 0.0
    %1145 = vmatprep.subr.mxu0 0.0
    %1146 = vmatpush1.msra.mxu0 0.0
    %1147 = vmatprep.subr.mxu0 0.0
    %1148 = vmatpush1.msra.mxu0 0.0
    %1149 = vmatprep.subr.mxu0 0.0
    %1150 = vmatpush1.msra.mxu0 0.0
    %1151 = vmatprep.subr.mxu0 0.0
    %1152 = vmatpush1.msra.mxu0 0.0
    %1153 = vmatprep.subr.mxu0 0.0
    %1154 = vmatpush1.msra.mxu0 0.0
    %1155 = vmatprep.subr.mxu0 0.0
    %1156 = vmatpush1.msra.mxu0 0.0
    %1157 = vmatprep.subr.mxu0 0.0
    %1158 = vmatpush1.msra.mxu0 0.0
    %1159 = vmatprep.subr.mxu0 0.0
    %1160 = vmatpush1.msra.mxu0 0.0
    %1161 = vmatprep.subr.mxu0 0.0
    %1162 = vmatpush1.msra.mxu0 0.0
    %1163 = vmatprep.subr.mxu0 0.0
    %1164 = vmatpush1.msra.mxu0 0.0
    %1165 = vmatprep.subr.mxu0 0.0
    %1166 = vmatpush1.msra.mxu0 0.0
    %1167 = vmatprep.subr.mxu0 0.0
    %1168 = vmatpush1.msra.mxu0 0.0
    %1169 = vmatprep.subr.mxu0 0.0
    %1170 = vmatpush1.msra.mxu0 0.0
    %1171 = vmatprep.subr.mxu0 0.0
    %1172 = vmatpush1.msra.mxu0 0.0
    %1173 = vmatprep.subr.mxu0 0.0
    %1174 = vmatpush1.msra.mxu0 0.0
    %1175 = vmatprep.subr.mxu0 0.0
    %1176 = vmatpush1.msra.mxu0 0.0
    %1177 = vmatprep.subr.mxu0 0.0
    %1178 = vmatpush1.msra.mxu0 0.0
    %1179 = vmatprep.subr.mxu0 0.0
    %1180 = vmatpush1.msra.mxu0 0.0
    %1181 = vmatprep.subr.mxu0 0.0
    %1182 = vmatpush1.msra.mxu0 0.0
    %1183 = vmatprep.subr.mxu0 0.0
    %1184 = vmatpush1.msra.mxu0 0.0
    %1185 = vmatprep.subr.mxu0 0.0
    %1186 = vmatpush1.msra.mxu0 0.0
    %1187 = vmatprep.subr.mxu0 0.0
    %1188 = vmatpush1.msra.mxu0 0.0
    %1189 = vmatprep.subr.mxu0 0.0
    %1190 = vmatpush1.msra.mxu0 0.0
    %1191 = vmatprep.subr.mxu0 0.0
    %1192 = vmatpush1.msra.mxu0 0.0
    %1193 = vmatprep.subr.mxu0 0.0
    %1194 = vmatpush1.msra.mxu0 0.0
    %1195 = vmatprep.subr.mxu0 0.0
    %1196 = vmatpush1.msra.mxu0 0.0
    %1197 = vmatprep.subr.mxu0 0.0
    %1198 = vmatpush1.msra.mxu0 0.0
    %1199 = vmatprep.mubr.f32.mxu0 0.0
    %1200 = vmatmul.mubr.f32.gmra.mrb[0].mxu0 %v1133
    %v1201 = vpop.f32.mrb[0].mxu0
    %v1202 = vadd.f32 0.0, %v1201
    %v1203 = vpop.f32.mrb[0].mxu0
    %1204 = vdwg.mxu0
    %v1207 = vrot.slane %v1124, 7
    %v1208 = vsel %vm121, %v1207, %v1123
    %v1209 = vsel %vm123, %v1208, 0
    %1211 = vmatprep.subr.mxu0 0.0
    %1212 = vmatpush1.msra.mxu0 %v1125
    %1213 = vmatprep.subr.mxu0 0.0
    %1214 = vmatpush1.msra.mxu0 %v1126
    %1215 = vmatprep.subr.mxu0 0.0
    %1216 = vmatpush1.msra.mxu0 0.0
    %1217 = vmatprep.subr.mxu0 0.0
    %1218 = vmatpush1.msra.mxu0 0.0
    %1219 = vmatprep.subr.mxu0 0.0
    %1220 = vmatpush1.msra.mxu0 0.0
    %1221 = vmatprep.subr.mxu0 0.0
    %1222 = vmatpush1.msra.mxu0 0.0
    %1223 = vmatprep.subr.mxu0 0.0
    %1224 = vmatpush1.msra.mxu0 0.0
    %1225 = vmatprep.subr.mxu0 0.0
    %1226 = vmatpush1.msra.mxu0 0.0
    %1227 = vmatprep.subr.mxu0 0.0
    %1228 = vmatpush1.msra.mxu0 0.0
    %1229 = vmatprep.subr.mxu0 0.0
    %1230 = vmatpush1.msra.mxu0 0.0
    %1231 = vmatprep.subr.mxu0 0.0
    %1232 = vmatpush1.msra.mxu0 0.0
    %1233 = vmatprep.subr.mxu0 0.0
    %1234 = vmatpush1.msra.mxu0 0.0
    %1235 = vmatprep.subr.mxu0 0.0
    %1236 = vmatpush1.msra.mxu0 0.0
    %1237 = vmatprep.subr.mxu0 0.0
    %1238 = vmatpush1.msra.mxu0 0.0
    %1239 = vmatprep.subr.mxu0 0.0
    %1240 = vmatpush1.msra.mxu0 0.0
    %1241 = vmatprep.subr.mxu0 0.0
    %1242 = vmatpush1.msra.mxu0 0.0
    %1243 = vmatprep.subr.mxu0 0.0
    %1244 = vmatpush1.msra.mxu0 0.0
    %1245 = vmatprep.subr.mxu0 0.0
    %1246 = vmatpush1.msra.mxu0 0.0
    %1247 = vmatprep.subr.mxu0 0.0
    %1248 = vmatpush1.msra.mxu0 0.0
    %1249 = vmatprep.subr.mxu0 0.0
    %1250 = vmatpush1.msra.mxu0 0.0
    %1251 = vmatprep.subr.mxu0 0.0
    %1252 = vmatpush1.msra.mxu0 0.0
    %1253 = vmatprep.subr.mxu0 0.0
    %1254 = vmatpush1.msra.mxu0 0.0
    %1255 = vmatprep.subr.mxu0 0.0
    %1256 = vmatpush1.msra.mxu0 0.0
    %1257 = vmatprep.subr.mxu0 0.0
    %1258 = vmatpush1.msra.mxu0 0.0
    %1259 = vmatprep.subr.mxu0 0.0
    %1260 = vmatpush1.msra.mxu0 0.0
    %1261 = vmatprep.subr.mxu0 0.0
    %1262 = vmatpush1.msra.mxu0 0.0
    %1263 = vmatprep.subr.mxu0 0.0
    %1264 = vmatpush1.msra.mxu0 0.0
    %1265 = vmatprep.subr.mxu0 0.0
    %1266 = vmatpush1.msra.mxu0 0.0
    %1267 = vmatprep.subr.mxu0 0.0
    %1268 = vmatpush1.msra.mxu0 0.0
    %1269 = vmatprep.subr.mxu0 0.0
    %1270 = vmatpush1.msra.mxu0 0.0
    %1271 = vmatprep.subr.mxu0 0.0
    %1272 = vmatpush1.msra.mxu0 0.0
    %1273 = vmatprep.subr.mxu0 0.0
    %1274 = vmatpush1.msra.mxu0 0.0
    %1275 = vmatprep.mubr.f32.mxu0 0.0
    %1276 = vmatmul.mubr.f32.gmra.mrb[0].mxu0 %v1209
    %v1277 = vpop.f32.mrb[0].mxu0
    %v1278 = vadd.f32 %v1202, %v1277
    %v1279 = vpop.f32.mrb[0].mxu0
    %1280 = vdwg.mxu0
    %v1281 = vld [vmem:[%s5] sm:$0x1]
    %v1283 = vlaneseq
    %v1284 = vshrl.u32 %v1283, 7
    %v1285 = vsub.s32 0, %v1284
    %v1286 = vrot.slane %v1281, %v1285
    %v1288 = vadd.f32 %v1278, %v1286
    %v1289 = vtanh.pop %v1288
    %1290 = vst.msk [vmem:[#allocation2] sm:$0x3] %vm205, %v1289
    %v1291 = vld [vmem:[%s3] sm:$0xff]
    %v1292 = vld [vmem:[%s3 + $0x8] sm:$0xff]
    %v1293 = vld [vmem:[%s3 + $0x10] sm:$0xff]
    %v1294 = vld [vmem:[%s3 + $0x18] sm:$0xff]
    %v1295 = vld [vmem:[%s211] sm:$0x3]
    %v1296 = vld [vmem:[%s213] sm:$0xff]
    %v1297 = vld [vmem:[%s213 + $0x8] sm:$0xff]
    %v1298 = vld [vmem:[%s213 + $0x10] sm:$0xff]
    %v1299 = vld [vmem:[%s213 + $0x18] sm:$0xff]
    %v1301 = vsel %vm44, %v1295, 0
    %1303 = vmatprep.subr.mxu0 0.0
    %1304 = vmatpush1.msra.mxu0 %v1296
    %1305 = vmatprep.subr.mxu0 0.0
    %1306 = vmatpush1.msra.mxu0 %v1297
    %1307 = vmatprep.subr.mxu0 0.0
    %1308 = vmatpush1.msra.mxu0 %v1298
    %1309 = vmatprep.subr.mxu0 0.0
    %1310 = vmatpush1.msra.mxu0 %v1299
    %1311 = vmatprep.subr.mxu0 0.0
    %1312 = vmatpush1.msra.mxu0 0.0
    %1313 = vmatprep.subr.mxu0 0.0
    %1314 = vmatpush1.msra.mxu0 0.0
    %1315 = vmatprep.subr.mxu0 0.0
    %1316 = vmatpush1.msra.mxu0 0.0
    %1317 = vmatprep.subr.mxu0 0.0
    %1318 = vmatpush1.msra.mxu0 0.0
    %1319 = vmatprep.subr.mxu0 0.0
    %1320 = vmatpush1.msra.mxu0 0.0
    %1321 = vmatprep.subr.mxu0 0.0
    %1322 = vmatpush1.msra.mxu0 0.0
    %1323 = vmatprep.subr.mxu0 0.0
    %1324 = vmatpush1.msra.mxu0 0.0
    %1325 = vmatprep.subr.mxu0 0.0
    %1326 = vmatpush1.msra.mxu0 0.0
    %1327 = vmatprep.subr.mxu0 0.0
    %1328 = vmatpush1.msra.mxu0 0.0
    %1329 = vmatprep.subr.mxu0 0.0
    %1330 = vmatpush1.msra.mxu0 0.0
    %1331 = vmatprep.subr.mxu0 0.0
    %1332 = vmatpush1.msra.mxu0 0.0
    %1333 = vmatprep.subr.mxu0 0.0
    %1334 = vmatpush1.msra.mxu0 0.0
    %1335 = vmatprep.subr.mxu0 0.0
    %1336 = vmatpush1.msra.mxu0 0.0
    %1337 = vmatprep.subr.mxu0 0.0
    %1338 = vmatpush1.msra.mxu0 0.0
    %1339 = vmatprep.subr.mxu0 0.0
    %1340 = vmatpush1.msra.mxu0 0.0
    %1341 = vmatprep.subr.mxu0 0.0
    %1342 = vmatpush1.msra.mxu0 0.0
    %1343 = vmatprep.subr.mxu0 0.0
    %1344 = vmatpush1.msra.mxu0 0.0
    %1345 = vmatprep.subr.mxu0 0.0
    %1346 = vmatpush1.msra.mxu0 0.0
    %1347 = vmatprep.subr.mxu0 0.0
    %1348 = vmatpush1.msra.mxu0 0.0
    %1349 = vmatprep.subr.mxu0 0.0
    %1350 = vmatpush1.msra.mxu0 0.0
    %1351 = vmatprep.subr.mxu0 0.0
    %1352 = vmatpush1.msra.mxu0 0.0
    %1353 = vmatprep.subr.mxu0 0.0
    %1354 = vmatpush1.msra.mxu0 0.0
    %1355 = vmatprep.subr.mxu0 0.0
    %1356 = vmatpush1.msra.mxu0 0.0
    %1357 = vmatprep.subr.mxu0 0.0
    %1358 = vmatpush1.msra.mxu0 0.0
    %1359 = vmatprep.subr.mxu0 0.0
    %1360 = vmatpush1.msra.mxu0 0.0
    %1361 = vmatprep.subr.mxu0 0.0
    %1362 = vmatpush1.msra.mxu0 0.0
    %1363 = vmatprep.subr.mxu0 0.0
    %1364 = vmatpush1.msra.mxu0 0.0
    %1365 = vmatprep.subr.mxu0 0.0
    %1366 = vmatpush1.msra.mxu0 0.0
    %1367 = vmatprep.mubr.f32.mxu0 0.0
    %1368 = vmatmul.mubr.f32.gmra.mrb[0].mxu0 %v1301
    %v1369 = vpop.f32.mrb[0].mxu0
    %v1370 = vadd.f32 0.0, %v1369
    %v1371 = vpop.f32.mrb[0].mxu0
    %1372 = vdwg.mxu0
    %v1374 = vsel %vm44, %v1289, 0
    %1376 = vmatprep.subr.mxu0 0.0
    %1377 = vmatpush1.msra.mxu0 %v1291
    %1378 = vmatprep.subr.mxu0 0.0
    %1379 = vmatpush1.msra.mxu0 %v1292
    %1380 = vmatprep.subr.mxu0 0.0
    %1381 = vmatpush1.msra.mxu0 %v1293
    %1382 = vmatprep.subr.mxu0 0.0
    %1383 = vmatpush1.msra.mxu0 %v1294
    %1384 = vmatprep.subr.mxu0 0.0
    %1385 = vmatpush1.msra.mxu0 0.0
    %1386 = vmatprep.subr.mxu0 0.0
    %1387 = vmatpush1.msra.mxu0 0.0
    %1388 = vmatprep.subr.mxu0 0.0
    %1389 = vmatpush1.msra.mxu0 0.0
    %1390 = vmatprep.subr.mxu0 0.0
    %1391 = vmatpush1.msra.mxu0 0.0
    %1392 = vmatprep.subr.mxu0 0.0
    %1393 = vmatpush1.msra.mxu0 0.0
    %1394 = vmatprep.subr.mxu0 0.0
    %1395 = vmatpush1.msra.mxu0 0.0
    %1396 = vmatprep.subr.mxu0 0.0
    %1397 = vmatpush1.msra.mxu0 0.0
    %1398 = vmatprep.subr.mxu0 0.0
    %1399 = vmatpush1.msra.mxu0 0.0
    %1400 = vmatprep.subr.mxu0 0.0
    %1401 = vmatpush1.msra.mxu0 0.0
    %1402 = vmatprep.subr.mxu0 0.0
    %1403 = vmatpush1.msra.mxu0 0.0
    %1404 = vmatprep.subr.mxu0 0.0
    %1405 = vmatpush1.msra.mxu0 0.0
    %1406 = vmatprep.subr.mxu0 0.0
    %1407 = vmatpush1.msra.mxu0 0.0
    %1408 = vmatprep.subr.mxu0 0.0
    %1409 = vmatpush1.msra.mxu0 0.0
    %1410 = vmatprep.subr.mxu0 0.0
    %1411 = vmatpush1.msra.mxu0 0.0
    %1412 = vmatprep.subr.mxu0 0.0
    %1413 = vmatpush1.msra.mxu0 0.0
    %1414 = vmatprep.subr.mxu0 0.0
    %1415 = vmatpush1.msra.mxu0 0.0
    %1416 = vmatprep.subr.mxu0 0.0
    %1417 = vmatpush1.msra.mxu0 0.0
    %1418 = vmatprep.subr.mxu0 0.0
    %1419 = vmatpush1.msra.mxu0 0.0
    %1420 = vmatprep.subr.mxu0 0.0
    %1421 = vmatpush1.msra.mxu0 0.0
    %1422 = vmatprep.subr.mxu0 0.0
    %1423 = vmatpush1.msra.mxu0 0.0
    %1424 = vmatprep.subr.mxu0 0.0
    %1425 = vmatpush1.msra.mxu0 0.0
    %1426 = vmatprep.subr.mxu0 0.0
    %1427 = vmatpush1.msra.mxu0 0.0
    %1428 = vmatprep.subr.mxu0 0.0
    %1429 = vmatpush1.msra.mxu0 0.0
    %1430 = vmatprep.subr.mxu0 0.0
    %1431 = vmatpush1.msra.mxu0 0.0
    %1432 = vmatprep.subr.mxu0 0.0
    %1433 = vmatpush1.msra.mxu0 0.0
    %1434 = vmatprep.subr.mxu0 0.0
    %1435 = vmatpush1.msra.mxu0 0.0
    %1436 = vmatprep.subr.mxu0 0.0
    %1437 = vmatpush1.msra.mxu0 0.0
    %1438 = vmatprep.subr.mxu0 0.0
    %1439 = vmatpush1.msra.mxu0 0.0
    %1440 = vmatprep.mubr.f32.mxu0 0.0
    %1441 = vmatmul.mubr.f32.gmra.mrb[0].mxu0 %v1374
    %v1442 = vpop.f32.mrb[0].mxu0
    %v1443 = vadd.f32 %v1370, %v1442
    %v1444 = vpop.f32.mrb[0].mxu0
    %1445 = vdwg.mxu0
    %v1446 = vld [vmem:[%s364] sm:$0x1]
    %v1448 = vlaneseq
    %v1449 = vshrl.u32 %v1448, 7
    %v1450 = vsub.s32 0, %v1449
    %v1451 = vrot.slane %v1446, %v1450
    %v1453 = vadd.f32 %v1443, %v1451
    %v1454 = vtanh.pop %v1453
    %1455 = vst.msk [vmem:[%s211] sm:$0x3] %vm205, %v1454
    %v1458 = vunpack.c.l.s4 1966171168
    %v1459 = vunpack.c.0.s8 %v1458
    %v1460 = vlaneseq
    %v1461 = vshrl.u32 %v1460, 7
    %v1462 = vsub.s32 %v1459, %v1461
    %v1463 = vrot.slane %v1454, %v1462
    %v1464 = vcombine.high %v1463, %v1463
    %v1466 = vunpack.c.l.s4 1966171168
    %v1467 = vunpack.c.0.s8 %v1466
    %v1468 = vlaneseq
    %v1469 = vshrl.u32 %v1468, 7
    %v1470 = vsub.s32 %v1467, %v1469
    %v1471 = vrot.slane %v1463, %v1470
    %v1473 = vunpack.c.l.s4 1966171168
    %v1474 = vunpack.c.0.s8 %v1473
    %v1475 = vlaneseq
    %v1476 = vshrl.u32 %v1475, 7
    %v1477 = vsub.s32 %v1474, %v1476
    %v1478 = vrot.slane %v1464, %v1477
    %1481 = vst.msk [vmem:[%s6 + $0x3] sm:$0x1] %vm400, %v1471
    %1482 = vst.msk [vmem:[%s6 + $0xb] sm:$0x1] %vm400, %v1478
    %v1483 = vld [vmem:[%s0 + $0x4] sm:$0x1]
    %v1484 = vld [vmem:[%s0 + $0xc] sm:$0x1]
    %v1485 = vld [vmem:[%s2] sm:$0xff]
    %v1486 = vld [vmem:[%s2 + $0x8] sm:$0xff]
    %v1487 = vld [vmem:[#allocation2] sm:$0x3]
    %v1488 = vld [vmem:[%s4] sm:$0xff]
    %v1489 = vld [vmem:[%s4 + $0x8] sm:$0xff]
    %v1490 = vld [vmem:[%s4 + $0x10] sm:$0xff]
    %v1491 = vld [vmem:[%s4 + $0x18] sm:$0xff]
    %v1493 = vsel %vm44, %v1487, 0
    %1495 = vmatprep.subr.mxu0 0.0
    %1496 = vmatpush1.msra.mxu0 %v1488
    %1497 = vmatprep.subr.mxu0 0.0
    %1498 = vmatpush1.msra.mxu0 %v1489
    %1499 = vmatprep.subr.mxu0 0.0
    %1500 = vmatpush1.msra.mxu0 %v1490
    %1501 = vmatprep.subr.mxu0 0.0
    %1502 = vmatpush1.msra.mxu0 %v1491
    %1503 = vmatprep.subr.mxu0 0.0
    %1504 = vmatpush1.msra.mxu0 0.0
    %1505 = vmatprep.subr.mxu0 0.0
    %1506 = vmatpush1.msra.mxu0 0.0
    %1507 = vmatprep.subr.mxu0 0.0
    %1508 = vmatpush1.msra.mxu0 0.0
    %1509 = vmatprep.subr.mxu0 0.0
    %1510 = vmatpush1.msra.mxu0 0.0
    %1511 = vmatprep.subr.mxu0 0.0
    %1512 = vmatpush1.msra.mxu0 0.0
    %1513 = vmatprep.subr.mxu0 0.0
    %1514 = vmatpush1.msra.mxu0 0.0
    %1515 = vmatprep.subr.mxu0 0.0
    %1516 = vmatpush1.msra.mxu0 0.0
    %1517 = vmatprep.subr.mxu0 0.0
    %1518 = vmatpush1.msra.mxu0 0.0
    %1519 = vmatprep.subr.mxu0 0.0
    %1520 = vmatpush1.msra.mxu0 0.0
    %1521 = vmatprep.subr.mxu0 0.0
    %1522 = vmatpush1.msra.mxu0 0.0
    %1523 = vmatprep.subr.mxu0 0.0
    %1524 = vmatpush1.msra.mxu0 0.0
    %1525 = vmatprep.subr.mxu0 0.0
    %1526 = vmatpush1.msra.mxu0 0.0
    %1527 = vmatprep.subr.mxu0 0.0
    %1528 = vmatpush1.msra.mxu0 0.0
    %1529 = vmatprep.subr.mxu0 0.0
    %1530 = vmatpush1.msra.mxu0 0.0
    %1531 = vmatprep.subr.mxu0 0.0
    %1532 = vmatpush1.msra.mxu0 0.0
    %1533 = vmatprep.subr.mxu0 0.0
    %1534 = vmatpush1.msra.mxu0 0.0
    %1535 = vmatprep.subr.mxu0 0.0
    %1536 = vmatpush1.msra.mxu0 0.0
    %1537 = vmatprep.subr.mxu0 0.0
    %1538 = vmatpush1.msra.mxu0 0.0
    %1539 = vmatprep.subr.mxu0 0.0
    %1540 = vmatpush1.msra.mxu0 0.0
    %1541 = vmatprep.subr.mxu0 0.0
    %1542 = vmatpush1.msra.mxu0 0.0
    %1543 = vmatprep.subr.mxu0 0.0
    %1544 = vmatpush1.msra.mxu0 0.0
    %1545 = vmatprep.subr.mxu0 0.0
    %1546 = vmatpush1.msra.mxu0 0.0
    %1547 = vmatprep.subr.mxu0 0.0
    %1548 = vmatpush1.msra.mxu0 0.0
    %1549 = vmatprep.subr.mxu0 0.0
    %1550 = vmatpush1.msra.mxu0 0.0
    %1551 = vmatprep.subr.mxu0 0.0
    %1552 = vmatpush1.msra.mxu0 0.0
    %1553 = vmatprep.subr.mxu0 0.0
    %1554 = vmatpush1.msra.mxu0 0.0
    %1555 = vmatprep.subr.mxu0 0.0
    %1556 = vmatpush1.msra.mxu0 0.0
    %1557 = vmatprep.subr.mxu0 0.0
    %1558 = vmatpush1.msra.mxu0 0.0
    %1559 = vmatprep.mubr.f32.mxu0 0.0
    %1560 = vmatmul.mubr.f32.gmra.mrb[0].mxu0 %v1493
    %v1561 = vpop.f32.mrb[0].mxu0
    %v1562 = vadd.f32 0.0, %v1561
    %v1563 = vpop.f32.mrb[0].mxu0
    %1564 = vdwg.mxu0
    %v1567 = vrot.slane %v1484, 7
    %v1568 = vsel %vm121, %v1567, %v1483
    %v1569 = vsel %vm123, %v1568, 0
    %1571 = vmatprep.subr.mxu0 0.0
    %1572 = vmatpush1.msra.mxu0 %v1485
    %1573 = vmatprep.subr.mxu0 0.0
    %1574 = vmatpush1.msra.mxu0 %v1486
    %1575 = vmatprep.subr.mxu0 0.0
    %1576 = vmatpush1.msra.mxu0 0.0
    %1577 = vmatprep.subr.mxu0 0.0
    %1578 = vmatpush1.msra.mxu0 0.0
    %1579 = vmatprep.subr.mxu0 0.0
    %1580 = vmatpush1.msra.mxu0 0.0
    %1581 = vmatprep.subr.mxu0 0.0
    %1582 = vmatpush1.msra.mxu0 0.0
    %1583 = vmatprep.subr.mxu0 0.0
    %1584 = vmatpush1.msra.mxu0 0.0
    %1585 = vmatprep.subr.mxu0 0.0
    %1586 = vmatpush1.msra.mxu0 0.0
    %1587 = vmatprep.subr.mxu0 0.0
    %1588 = vmatpush1.msra.mxu0 0.0
    %1589 = vmatprep.subr.mxu0 0.0
    %1590 = vmatpush1.msra.mxu0 0.0
    %1591 = vmatprep.subr.mxu0 0.0
    %1592 = vmatpush1.msra.mxu0 0.0
    %1593 = vmatprep.subr.mxu0 0.0
    %1594 = vmatpush1.msra.mxu0 0.0
    %1595 = vmatprep.subr.mxu0 0.0
    %1596 = vmatpush1.msra.mxu0 0.0
    %1597 = vmatprep.subr.mxu0 0.0
    %1598 = vmatpush1.msra.mxu0 0.0
    %1599 = vmatprep.subr.mxu0 0.0
    %1600 = vmatpush1.msra.mxu0 0.0
    %1601 = vmatprep.subr.mxu0 0.0
    %1602 = vmatpush1.msra.mxu0 0.0
    %1603 = vmatprep.subr.mxu0 0.0
    %1604 = vmatpush1.msra.mxu0 0.0
    %1605 = vmatprep.subr.mxu0 0.0
    %1606 = vmatpush1.msra.mxu0 0.0
    %1607 = vmatprep.subr.mxu0 0.0
    %1608 = vmatpush1.msra.mxu0 0.0
    %1609 = vmatprep.subr.mxu0 0.0
    %1610 = vmatpush1.msra.mxu0 0.0
    %1611 = vmatprep.subr.mxu0 0.0
    %1612 = vmatpush1.msra.mxu0 0.0
    %1613 = vmatprep.subr.mxu0 0.0
    %1614 = vmatpush1.msra.mxu0 0.0
    %1615 = vmatprep.subr.mxu0 0.0
    %1616 = vmatpush1.msra.mxu0 0.0
    %1617 = vmatprep.subr.mxu0 0.0
    %1618 = vmatpush1.msra.mxu0 0.0
    %1619 = vmatprep.subr.mxu0 0.0
    %1620 = vmatpush1.msra.mxu0 0.0
    %1621 = vmatprep.subr.mxu0 0.0
    %1622 = vmatpush1.msra.mxu0 0.0
    %1623 = vmatprep.subr.mxu0 0.0
    %1624 = vmatpush1.msra.mxu0 0.0
    %1625 = vmatprep.subr.mxu0 0.0
    %1626 = vmatpush1.msra.mxu0 0.0
    %1627 = vmatprep.subr.mxu0 0.0
    %1628 = vmatpush1.msra.mxu0 0.0
    %1629 = vmatprep.subr.mxu0 0.0
    %1630 = vmatpush1.msra.mxu0 0.0
    %1631 = vmatprep.subr.mxu0 0.0
    %1632 = vmatpush1.msra.mxu0 0.0
    %1633 = vmatprep.subr.mxu0 0.0
    %1634 = vmatpush1.msra.mxu0 0.0
    %1635 = vmatprep.mubr.f32.mxu0 0.0
    %1636 = vmatmul.mubr.f32.gmra.mrb[0].mxu0 %v1569
    %v1637 = vpop.f32.mrb[0].mxu0
    %v1638 = vadd.f32 %v1562, %v1637
    %v1639 = vpop.f32.mrb[0].mxu0
    %1640 = vdwg.mxu0
    %v1641 = vld [vmem:[%s5] sm:$0x1]
    %v1643 = vlaneseq
    %v1644 = vshrl.u32 %v1643, 7
    %v1645 = vsub.s32 0, %v1644
    %v1646 = vrot.slane %v1641, %v1645
    %v1648 = vadd.f32 %v1638, %v1646
    %v1649 = vtanh.pop %v1648
    %1650 = vst.msk [vmem:[#allocation2] sm:$0x3] %vm205, %v1649
    %v1651 = vld [vmem:[%s3] sm:$0xff]
    %v1652 = vld [vmem:[%s3 + $0x8] sm:$0xff]
    %v1653 = vld [vmem:[%s3 + $0x10] sm:$0xff]
    %v1654 = vld [vmem:[%s3 + $0x18] sm:$0xff]
    %v1655 = vld [vmem:[%s211] sm:$0x3]
    %v1656 = vld [vmem:[%s213] sm:$0xff]
    %v1657 = vld [vmem:[%s213 + $0x8] sm:$0xff]
    %v1658 = vld [vmem:[%s213 + $0x10] sm:$0xff]
    %v1659 = vld [vmem:[%s213 + $0x18] sm:$0xff]
    %v1661 = vsel %vm44, %v1655, 0
    %1663 = vmatprep.subr.mxu0 0.0
    %1664 = vmatpush1.msra.mxu0 %v1656
    %1665 = vmatprep.subr.mxu0 0.0
    %1666 = vmatpush1.msra.mxu0 %v1657
    %1667 = vmatprep.subr.mxu0 0.0
    %1668 = vmatpush1.msra.mxu0 %v1658
    %1669 = vmatprep.subr.mxu0 0.0
    %1670 = vmatpush1.msra.mxu0 %v1659
    %1671 = vmatprep.subr.mxu0 0.0
    %1672 = vmatpush1.msra.mxu0 0.0
    %1673 = vmatprep.subr.mxu0 0.0
    %1674 = vmatpush1.msra.mxu0 0.0
    %1675 = vmatprep.subr.mxu0 0.0
    %1676 = vmatpush1.msra.mxu0 0.0
    %1677 = vmatprep.subr.mxu0 0.0
    %1678 = vmatpush1.msra.mxu0 0.0
    %1679 = vmatprep.subr.mxu0 0.0
    %1680 = vmatpush1.msra.mxu0 0.0
    %1681 = vmatprep.subr.mxu0 0.0
    %1682 = vmatpush1.msra.mxu0 0.0
    %1683 = vmatprep.subr.mxu0 0.0
    %1684 = vmatpush1.msra.mxu0 0.0
    %1685 = vmatprep.subr.mxu0 0.0
    %1686 = vmatpush1.msra.mxu0 0.0
    %1687 = vmatprep.subr.mxu0 0.0
    %1688 = vmatpush1.msra.mxu0 0.0
    %1689 = vmatprep.subr.mxu0 0.0
    %1690 = vmatpush1.msra.mxu0 0.0
    %1691 = vmatprep.subr.mxu0 0.0
    %1692 = vmatpush1.msra.mxu0 0.0
    %1693 = vmatprep.subr.mxu0 0.0
    %1694 = vmatpush1.msra.mxu0 0.0
    %1695 = vmatprep.subr.mxu0 0.0
    %1696 = vmatpush1.msra.mxu0 0.0
    %1697 = vmatprep.subr.mxu0 0.0
    %1698 = vmatpush1.msra.mxu0 0.0
    %1699 = vmatprep.subr.mxu0 0.0
    %1700 = vmatpush1.msra.mxu0 0.0
    %1701 = vmatprep.subr.mxu0 0.0
    %1702 = vmatpush1.msra.mxu0 0.0
    %1703 = vmatprep.subr.mxu0 0.0
    %1704 = vmatpush1.msra.mxu0 0.0
    %1705 = vmatprep.subr.mxu0 0.0
    %1706 = vmatpush1.msra.mxu0 0.0
    %1707 = vmatprep.subr.mxu0 0.0
    %1708 = vmatpush1.msra.mxu0 0.0
    %1709 = vmatprep.subr.mxu0 0.0
    %1710 = vmatpush1.msra.mxu0 0.0
    %1711 = vmatprep.subr.mxu0 0.0
    %1712 = vmatpush1.msra.mxu0 0.0
    %1713 = vmatprep.subr.mxu0 0.0
    %1714 = vmatpush1.msra.mxu0 0.0
    %1715 = vmatprep.subr.mxu0 0.0
    %1716 = vmatpush1.msra.mxu0 0.0
    %1717 = vmatprep.subr.mxu0 0.0
    %1718 = vmatpush1.msra.mxu0 0.0
    %1719 = vmatprep.subr.mxu0 0.0
    %1720 = vmatpush1.msra.mxu0 0.0
    %1721 = vmatprep.subr.mxu0 0.0
    %1722 = vmatpush1.msra.mxu0 0.0
    %1723 = vmatprep.subr.mxu0 0.0
    %1724 = vmatpush1.msra.mxu0 0.0
    %1725 = vmatprep.subr.mxu0 0.0
    %1726 = vmatpush1.msra.mxu0 0.0
    %1727 = vmatprep.mubr.f32.mxu0 0.0
    %1728 = vmatmul.mubr.f32.gmra.mrb[0].mxu0 %v1661
    %v1729 = vpop.f32.mrb[0].mxu0
    %v1730 = vadd.f32 0.0, %v1729
    %v1731 = vpop.f32.mrb[0].mxu0
    %1732 = vdwg.mxu0
    %v1734 = vsel %vm44, %v1649, 0
    %1736 = vmatprep.subr.mxu0 0.0
    %1737 = vmatpush1.msra.mxu0 %v1651
    %1738 = vmatprep.subr.mxu0 0.0
    %1739 = vmatpush1.msra.mxu0 %v1652
    %1740 = vmatprep.subr.mxu0 0.0
    %1741 = vmatpush1.msra.mxu0 %v1653
    %1742 = vmatprep.subr.mxu0 0.0
    %1743 = vmatpush1.msra.mxu0 %v1654
    %1744 = vmatprep.subr.mxu0 0.0
    %1745 = vmatpush1.msra.mxu0 0.0
    %1746 = vmatprep.subr.mxu0 0.0
    %1747 = vmatpush1.msra.mxu0 0.0
    %1748 = vmatprep.subr.mxu0 0.0
    %1749 = vmatpush1.msra.mxu0 0.0
    %1750 = vmatprep.subr.mxu0 0.0
    %1751 = vmatpush1.msra.mxu0 0.0
    %1752 = vmatprep.subr.mxu0 0.0
    %1753 = vmatpush1.msra.mxu0 0.0
    %1754 = vmatprep.subr.mxu0 0.0
    %1755 = vmatpush1.msra.mxu0 0.0
    %1756 = vmatprep.subr.mxu0 0.0
    %1757 = vmatpush1.msra.mxu0 0.0
    %1758 = vmatprep.subr.mxu0 0.0
    %1759 = vmatpush1.msra.mxu0 0.0
    %1760 = vmatprep.subr.mxu0 0.0
    %1761 = vmatpush1.msra.mxu0 0.0
    %1762 = vmatprep.subr.mxu0 0.0
    %1763 = vmatpush1.msra.mxu0 0.0
    %1764 = vmatprep.subr.mxu0 0.0
    %1765 = vmatpush1.msra.mxu0 0.0
    %1766 = vmatprep.subr.mxu0 0.0
    %1767 = vmatpush1.msra.mxu0 0.0
    %1768 = vmatprep.subr.mxu0 0.0
    %1769 = vmatpush1.msra.mxu0 0.0
    %1770 = vmatprep.subr.mxu0 0.0
    %1771 = vmatpush1.msra.mxu0 0.0
    %1772 = vmatprep.subr.mxu0 0.0
    %1773 = vmatpush1.msra.mxu0 0.0
    %1774 = vmatprep.subr.mxu0 0.0
    %1775 = vmatpush1.msra.mxu0 0.0
    %1776 = vmatprep.subr.mxu0 0.0
    %1777 = vmatpush1.msra.mxu0 0.0
    %1778 = vmatprep.subr.mxu0 0.0
    %1779 = vmatpush1.msra.mxu0 0.0
    %1780 = vmatprep.subr.mxu0 0.0
    %1781 = vmatpush1.msra.mxu0 0.0
    %1782 = vmatprep.subr.mxu0 0.0
    %1783 = vmatpush1.msra.mxu0 0.0
    %1784 = vmatprep.subr.mxu0 0.0
    %1785 = vmatpush1.msra.mxu0 0.0
    %1786 = vmatprep.subr.mxu0 0.0
    %1787 = vmatpush1.msra.mxu0 0.0
    %1788 = vmatprep.subr.mxu0 0.0
    %1789 = vmatpush1.msra.mxu0 0.0
    %1790 = vmatprep.subr.mxu0 0.0
    %1791 = vmatpush1.msra.mxu0 0.0
    %1792 = vmatprep.subr.mxu0 0.0
    %1793 = vmatpush1.msra.mxu0 0.0
    %1794 = vmatprep.subr.mxu0 0.0
    %1795 = vmatpush1.msra.mxu0 0.0
    %1796 = vmatprep.subr.mxu0 0.0
    %1797 = vmatpush1.msra.mxu0 0.0
    %1798 = vmatprep.subr.mxu0 0.0
    %1799 = vmatpush1.msra.mxu0 0.0
    %1800 = vmatprep.mubr.f32.mxu0 0.0
    %1801 = vmatmul.mubr.f32.gmra.mrb[0].mxu0 %v1734
    %v1802 = vpop.f32.mrb[0].mxu0
    %v1803 = vadd.f32 %v1730, %v1802
    %v1804 = vpop.f32.mrb[0].mxu0
    %1805 = vdwg.mxu0
    %v1806 = vld [vmem:[%s364] sm:$0x1]
    %v1808 = vlaneseq
    %v1809 = vshrl.u32 %v1808, 7
    %v1810 = vsub.s32 0, %v1809
    %v1811 = vrot.slane %v1806, %v1810
    %v1813 = vadd.f32 %v1803, %v1811
    %v1814 = vtanh.pop %v1813
    %1815 = vst.msk [vmem:[%s211] sm:$0x3] %vm205, %v1814
    %v1818 = vunpack.c.l.s4 1966171168
    %v1819 = vunpack.c.0.s8 %v1818
    %v1820 = vlaneseq
    %v1821 = vshrl.u32 %v1820, 7
    %v1822 = vsub.s32 %v1819, %v1821
    %v1823 = vrot.slane %v1814, %v1822
    %v1824 = vcombine.high %v1823, %v1823
    %v1826 = vunpack.c.l.s4 1966171168
    %v1827 = vunpack.c.0.s8 %v1826
    %v1828 = vlaneseq
    %v1829 = vshrl.u32 %v1828, 7
    %v1830 = vsub.s32 %v1827, %v1829
    %v1831 = vrot.slane %v1823, %v1830
    %v1833 = vunpack.c.l.s4 1966171168
    %v1834 = vunpack.c.0.s8 %v1833
    %v1835 = vlaneseq
    %v1836 = vshrl.u32 %v1835, 7
    %v1837 = vsub.s32 %v1834, %v1836
    %v1838 = vrot.slane %v1824, %v1837
    %1841 = vst.msk [vmem:[%s6 + $0x4] sm:$0x1] %vm400, %v1831
    %1842 = vst.msk [vmem:[%s6 + $0xc] sm:$0x1] %vm400, %v1838
    %v1843 = vld [vmem:[%s0 + $0x5] sm:$0x1]
    %v1844 = vld [vmem:[%s0 + $0xd] sm:$0x1]
    %v1845 = vld [vmem:[%s2] sm:$0xff]
    %v1846 = vld [vmem:[%s2 + $0x8] sm:$0xff]
    %v1847 = vld [vmem:[#allocation2] sm:$0x3]
    %v1848 = vld [vmem:[%s4] sm:$0xff]
    %v1849 = vld [vmem:[%s4 + $0x8] sm:$0xff]
    %v1850 = vld [vmem:[%s4 + $0x10] sm:$0xff]
    %v1851 = vld [vmem:[%s4 + $0x18] sm:$0xff]
    %v1853 = vsel %vm44, %v1847, 0
    %1855 = vmatprep.subr.mxu0 0.0
    %1856 = vmatpush1.msra.mxu0 %v1848
    %1857 = vmatprep.subr.mxu0 0.0
    %1858 = vmatpush1.msra.mxu0 %v1849
    %1859 = vmatprep.subr.mxu0 0.0
    %1860 = vmatpush1.msra.mxu0 %v1850
    %1861 = vmatprep.subr.mxu0 0.0
    %1862 = vmatpush1.msra.mxu0 %v1851
    %1863 = vmatprep.subr.mxu0 0.0
    %1864 = vmatpush1.msra.mxu0 0.0
    %1865 = vmatprep.subr.mxu0 0.0
    %1866 = vmatpush1.msra.mxu0 0.0
    %1867 = vmatprep.subr.mxu0 0.0
    %1868 = vmatpush1.msra.mxu0 0.0
    %1869 = vmatprep.subr.mxu0 0.0
    %1870 = vmatpush1.msra.mxu0 0.0
    %1871 = vmatprep.subr.mxu0 0.0
    %1872 = vmatpush1.msra.mxu0 0.0
    %1873 = vmatprep.subr.mxu0 0.0
    %1874 = vmatpush1.msra.mxu0 0.0
    %1875 = vmatprep.subr.mxu0 0.0
    %1876 = vmatpush1.msra.mxu0 0.0
    %1877 = vmatprep.subr.mxu0 0.0
    %1878 = vmatpush1.msra.mxu0 0.0
    %1879 = vmatprep.subr.mxu0 0.0
    %1880 = vmatpush1.msra.mxu0 0.0
    %1881 = vmatprep.subr.mxu0 0.0
    %1882 = vmatpush1.msra.mxu0 0.0
    %1883 = vmatprep.subr.mxu0 0.0
    %1884 = vmatpush1.msra.mxu0 0.0
    %1885 = vmatprep.subr.mxu0 0.0
    %1886 = vmatpush1.msra.mxu0 0.0
    %1887 = vmatprep.subr.mxu0 0.0
    %1888 = vmatpush1.msra.mxu0 0.0
    %1889 = vmatprep.subr.mxu0 0.0
    %1890 = vmatpush1.msra.mxu0 0.0
    %1891 = vmatprep.subr.mxu0 0.0
    %1892 = vmatpush1.msra.mxu0 0.0
    %1893 = vmatprep.subr.mxu0 0.0
    %1894 = vmatpush1.msra.mxu0 0.0
    %1895 = vmatprep.subr.mxu0 0.0
    %1896 = vmatpush1.msra.mxu0 0.0
    %1897 = vmatprep.subr.mxu0 0.0
    %1898 = vmatpush1.msra.mxu0 0.0
    %1899 = vmatprep.subr.mxu0 0.0
    %1900 = vmatpush1.msra.mxu0 0.0
    %1901 = vmatprep.subr.mxu0 0.0
    %1902 = vmatpush1.msra.mxu0 0.0
    %1903 = vmatprep.subr.mxu0 0.0
    %1904 = vmatpush1.msra.mxu0 0.0
    %1905 = vmatprep.subr.mxu0 0.0
    %1906 = vmatpush1.msra.mxu0 0.0
    %1907 = vmatprep.subr.mxu0 0.0
    %1908 = vmatpush1.msra.mxu0 0.0
    %1909 = vmatprep.subr.mxu0 0.0
    %1910 = vmatpush1.msra.mxu0 0.0
    %1911 = vmatprep.subr.mxu0 0.0
    %1912 = vmatpush1.msra.mxu0 0.0
    %1913 = vmatprep.subr.mxu0 0.0
    %1914 = vmatpush1.msra.mxu0 0.0
    %1915 = vmatprep.subr.mxu0 0.0
    %1916 = vmatpush1.msra.mxu0 0.0
    %1917 = vmatprep.subr.mxu0 0.0
    %1918 = vmatpush1.msra.mxu0 0.0
    %1919 = vmatprep.mubr.f32.mxu0 0.0
    %1920 = vmatmul.mubr.f32.gmra.mrb[0].mxu0 %v1853
    %v1921 = vpop.f32.mrb[0].mxu0
    %v1922 = vadd.f32 0.0, %v1921
    %v1923 = vpop.f32.mrb[0].mxu0
    %1924 = vdwg.mxu0
    %v1927 = vrot.slane %v1844, 7
    %v1928 = vsel %vm121, %v1927, %v1843
    %v1929 = vsel %vm123, %v1928, 0
    %1931 = vmatprep.subr.mxu0 0.0
    %1932 = vmatpush1.msra.mxu0 %v1845
    %1933 = vmatprep.subr.mxu0 0.0
    %1934 = vmatpush1.msra.mxu0 %v1846
    %1935 = vmatprep.subr.mxu0 0.0
    %1936 = vmatpush1.msra.mxu0 0.0
    %1937 = vmatprep.subr.mxu0 0.0
    %1938 = vmatpush1.msra.mxu0 0.0
    %1939 = vmatprep.subr.mxu0 0.0
    %1940 = vmatpush1.msra.mxu0 0.0
    %1941 = vmatprep.subr.mxu0 0.0
    %1942 = vmatpush1.msra.mxu0 0.0
    %1943 = vmatprep.subr.mxu0 0.0
    %1944 = vmatpush1.msra.mxu0 0.0
    %1945 = vmatprep.subr.mxu0 0.0
    %1946 = vmatpush1.msra.mxu0 0.0
    %1947 = vmatprep.subr.mxu0 0.0
    %1948 = vmatpush1.msra.mxu0 0.0
    %1949 = vmatprep.subr.mxu0 0.0
    %1950 = vmatpush1.msra.mxu0 0.0
    %1951 = vmatprep.subr.mxu0 0.0
    %1952 = vmatpush1.msra.mxu0 0.0
    %1953 = vmatprep.subr.mxu0 0.0
    %1954 = vmatpush1.msra.mxu0 0.0
    %1955 = vmatprep.subr.mxu0 0.0
    %1956 = vmatpush1.msra.mxu0 0.0
    %1957 = vmatprep.subr.mxu0 0.0
    %1958 = vmatpush1.msra.mxu0 0.0
    %1959 = vmatprep.subr.mxu0 0.0
    %1960 = vmatpush1.msra.mxu0 0.0
    %1961 = vmatprep.subr.mxu0 0.0
    %1962 = vmatpush1.msra.mxu0 0.0
    %1963 = vmatprep.subr.mxu0 0.0
    %1964 = vmatpush1.msra.mxu0 0.0
    %1965 = vmatprep.subr.mxu0 0.0
    %1966 = vmatpush1.msra.mxu0 0.0
    %1967 = vmatprep.subr.mxu0 0.0
    %1968 = vmatpush1.msra.mxu0 0.0
    %1969 = vmatprep.subr.mxu0 0.0
    %1970 = vmatpush1.msra.mxu0 0.0
    %1971 = vmatprep.subr.mxu0 0.0
    %1972 = vmatpush1.msra.mxu0 0.0
    %1973 = vmatprep.subr.mxu0 0.0
    %1974 = vmatpush1.msra.mxu0 0.0
    %1975 = vmatprep.subr.mxu0 0.0
    %1976 = vmatpush1.msra.mxu0 0.0
    %1977 = vmatprep.subr.mxu0 0.0
    %1978 = vmatpush1.msra.mxu0 0.0
    %1979 = vmatprep.subr.mxu0 0.0
    %1980 = vmatpush1.msra.mxu0 0.0
    %1981 = vmatprep.subr.mxu0 0.0
    %1982 = vmatpush1.msra.mxu0 0.0
    %1983 = vmatprep.subr.mxu0 0.0
    %1984 = vmatpush1.msra.mxu0 0.0
    %1985 = vmatprep.subr.mxu0 0.0
    %1986 = vmatpush1.msra.mxu0 0.0
    %1987 = vmatprep.subr.mxu0 0.0
    %1988 = vmatpush1.msra.mxu0 0.0
    %1989 = vmatprep.subr.mxu0 0.0
    %1990 = vmatpush1.msra.mxu0 0.0
    %1991 = vmatprep.subr.mxu0 0.0
    %1992 = vmatpush1.msra.mxu0 0.0
    %1993 = vmatprep.subr.mxu0 0.0
    %1994 = vmatpush1.msra.mxu0 0.0
    %1995 = vmatprep.mubr.f32.mxu0 0.0
    %1996 = vmatmul.mubr.f32.gmra.mrb[0].mxu0 %v1929
    %v1997 = vpop.f32.mrb[0].mxu0
    %v1998 = vadd.f32 %v1922, %v1997
    %v1999 = vpop.f32.mrb[0].mxu0
    %2000 = vdwg.mxu0
    %v2001 = vld [vmem:[%s5] sm:$0x1]
    %v2003 = vlaneseq
    %v2004 = vshrl.u32 %v2003, 7
    %v2005 = vsub.s32 0, %v2004
    %v2006 = vrot.slane %v2001, %v2005
    %v2008 = vadd.f32 %v1998, %v2006
    %v2009 = vtanh.pop %v2008
    %2010 = vst.msk [vmem:[#allocation2] sm:$0x3] %vm205, %v2009
    %v2011 = vld [vmem:[%s3] sm:$0xff]
    %v2012 = vld [vmem:[%s3 + $0x8] sm:$0xff]
    %v2013 = vld [vmem:[%s3 + $0x10] sm:$0xff]
    %v2014 = vld [vmem:[%s3 + $0x18] sm:$0xff]
    %v2015 = vld [vmem:[%s211] sm:$0x3]
    %v2016 = vld [vmem:[%s213] sm:$0xff]
    %v2017 = vld [vmem:[%s213 + $0x8] sm:$0xff]
    %v2018 = vld [vmem:[%s213 + $0x10] sm:$0xff]
    %v2019 = vld [vmem:[%s213 + $0x18] sm:$0xff]
    %v2021 = vsel %vm44, %v2015, 0
    %2023 = vmatprep.subr.mxu0 0.0
    %2024 = vmatpush1.msra.mxu0 %v2016
    %2025 = vmatprep.subr.mxu0 0.0
    %2026 = vmatpush1.msra.mxu0 %v2017
    %2027 = vmatprep.subr.mxu0 0.0
    %2028 = vmatpush1.msra.mxu0 %v2018
    %2029 = vmatprep.subr.mxu0 0.0
    %2030 = vmatpush1.msra.mxu0 %v2019
    %2031 = vmatprep.subr.mxu0 0.0
    %2032 = vmatpush1.msra.mxu0 0.0
    %2033 = vmatprep.subr.mxu0 0.0
    %2034 = vmatpush1.msra.mxu0 0.0
    %2035 = vmatprep.subr.mxu0 0.0
    %2036 = vmatpush1.msra.mxu0 0.0
    %2037 = vmatprep.subr.mxu0 0.0
    %2038 = vmatpush1.msra.mxu0 0.0
    %2039 = vmatprep.subr.mxu0 0.0
    %2040 = vmatpush1.msra.mxu0 0.0
    %2041 = vmatprep.subr.mxu0 0.0
    %2042 = vmatpush1.msra.mxu0 0.0
    %2043 = vmatprep.subr.mxu0 0.0
    %2044 = vmatpush1.msra.mxu0 0.0
    %2045 = vmatprep.subr.mxu0 0.0
    %2046 = vmatpush1.msra.mxu0 0.0
    %2047 = vmatprep.subr.mxu0 0.0
    %2048 = vmatpush1.msra.mxu0 0.0
    %2049 = vmatprep.subr.mxu0 0.0
    %2050 = vmatpush1.msra.mxu0 0.0
    %2051 = vmatprep.subr.mxu0 0.0
    %2052 = vmatpush1.msra.mxu0 0.0
    %2053 = vmatprep.subr.mxu0 0.0
    %2054 = vmatpush1.msra.mxu0 0.0
    %2055 = vmatprep.subr.mxu0 0.0
    %2056 = vmatpush1.msra.mxu0 0.0
    %2057 = vmatprep.subr.mxu0 0.0
    %2058 = vmatpush1.msra.mxu0 0.0
    %2059 = vmatprep.subr.mxu0 0.0
    %2060 = vmatpush1.msra.mxu0 0.0
    %2061 = vmatprep.subr.mxu0 0.0
    %2062 = vmatpush1.msra.mxu0 0.0
    %2063 = vmatprep.subr.mxu0 0.0
    %2064 = vmatpush1.msra.mxu0 0.0
    %2065 = vmatprep.subr.mxu0 0.0
    %2066 = vmatpush1.msra.mxu0 0.0
    %2067 = vmatprep.subr.mxu0 0.0
    %2068 = vmatpush1.msra.mxu0 0.0
    %2069 = vmatprep.subr.mxu0 0.0
    %2070 = vmatpush1.msra.mxu0 0.0
    %2071 = vmatprep.subr.mxu0 0.0
    %2072 = vmatpush1.msra.mxu0 0.0
    %2073 = vmatprep.subr.mxu0 0.0
    %2074 = vmatpush1.msra.mxu0 0.0
    %2075 = vmatprep.subr.mxu0 0.0
    %2076 = vmatpush1.msra.mxu0 0.0
    %2077 = vmatprep.subr.mxu0 0.0
    %2078 = vmatpush1.msra.mxu0 0.0
    %2079 = vmatprep.subr.mxu0 0.0
    %2080 = vmatpush1.msra.mxu0 0.0
    %2081 = vmatprep.subr.mxu0 0.0
    %2082 = vmatpush1.msra.mxu0 0.0
    %2083 = vmatprep.subr.mxu0 0.0
    %2084 = vmatpush1.msra.mxu0 0.0
    %2085 = vmatprep.subr.mxu0 0.0
    %2086 = vmatpush1.msra.mxu0 0.0
    %2087 = vmatprep.mubr.f32.mxu0 0.0
    %2088 = vmatmul.mubr.f32.gmra.mrb[0].mxu0 %v2021
    %v2089 = vpop.f32.mrb[0].mxu0
    %v2090 = vadd.f32 0.0, %v2089
    %v2091 = vpop.f32.mrb[0].mxu0
    %2092 = vdwg.mxu0
    %v2094 = vsel %vm44, %v2009, 0
    %2096 = vmatprep.subr.mxu0 0.0
    %2097 = vmatpush1.msra.mxu0 %v2011
    %2098 = vmatprep.subr.mxu0 0.0
    %2099 = vmatpush1.msra.mxu0 %v2012
    %2100 = vmatprep.subr.mxu0 0.0
    %2101 = vmatpush1.msra.mxu0 %v2013
    %2102 = vmatprep.subr.mxu0 0.0
    %2103 = vmatpush1.msra.mxu0 %v2014
    %2104 = vmatprep.subr.mxu0 0.0
    %2105 = vmatpush1.msra.mxu0 0.0
    %2106 = vmatprep.subr.mxu0 0.0
    %2107 = vmatpush1.msra.mxu0 0.0
    %2108 = vmatprep.subr.mxu0 0.0
    %2109 = vmatpush1.msra.mxu0 0.0
    %2110 = vmatprep.subr.mxu0 0.0
    %2111 = vmatpush1.msra.mxu0 0.0
    %2112 = vmatprep.subr.mxu0 0.0
    %2113 = vmatpush1.msra.mxu0 0.0
    %2114 = vmatprep.subr.mxu0 0.0
    %2115 = vmatpush1.msra.mxu0 0.0
    %2116 = vmatprep.subr.mxu0 0.0
    %2117 = vmatpush1.msra.mxu0 0.0
    %2118 = vmatprep.subr.mxu0 0.0
    %2119 = vmatpush1.msra.mxu0 0.0
    %2120 = vmatprep.subr.mxu0 0.0
    %2121 = vmatpush1.msra.mxu0 0.0
    %2122 = vmatprep.subr.mxu0 0.0
    %2123 = vmatpush1.msra.mxu0 0.0
    %2124 = vmatprep.subr.mxu0 0.0
    %2125 = vmatpush1.msra.mxu0 0.0
    %2126 = vmatprep.subr.mxu0 0.0
    %2127 = vmatpush1.msra.mxu0 0.0
    %2128 = vmatprep.subr.mxu0 0.0
    %2129 = vmatpush1.msra.mxu0 0.0
    %2130 = vmatprep.subr.mxu0 0.0
    %2131 = vmatpush1.msra.mxu0 0.0
    %2132 = vmatprep.subr.mxu0 0.0
    %2133 = vmatpush1.msra.mxu0 0.0
    %2134 = vmatprep.subr.mxu0 0.0
    %2135 = vmatpush1.msra.mxu0 0.0
    %2136 = vmatprep.subr.mxu0 0.0
    %2137 = vmatpush1.msra.mxu0 0.0
    %2138 = vmatprep.subr.mxu0 0.0
    %2139 = vmatpush1.msra.mxu0 0.0
    %2140 = vmatprep.subr.mxu0 0.0
    %2141 = vmatpush1.msra.mxu0 0.0
    %2142 = vmatprep.subr.mxu0 0.0
    %2143 = vmatpush1.msra.mxu0 0.0
    %2144 = vmatprep.subr.mxu0 0.0
    %2145 = vmatpush1.msra.mxu0 0.0
    %2146 = vmatprep.subr.mxu0 0.0
    %2147 = vmatpush1.msra.mxu0 0.0
    %2148 = vmatprep.subr.mxu0 0.0
    %2149 = vmatpush1.msra.mxu0 0.0
    %2150 = vmatprep.subr.mxu0 0.0
    %2151 = vmatpush1.msra.mxu0 0.0
    %2152 = vmatprep.subr.mxu0 0.0
    %2153 = vmatpush1.msra.mxu0 0.0
    %2154 = vmatprep.subr.mxu0 0.0
    %2155 = vmatpush1.msra.mxu0 0.0
    %2156 = vmatprep.subr.mxu0 0.0
    %2157 = vmatpush1.msra.mxu0 0.0
    %2158 = vmatprep.subr.mxu0 0.0
    %2159 = vmatpush1.msra.mxu0 0.0
    %2160 = vmatprep.mubr.f32.mxu0 0.0
    %2161 = vmatmul.mubr.f32.gmra.mrb[0].mxu0 %v2094
    %v2162 = vpop.f32.mrb[0].mxu0
    %v2163 = vadd.f32 %v2090, %v2162
    %v2164 = vpop.f32.mrb[0].mxu0
    %2165 = vdwg.mxu0
    %v2166 = vld [vmem:[%s364] sm:$0x1]
    %v2168 = vlaneseq
    %v2169 = vshrl.u32 %v2168, 7
    %v2170 = vsub.s32 0, %v2169
    %v2171 = vrot.slane %v2166, %v2170
    %v2173 = vadd.f32 %v2163, %v2171
    %v2174 = vtanh.pop %v2173
    %2175 = vst.msk [vmem:[%s211] sm:$0x3] %vm205, %v2174
    %v2178 = vunpack.c.l.s4 1966171168
    %v2179 = vunpack.c.0.s8 %v2178
    %v2180 = vlaneseq
    %v2181 = vshrl.u32 %v2180, 7
    %v2182 = vsub.s32 %v2179, %v2181
    %v2183 = vrot.slane %v2174, %v2182
    %v2184 = vcombine.high %v2183, %v2183
    %v2186 = vunpack.c.l.s4 1966171168
    %v2187 = vunpack.c.0.s8 %v2186
    %v2188 = vlaneseq
    %v2189 = vshrl.u32 %v2188, 7
    %v2190 = vsub.s32 %v2187, %v2189
    %v2191 = vrot.slane %v2183, %v2190
    %v2193 = vunpack.c.l.s4 1966171168
    %v2194 = vunpack.c.0.s8 %v2193
    %v2195 = vlaneseq
    %v2196 = vshrl.u32 %v2195, 7
    %v2197 = vsub.s32 %v2194, %v2196
    %v2198 = vrot.slane %v2184, %v2197
    %2201 = vst.msk [vmem:[%s6 + $0x5] sm:$0x1] %vm400, %v2191
    %2202 = vst.msk [vmem:[%s6 + $0xd] sm:$0x1] %vm400, %v2198
    %v2203 = vld [vmem:[%s0 + $0x6] sm:$0x1]
    %v2204 = vld [vmem:[%s0 + $0xe] sm:$0x1]
    %v2205 = vld [vmem:[%s2] sm:$0xff]
    %v2206 = vld [vmem:[%s2 + $0x8] sm:$0xff]
    %v2207 = vld [vmem:[#allocation2] sm:$0x3]
    %v2208 = vld [vmem:[%s4] sm:$0xff]
    %v2209 = vld [vmem:[%s4 + $0x8] sm:$0xff]
    %v2210 = vld [vmem:[%s4 + $0x10] sm:$0xff]
    %v2211 = vld [vmem:[%s4 + $0x18] sm:$0xff]
    %v2213 = vsel %vm44, %v2207, 0
    %2215 = vmatprep.subr.mxu0 0.0
    %2216 = vmatpush1.msra.mxu0 %v2208
    %2217 = vmatprep.subr.mxu0 0.0
    %2218 = vmatpush1.msra.mxu0 %v2209
    %2219 = vmatprep.subr.mxu0 0.0
    %2220 = vmatpush1.msra.mxu0 %v2210
    %2221 = vmatprep.subr.mxu0 0.0
    %2222 = vmatpush1.msra.mxu0 %v2211
    %2223 = vmatprep.subr.mxu0 0.0
    %2224 = vmatpush1.msra.mxu0 0.0
    %2225 = vmatprep.subr.mxu0 0.0
    %2226 = vmatpush1.msra.mxu0 0.0
    %2227 = vmatprep.subr.mxu0 0.0
    %2228 = vmatpush1.msra.mxu0 0.0
    %2229 = vmatprep.subr.mxu0 0.0
    %2230 = vmatpush1.msra.mxu0 0.0
    %2231 = vmatprep.subr.mxu0 0.0
    %2232 = vmatpush1.msra.mxu0 0.0
    %2233 = vmatprep.subr.mxu0 0.0
    %2234 = vmatpush1.msra.mxu0 0.0
    %2235 = vmatprep.subr.mxu0 0.0
    %2236 = vmatpush1.msra.mxu0 0.0
    %2237 = vmatprep.subr.mxu0 0.0
    %2238 = vmatpush1.msra.mxu0 0.0
    %2239 = vmatprep.subr.mxu0 0.0
    %2240 = vmatpush1.msra.mxu0 0.0
    %2241 = vmatprep.subr.mxu0 0.0
    %2242 = vmatpush1.msra.mxu0 0.0
    %2243 = vmatprep.subr.mxu0 0.0
    %2244 = vmatpush1.msra.mxu0 0.0
    %2245 = vmatprep.subr.mxu0 0.0
    %2246 = vmatpush1.msra.mxu0 0.0
    %2247 = vmatprep.subr.mxu0 0.0
    %2248 = vmatpush1.msra.mxu0 0.0
    %2249 = vmatprep.subr.mxu0 0.0
    %2250 = vmatpush1.msra.mxu0 0.0
    %2251 = vmatprep.subr.mxu0 0.0
    %2252 = vmatpush1.msra.mxu0 0.0
    %2253 = vmatprep.subr.mxu0 0.0
    %2254 = vmatpush1.msra.mxu0 0.0
    %2255 = vmatprep.subr.mxu0 0.0
    %2256 = vmatpush1.msra.mxu0 0.0
    %2257 = vmatprep.subr.mxu0 0.0
    %2258 = vmatpush1.msra.mxu0 0.0
    %2259 = vmatprep.subr.mxu0 0.0
    %2260 = vmatpush1.msra.mxu0 0.0
    %2261 = vmatprep.subr.mxu0 0.0
    %2262 = vmatpush1.msra.mxu0 0.0
    %2263 = vmatprep.subr.mxu0 0.0
    %2264 = vmatpush1.msra.mxu0 0.0
    %2265 = vmatprep.subr.mxu0 0.0
    %2266 = vmatpush1.msra.mxu0 0.0
    %2267 = vmatprep.subr.mxu0 0.0
    %2268 = vmatpush1.msra.mxu0 0.0
    %2269 = vmatprep.subr.mxu0 0.0
    %2270 = vmatpush1.msra.mxu0 0.0
    %2271 = vmatprep.subr.mxu0 0.0
    %2272 = vmatpush1.msra.mxu0 0.0
    %2273 = vmatprep.subr.mxu0 0.0
    %2274 = vmatpush1.msra.mxu0 0.0
    %2275 = vmatprep.subr.mxu0 0.0
    %2276 = vmatpush1.msra.mxu0 0.0
    %2277 = vmatprep.subr.mxu0 0.0
    %2278 = vmatpush1.msra.mxu0 0.0
    %2279 = vmatprep.mubr.f32.mxu0 0.0
    %2280 = vmatmul.mubr.f32.gmra.mrb[0].mxu0 %v2213
    %v2281 = vpop.f32.mrb[0].mxu0
    %v2282 = vadd.f32 0.0, %v2281
    %v2283 = vpop.f32.mrb[0].mxu0
    %2284 = vdwg.mxu0
    %v2287 = vrot.slane %v2204, 7
    %v2288 = vsel %vm121, %v2287, %v2203
    %v2289 = vsel %vm123, %v2288, 0
    %2291 = vmatprep.subr.mxu0 0.0
    %2292 = vmatpush1.msra.mxu0 %v2205
    %2293 = vmatprep.subr.mxu0 0.0
    %2294 = vmatpush1.msra.mxu0 %v2206
    %2295 = vmatprep.subr.mxu0 0.0
    %2296 = vmatpush1.msra.mxu0 0.0
    %2297 = vmatprep.subr.mxu0 0.0
    %2298 = vmatpush1.msra.mxu0 0.0
    %2299 = vmatprep.subr.mxu0 0.0
    %2300 = vmatpush1.msra.mxu0 0.0
    %2301 = vmatprep.subr.mxu0 0.0
    %2302 = vmatpush1.msra.mxu0 0.0
    %2303 = vmatprep.subr.mxu0 0.0
    %2304 = vmatpush1.msra.mxu0 0.0
    %2305 = vmatprep.subr.mxu0 0.0
    %2306 = vmatpush1.msra.mxu0 0.0
    %2307 = vmatprep.subr.mxu0 0.0
    %2308 = vmatpush1.msra.mxu0 0.0
    %2309 = vmatprep.subr.mxu0 0.0
    %2310 = vmatpush1.msra.mxu0 0.0
    %2311 = vmatprep.subr.mxu0 0.0
    %2312 = vmatpush1.msra.mxu0 0.0
    %2313 = vmatprep.subr.mxu0 0.0
    %2314 = vmatpush1.msra.mxu0 0.0
    %2315 = vmatprep.subr.mxu0 0.0
    %2316 = vmatpush1.msra.mxu0 0.0
    %2317 = vmatprep.subr.mxu0 0.0
    %2318 = vmatpush1.msra.mxu0 0.0
    %2319 = vmatprep.subr.mxu0 0.0
    %2320 = vmatpush1.msra.mxu0 0.0
    %2321 = vmatprep.subr.mxu0 0.0
    %2322 = vmatpush1.msra.mxu0 0.0
    %2323 = vmatprep.subr.mxu0 0.0
    %2324 = vmatpush1.msra.mxu0 0.0
    %2325 = vmatprep.subr.mxu0 0.0
    %2326 = vmatpush1.msra.mxu0 0.0
    %2327 = vmatprep.subr.mxu0 0.0
    %2328 = vmatpush1.msra.mxu0 0.0
    %2329 = vmatprep.subr.mxu0 0.0
    %2330 = vmatpush1.msra.mxu0 0.0
    %2331 = vmatprep.subr.mxu0 0.0
    %2332 = vmatpush1.msra.mxu0 0.0
    %2333 = vmatprep.subr.mxu0 0.0
    %2334 = vmatpush1.msra.mxu0 0.0
    %2335 = vmatprep.subr.mxu0 0.0
    %2336 = vmatpush1.msra.mxu0 0.0
    %2337 = vmatprep.subr.mxu0 0.0
    %2338 = vmatpush1.msra.mxu0 0.0
    %2339 = vmatprep.subr.mxu0 0.0
    %2340 = vmatpush1.msra.mxu0 0.0
    %2341 = vmatprep.subr.mxu0 0.0
    %2342 = vmatpush1.msra.mxu0 0.0
    %2343 = vmatprep.subr.mxu0 0.0
    %2344 = vmatpush1.msra.mxu0 0.0
    %2345 = vmatprep.subr.mxu0 0.0
    %2346 = vmatpush1.msra.mxu0 0.0
    %2347 = vmatprep.subr.mxu0 0.0
    %2348 = vmatpush1.msra.mxu0 0.0
    %2349 = vmatprep.subr.mxu0 0.0
    %2350 = vmatpush1.msra.mxu0 0.0
    %2351 = vmatprep.subr.mxu0 0.0
    %2352 = vmatpush1.msra.mxu0 0.0
    %2353 = vmatprep.subr.mxu0 0.0
    %2354 = vmatpush1.msra.mxu0 0.0
    %2355 = vmatprep.mubr.f32.mxu0 0.0
    %2356 = vmatmul.mubr.f32.gmra.mrb[0].mxu0 %v2289
    %v2357 = vpop.f32.mrb[0].mxu0
    %v2358 = vadd.f32 %v2282, %v2357
    %v2359 = vpop.f32.mrb[0].mxu0
    %2360 = vdwg.mxu0
    %v2361 = vld [vmem:[%s5] sm:$0x1]
    %v2363 = vlaneseq
    %v2364 = vshrl.u32 %v2363, 7
    %v2365 = vsub.s32 0, %v2364
    %v2366 = vrot.slane %v2361, %v2365
    %v2368 = vadd.f32 %v2358, %v2366
    %v2369 = vtanh.pop %v2368
    %2370 = vst.msk [vmem:[#allocation2] sm:$0x3] %vm205, %v2369
    %v2371 = vld [vmem:[%s3] sm:$0xff]
    %v2372 = vld [vmem:[%s3 + $0x8] sm:$0xff]
    %v2373 = vld [vmem:[%s3 + $0x10] sm:$0xff]
    %v2374 = vld [vmem:[%s3 + $0x18] sm:$0xff]
    %v2375 = vld [vmem:[%s211] sm:$0x3]
    %v2376 = vld [vmem:[%s213] sm:$0xff]
    %v2377 = vld [vmem:[%s213 + $0x8] sm:$0xff]
    %v2378 = vld [vmem:[%s213 + $0x10] sm:$0xff]
    %v2379 = vld [vmem:[%s213 + $0x18] sm:$0xff]
    %v2381 = vsel %vm44, %v2375, 0
    %2383 = vmatprep.subr.mxu0 0.0
    %2384 = vmatpush1.msra.mxu0 %v2376
    %2385 = vmatprep.subr.mxu0 0.0
    %2386 = vmatpush1.msra.mxu0 %v2377
    %2387 = vmatprep.subr.mxu0 0.0
    %2388 = vmatpush1.msra.mxu0 %v2378
    %2389 = vmatprep.subr.mxu0 0.0
    %2390 = vmatpush1.msra.mxu0 %v2379
    %2391 = vmatprep.subr.mxu0 0.0
    %2392 = vmatpush1.msra.mxu0 0.0
    %2393 = vmatprep.subr.mxu0 0.0
    %2394 = vmatpush1.msra.mxu0 0.0
    %2395 = vmatprep.subr.mxu0 0.0
    %2396 = vmatpush1.msra.mxu0 0.0
    %2397 = vmatprep.subr.mxu0 0.0
    %2398 = vmatpush1.msra.mxu0 0.0
    %2399 = vmatprep.subr.mxu0 0.0
    %2400 = vmatpush1.msra.mxu0 0.0
    %2401 = vmatprep.subr.mxu0 0.0
    %2402 = vmatpush1.msra.mxu0 0.0
    %2403 = vmatprep.subr.mxu0 0.0
    %2404 = vmatpush1.msra.mxu0 0.0
    %2405 = vmatprep.subr.mxu0 0.0
    %2406 = vmatpush1.msra.mxu0 0.0
    %2407 = vmatprep.subr.mxu0 0.0
    %2408 = vmatpush1.msra.mxu0 0.0
    %2409 = vmatprep.subr.mxu0 0.0
    %2410 = vmatpush1.msra.mxu0 0.0
    %2411 = vmatprep.subr.mxu0 0.0
    %2412 = vmatpush1.msra.mxu0 0.0
    %2413 = vmatprep.subr.mxu0 0.0
    %2414 = vmatpush1.msra.mxu0 0.0
    %2415 = vmatprep.subr.mxu0 0.0
    %2416 = vmatpush1.msra.mxu0 0.0
    %2417 = vmatprep.subr.mxu0 0.0
    %2418 = vmatpush1.msra.mxu0 0.0
    %2419 = vmatprep.subr.mxu0 0.0
    %2420 = vmatpush1.msra.mxu0 0.0
    %2421 = vmatprep.subr.mxu0 0.0
    %2422 = vmatpush1.msra.mxu0 0.0
    %2423 = vmatprep.subr.mxu0 0.0
    %2424 = vmatpush1.msra.mxu0 0.0
    %2425 = vmatprep.subr.mxu0 0.0
    %2426 = vmatpush1.msra.mxu0 0.0
    %2427 = vmatprep.subr.mxu0 0.0
    %2428 = vmatpush1.msra.mxu0 0.0
    %2429 = vmatprep.subr.mxu0 0.0
    %2430 = vmatpush1.msra.mxu0 0.0
    %2431 = vmatprep.subr.mxu0 0.0
    %2432 = vmatpush1.msra.mxu0 0.0
    %2433 = vmatprep.subr.mxu0 0.0
    %2434 = vmatpush1.msra.mxu0 0.0
    %2435 = vmatprep.subr.mxu0 0.0
    %2436 = vmatpush1.msra.mxu0 0.0
    %2437 = vmatprep.subr.mxu0 0.0
    %2438 = vmatpush1.msra.mxu0 0.0
    %2439 = vmatprep.subr.mxu0 0.0
    %2440 = vmatpush1.msra.mxu0 0.0
    %2441 = vmatprep.subr.mxu0 0.0
    %2442 = vmatpush1.msra.mxu0 0.0
    %2443 = vmatprep.subr.mxu0 0.0
    %2444 = vmatpush1.msra.mxu0 0.0
    %2445 = vmatprep.subr.mxu0 0.0
    %2446 = vmatpush1.msra.mxu0 0.0
    %2447 = vmatprep.mubr.f32.mxu0 0.0
    %2448 = vmatmul.mubr.f32.gmra.mrb[0].mxu0 %v2381
    %v2449 = vpop.f32.mrb[0].mxu0
    %v2450 = vadd.f32 0.0, %v2449
    %v2451 = vpop.f32.mrb[0].mxu0
    %2452 = vdwg.mxu0
    %v2454 = vsel %vm44, %v2369, 0
    %2456 = vmatprep.subr.mxu0 0.0
    %2457 = vmatpush1.msra.mxu0 %v2371
    %2458 = vmatprep.subr.mxu0 0.0
    %2459 = vmatpush1.msra.mxu0 %v2372
    %2460 = vmatprep.subr.mxu0 0.0
    %2461 = vmatpush1.msra.mxu0 %v2373
    %2462 = vmatprep.subr.mxu0 0.0
    %2463 = vmatpush1.msra.mxu0 %v2374
    %2464 = vmatprep.subr.mxu0 0.0
    %2465 = vmatpush1.msra.mxu0 0.0
    %2466 = vmatprep.subr.mxu0 0.0
    %2467 = vmatpush1.msra.mxu0 0.0
    %2468 = vmatprep.subr.mxu0 0.0
    %2469 = vmatpush1.msra.mxu0 0.0
    %2470 = vmatprep.subr.mxu0 0.0
    %2471 = vmatpush1.msra.mxu0 0.0
    %2472 = vmatprep.subr.mxu0 0.0
    %2473 = vmatpush1.msra.mxu0 0.0
    %2474 = vmatprep.subr.mxu0 0.0
    %2475 = vmatpush1.msra.mxu0 0.0
    %2476 = vmatprep.subr.mxu0 0.0
    %2477 = vmatpush1.msra.mxu0 0.0
    %2478 = vmatprep.subr.mxu0 0.0
    %2479 = vmatpush1.msra.mxu0 0.0
    %2480 = vmatprep.subr.mxu0 0.0
    %2481 = vmatpush1.msra.mxu0 0.0
    %2482 = vmatprep.subr.mxu0 0.0
    %2483 = vmatpush1.msra.mxu0 0.0
    %2484 = vmatprep.subr.mxu0 0.0
    %2485 = vmatpush1.msra.mxu0 0.0
    %2486 = vmatprep.subr.mxu0 0.0
    %2487 = vmatpush1.msra.mxu0 0.0
    %2488 = vmatprep.subr.mxu0 0.0
    %2489 = vmatpush1.msra.mxu0 0.0
    %2490 = vmatprep.subr.mxu0 0.0
    %2491 = vmatpush1.msra.mxu0 0.0
    %2492 = vmatprep.subr.mxu0 0.0
    %2493 = vmatpush1.msra.mxu0 0.0
    %2494 = vmatprep.subr.mxu0 0.0
    %2495 = vmatpush1.msra.mxu0 0.0
    %2496 = vmatprep.subr.mxu0 0.0
    %2497 = vmatpush1.msra.mxu0 0.0
    %2498 = vmatprep.subr.mxu0 0.0
    %2499 = vmatpush1.msra.mxu0 0.0
    %2500 = vmatprep.subr.mxu0 0.0
    %2501 = vmatpush1.msra.mxu0 0.0
    %2502 = vmatprep.subr.mxu0 0.0
    %2503 = vmatpush1.msra.mxu0 0.0
    %2504 = vmatprep.subr.mxu0 0.0
    %2505 = vmatpush1.msra.mxu0 0.0
    %2506 = vmatprep.subr.mxu0 0.0
    %2507 = vmatpush1.msra.mxu0 0.0
    %2508 = vmatprep.subr.mxu0 0.0
    %2509 = vmatpush1.msra.mxu0 0.0
    %2510 = vmatprep.subr.mxu0 0.0
    %2511 = vmatpush1.msra.mxu0 0.0
    %2512 = vmatprep.subr.mxu0 0.0
    %2513 = vmatpush1.msra.mxu0 0.0
    %2514 = vmatprep.subr.mxu0 0.0
    %2515 = vmatpush1.msra.mxu0 0.0
    %2516 = vmatprep.subr.mxu0 0.0
    %2517 = vmatpush1.msra.mxu0 0.0
    %2518 = vmatprep.subr.mxu0 0.0
    %2519 = vmatpush1.msra.mxu0 0.0
    %2520 = vmatprep.mubr.f32.mxu0 0.0
    %2521 = vmatmul.mubr.f32.gmra.mrb[0].mxu0 %v2454
    %v2522 = vpop.f32.mrb[0].mxu0
    %v2523 = vadd.f32 %v2450, %v2522
    %v2524 = vpop.f32.mrb[0].mxu0
    %2525 = vdwg.mxu0
    %v2526 = vld [vmem:[%s364] sm:$0x1]
    %v2528 = vlaneseq
    %v2529 = vshrl.u32 %v2528, 7
    %v2530 = vsub.s32 0, %v2529
    %v2531 = vrot.slane %v2526, %v2530
    %v2533 = vadd.f32 %v2523, %v2531
    %v2534 = vtanh.pop %v2533
    %2535 = vst.msk [vmem:[%s211] sm:$0x3] %vm205, %v2534
    %v2538 = vunpack.c.l.s4 1966171168
    %v2539 = vunpack.c.0.s8 %v2538
    %v2540 = vlaneseq
    %v2541 = vshrl.u32 %v2540, 7
    %v2542 = vsub.s32 %v2539, %v2541
    %v2543 = vrot.slane %v2534, %v2542
    %v2544 = vcombine.high %v2543, %v2543
    %v2546 = vunpack.c.l.s4 1966171168
    %v2547 = vunpack.c.0.s8 %v2546
    %v2548 = vlaneseq
    %v2549 = vshrl.u32 %v2548, 7
    %v2550 = vsub.s32 %v2547, %v2549
    %v2551 = vrot.slane %v2543, %v2550
    %v2553 = vunpack.c.l.s4 1966171168
    %v2554 = vunpack.c.0.s8 %v2553
    %v2555 = vlaneseq
    %v2556 = vshrl.u32 %v2555, 7
    %v2557 = vsub.s32 %v2554, %v2556
    %v2558 = vrot.slane %v2544, %v2557
    %2561 = vst.msk [vmem:[%s6 + $0x6] sm:$0x1] %vm400, %v2551
    %2562 = vst.msk [vmem:[%s6 + $0xe] sm:$0x1] %vm400, %v2558
    %v2563 = vld [vmem:[%s0 + $0x7] sm:$0x1]
    %v2564 = vld [vmem:[%s0 + $0xf] sm:$0x1]
    %v2565 = vld [vmem:[%s2] sm:$0xff]
    %v2566 = vld [vmem:[%s2 + $0x8] sm:$0xff]
    %v2567 = vld [vmem:[#allocation2] sm:$0x3]
    %v2568 = vld [vmem:[%s4] sm:$0xff]
    %v2569 = vld [vmem:[%s4 + $0x8] sm:$0xff]
    %v2570 = vld [vmem:[%s4 + $0x10] sm:$0xff]
    %v2571 = vld [vmem:[%s4 + $0x18] sm:$0xff]
    %v2573 = vsel %vm44, %v2567, 0
    %2575 = vmatprep.subr.mxu0 0.0
    %2576 = vmatpush1.msra.mxu0 %v2568
    %2577 = vmatprep.subr.mxu0 0.0
    %2578 = vmatpush1.msra.mxu0 %v2569
    %2579 = vmatprep.subr.mxu0 0.0
    %2580 = vmatpush1.msra.mxu0 %v2570
    %2581 = vmatprep.subr.mxu0 0.0
    %2582 = vmatpush1.msra.mxu0 %v2571
    %2583 = vmatprep.subr.mxu0 0.0
    %2584 = vmatpush1.msra.mxu0 0.0
    %2585 = vmatprep.subr.mxu0 0.0
    %2586 = vmatpush1.msra.mxu0 0.0
    %2587 = vmatprep.subr.mxu0 0.0
    %2588 = vmatpush1.msra.mxu0 0.0
    %2589 = vmatprep.subr.mxu0 0.0
    %2590 = vmatpush1.msra.mxu0 0.0
    %2591 = vmatprep.subr.mxu0 0.0
    %2592 = vmatpush1.msra.mxu0 0.0
    %2593 = vmatprep.subr.mxu0 0.0
    %2594 = vmatpush1.msra.mxu0 0.0
    %2595 = vmatprep.subr.mxu0 0.0
    %2596 = vmatpush1.msra.mxu0 0.0
    %2597 = vmatprep.subr.mxu0 0.0
    %2598 = vmatpush1.msra.mxu0 0.0
    %2599 = vmatprep.subr.mxu0 0.0
    %2600 = vmatpush1.msra.mxu0 0.0
    %2601 = vmatprep.subr.mxu0 0.0
    %2602 = vmatpush1.msra.mxu0 0.0
    %2603 = vmatprep.subr.mxu0 0.0
    %2604 = vmatpush1.msra.mxu0 0.0
    %2605 = vmatprep.subr.mxu0 0.0
    %2606 = vmatpush1.msra.mxu0 0.0
    %2607 = vmatprep.subr.mxu0 0.0
    %2608 = vmatpush1.msra.mxu0 0.0
    %2609 = vmatprep.subr.mxu0 0.0
    %2610 = vmatpush1.msra.mxu0 0.0
    %2611 = vmatprep.subr.mxu0 0.0
    %2612 = vmatpush1.msra.mxu0 0.0
    %2613 = vmatprep.subr.mxu0 0.0
    %2614 = vmatpush1.msra.mxu0 0.0
    %2615 = vmatprep.subr.mxu0 0.0
    %2616 = vmatpush1.msra.mxu0 0.0
    %2617 = vmatprep.subr.mxu0 0.0
    %2618 = vmatpush1.msra.mxu0 0.0
    %2619 = vmatprep.subr.mxu0 0.0
    %2620 = vmatpush1.msra.mxu0 0.0
    %2621 = vmatprep.subr.mxu0 0.0
    %2622 = vmatpush1.msra.mxu0 0.0
    %2623 = vmatprep.subr.mxu0 0.0
    %2624 = vmatpush1.msra.mxu0 0.0
    %2625 = vmatprep.subr.mxu0 0.0
    %2626 = vmatpush1.msra.mxu0 0.0
    %2627 = vmatprep.subr.mxu0 0.0
    %2628 = vmatpush1.msra.mxu0 0.0
    %2629 = vmatprep.subr.mxu0 0.0
    %2630 = vmatpush1.msra.mxu0 0.0
    %2631 = vmatprep.subr.mxu0 0.0
    %2632 = vmatpush1.msra.mxu0 0.0
    %2633 = vmatprep.subr.mxu0 0.0
    %2634 = vmatpush1.msra.mxu0 0.0
    %2635 = vmatprep.subr.mxu0 0.0
    %2636 = vmatpush1.msra.mxu0 0.0
    %2637 = vmatprep.subr.mxu0 0.0
    %2638 = vmatpush1.msra.mxu0 0.0
    %2639 = vmatprep.mubr.f32.mxu0 0.0
    %2640 = vmatmul.mubr.f32.gmra.mrb[0].mxu0 %v2573
    %v2641 = vpop.f32.mrb[0].mxu0
    %v2642 = vadd.f32 0.0, %v2641
    %v2643 = vpop.f32.mrb[0].mxu0
    %2644 = vdwg.mxu0
    %v2647 = vrot.slane %v2564, 7
    %v2648 = vsel %vm121, %v2647, %v2563
    %v2649 = vsel %vm123, %v2648, 0
    %2651 = vmatprep.subr.mxu0 0.0
    %2652 = vmatpush1.msra.mxu0 %v2565
    %2653 = vmatprep.subr.mxu0 0.0
    %2654 = vmatpush1.msra.mxu0 %v2566
    %2655 = vmatprep.subr.mxu0 0.0
    %2656 = vmatpush1.msra.mxu0 0.0
    %2657 = vmatprep.subr.mxu0 0.0
    %2658 = vmatpush1.msra.mxu0 0.0
    %2659 = vmatprep.subr.mxu0 0.0
    %2660 = vmatpush1.msra.mxu0 0.0
    %2661 = vmatprep.subr.mxu0 0.0
    %2662 = vmatpush1.msra.mxu0 0.0
    %2663 = vmatprep.subr.mxu0 0.0
    %2664 = vmatpush1.msra.mxu0 0.0
    %2665 = vmatprep.subr.mxu0 0.0
    %2666 = vmatpush1.msra.mxu0 0.0
    %2667 = vmatprep.subr.mxu0 0.0
    %2668 = vmatpush1.msra.mxu0 0.0
    %2669 = vmatprep.subr.mxu0 0.0
    %2670 = vmatpush1.msra.mxu0 0.0
    %2671 = vmatprep.subr.mxu0 0.0
    %2672 = vmatpush1.msra.mxu0 0.0
    %2673 = vmatprep.subr.mxu0 0.0
    %2674 = vmatpush1.msra.mxu0 0.0
    %2675 = vmatprep.subr.mxu0 0.0
    %2676 = vmatpush1.msra.mxu0 0.0
    %2677 = vmatprep.subr.mxu0 0.0
    %2678 = vmatpush1.msra.mxu0 0.0
    %2679 = vmatprep.subr.mxu0 0.0
    %2680 = vmatpush1.msra.mxu0 0.0
    %2681 = vmatprep.subr.mxu0 0.0
    %2682 = vmatpush1.msra.mxu0 0.0
    %2683 = vmatprep.subr.mxu0 0.0
    %2684 = vmatpush1.msra.mxu0 0.0
    %2685 = vmatprep.subr.mxu0 0.0
    %2686 = vmatpush1.msra.mxu0 0.0
    %2687 = vmatprep.subr.mxu0 0.0
    %2688 = vmatpush1.msra.mxu0 0.0
    %2689 = vmatprep.subr.mxu0 0.0
    %2690 = vmatpush1.msra.mxu0 0.0
    %2691 = vmatprep.subr.mxu0 0.0
    %2692 = vmatpush1.msra.mxu0 0.0
    %2693 = vmatprep.subr.mxu0 0.0
    %2694 = vmatpush1.msra.mxu0 0.0
    %2695 = vmatprep.subr.mxu0 0.0
    %2696 = vmatpush1.msra.mxu0 0.0
    %2697 = vmatprep.subr.mxu0 0.0
    %2698 = vmatpush1.msra.mxu0 0.0
    %2699 = vmatprep.subr.mxu0 0.0
    %2700 = vmatpush1.msra.mxu0 0.0
    %2701 = vmatprep.subr.mxu0 0.0
    %2702 = vmatpush1.msra.mxu0 0.0
    %2703 = vmatprep.subr.mxu0 0.0
    %2704 = vmatpush1.msra.mxu0 0.0
    %2705 = vmatprep.subr.mxu0 0.0
    %2706 = vmatpush1.msra.mxu0 0.0
    %2707 = vmatprep.subr.mxu0 0.0
    %2708 = vmatpush1.msra.mxu0 0.0
    %2709 = vmatprep.subr.mxu0 0.0
    %2710 = vmatpush1.msra.mxu0 0.0
    %2711 = vmatprep.subr.mxu0 0.0
    %2712 = vmatpush1.msra.mxu0 0.0
    %2713 = vmatprep.subr.mxu0 0.0
    %2714 = vmatpush1.msra.mxu0 0.0
    %2715 = vmatprep.mubr.f32.mxu0 0.0
    %2716 = vmatmul.mubr.f32.gmra.mrb[0].mxu0 %v2649
    %v2717 = vpop.f32.mrb[0].mxu0
    %v2718 = vadd.f32 %v2642, %v2717
    %v2719 = vpop.f32.mrb[0].mxu0
    %2720 = vdwg.mxu0
    %v2721 = vld [vmem:[%s5] sm:$0x1]
    %v2723 = vlaneseq
    %v2724 = vshrl.u32 %v2723, 7
    %v2725 = vsub.s32 0, %v2724
    %v2726 = vrot.slane %v2721, %v2725
    %v2728 = vadd.f32 %v2718, %v2726
    %v2729 = vtanh.pop %v2728
    %2730 = vst.msk [vmem:[#allocation2] sm:$0x3] %vm205, %v2729
    %v2731 = vld [vmem:[%s3] sm:$0xff]
    %v2732 = vld [vmem:[%s3 + $0x8] sm:$0xff]
    %v2733 = vld [vmem:[%s3 + $0x10] sm:$0xff]
    %v2734 = vld [vmem:[%s3 + $0x18] sm:$0xff]
    %v2735 = vld [vmem:[%s211] sm:$0x3]
    %v2736 = vld [vmem:[%s213] sm:$0xff]
    %v2737 = vld [vmem:[%s213 + $0x8] sm:$0xff]
    %v2738 = vld [vmem:[%s213 + $0x10] sm:$0xff]
    %v2739 = vld [vmem:[%s213 + $0x18] sm:$0xff]
    %v2741 = vsel %vm44, %v2735, 0
    %2743 = vmatprep.subr.mxu0 0.0
    %2744 = vmatpush1.msra.mxu0 %v2736
    %2745 = vmatprep.subr.mxu0 0.0
    %2746 = vmatpush1.msra.mxu0 %v2737
    %2747 = vmatprep.subr.mxu0 0.0
    %2748 = vmatpush1.msra.mxu0 %v2738
    %2749 = vmatprep.subr.mxu0 0.0
    %2750 = vmatpush1.msra.mxu0 %v2739
    %2751 = vmatprep.subr.mxu0 0.0
    %2752 = vmatpush1.msra.mxu0 0.0
    %2753 = vmatprep.subr.mxu0 0.0
    %2754 = vmatpush1.msra.mxu0 0.0
    %2755 = vmatprep.subr.mxu0 0.0
    %2756 = vmatpush1.msra.mxu0 0.0
    %2757 = vmatprep.subr.mxu0 0.0
    %2758 = vmatpush1.msra.mxu0 0.0
    %2759 = vmatprep.subr.mxu0 0.0
    %2760 = vmatpush1.msra.mxu0 0.0
    %2761 = vmatprep.subr.mxu0 0.0
    %2762 = vmatpush1.msra.mxu0 0.0
    %2763 = vmatprep.subr.mxu0 0.0
    %2764 = vmatpush1.msra.mxu0 0.0
    %2765 = vmatprep.subr.mxu0 0.0
    %2766 = vmatpush1.msra.mxu0 0.0
    %2767 = vmatprep.subr.mxu0 0.0
    %2768 = vmatpush1.msra.mxu0 0.0
    %2769 = vmatprep.subr.mxu0 0.0
    %2770 = vmatpush1.msra.mxu0 0.0
    %2771 = vmatprep.subr.mxu0 0.0
    %2772 = vmatpush1.msra.mxu0 0.0
    %2773 = vmatprep.subr.mxu0 0.0
    %2774 = vmatpush1.msra.mxu0 0.0
    %2775 = vmatprep.subr.mxu0 0.0
    %2776 = vmatpush1.msra.mxu0 0.0
    %2777 = vmatprep.subr.mxu0 0.0
    %2778 = vmatpush1.msra.mxu0 0.0
    %2779 = vmatprep.subr.mxu0 0.0
    %2780 = vmatpush1.msra.mxu0 0.0
    %2781 = vmatprep.subr.mxu0 0.0
    %2782 = vmatpush1.msra.mxu0 0.0
    %2783 = vmatprep.subr.mxu0 0.0
    %2784 = vmatpush1.msra.mxu0 0.0
    %2785 = vmatprep.subr.mxu0 0.0
    %2786 = vmatpush1.msra.mxu0 0.0
    %2787 = vmatprep.subr.mxu0 0.0
    %2788 = vmatpush1.msra.mxu0 0.0
    %2789 = vmatprep.subr.mxu0 0.0
    %2790 = vmatpush1.msra.mxu0 0.0
    %2791 = vmatprep.subr.mxu0 0.0
    %2792 = vmatpush1.msra.mxu0 0.0
    %2793 = vmatprep.subr.mxu0 0.0
    %2794 = vmatpush1.msra.mxu0 0.0
    %2795 = vmatprep.subr.mxu0 0.0
    %2796 = vmatpush1.msra.mxu0 0.0
    %2797 = vmatprep.subr.mxu0 0.0
    %2798 = vmatpush1.msra.mxu0 0.0
    %2799 = vmatprep.subr.mxu0 0.0
    %2800 = vmatpush1.msra.mxu0 0.0
    %2801 = vmatprep.subr.mxu0 0.0
    %2802 = vmatpush1.msra.mxu0 0.0
    %2803 = vmatprep.subr.mxu0 0.0
    %2804 = vmatpush1.msra.mxu0 0.0
    %2805 = vmatprep.subr.mxu0 0.0
    %2806 = vmatpush1.msra.mxu0 0.0
    %2807 = vmatprep.mubr.f32.mxu0 0.0
    %2808 = vmatmul.mubr.f32.gmra.mrb[0].mxu0 %v2741
    %v2809 = vpop.f32.mrb[0].mxu0
    %v2810 = vadd.f32 0.0, %v2809
    %v2811 = vpop.f32.mrb[0].mxu0
    %2812 = vdwg.mxu0
    %v2814 = vsel %vm44, %v2729, 0
    %2816 = vmatprep.subr.mxu0 0.0
    %2817 = vmatpush1.msra.mxu0 %v2731
    %2818 = vmatprep.subr.mxu0 0.0
    %2819 = vmatpush1.msra.mxu0 %v2732
    %2820 = vmatprep.subr.mxu0 0.0
    %2821 = vmatpush1.msra.mxu0 %v2733
    %2822 = vmatprep.subr.mxu0 0.0
    %2823 = vmatpush1.msra.mxu0 %v2734
    %2824 = vmatprep.subr.mxu0 0.0
    %2825 = vmatpush1.msra.mxu0 0.0
    %2826 = vmatprep.subr.mxu0 0.0
    %2827 = vmatpush1.msra.mxu0 0.0
    %2828 = vmatprep.subr.mxu0 0.0
    %2829 = vmatpush1.msra.mxu0 0.0
    %2830 = vmatprep.subr.mxu0 0.0
    %2831 = vmatpush1.msra.mxu0 0.0
    %2832 = vmatprep.subr.mxu0 0.0
    %2833 = vmatpush1.msra.mxu0 0.0
    %2834 = vmatprep.subr.mxu0 0.0
    %2835 = vmatpush1.msra.mxu0 0.0
    %2836 = vmatprep.subr.mxu0 0.0
    %2837 = vmatpush1.msra.mxu0 0.0
    %2838 = vmatprep.subr.mxu0 0.0
    %2839 = vmatpush1.msra.mxu0 0.0
    %2840 = vmatprep.subr.mxu0 0.0
    %2841 = vmatpush1.msra.mxu0 0.0
    %2842 = vmatprep.subr.mxu0 0.0
    %2843 = vmatpush1.msra.mxu0 0.0
    %2844 = vmatprep.subr.mxu0 0.0
    %2845 = vmatpush1.msra.mxu0 0.0
    %2846 = vmatprep.subr.mxu0 0.0
    %2847 = vmatpush1.msra.mxu0 0.0
    %2848 = vmatprep.subr.mxu0 0.0
    %2849 = vmatpush1.msra.mxu0 0.0
    %2850 = vmatprep.subr.mxu0 0.0
    %2851 = vmatpush1.msra.mxu0 0.0
    %2852 = vmatprep.subr.mxu0 0.0
    %2853 = vmatpush1.msra.mxu0 0.0
    %2854 = vmatprep.subr.mxu0 0.0
    %2855 = vmatpush1.msra.mxu0 0.0
    %2856 = vmatprep.subr.mxu0 0.0
    %2857 = vmatpush1.msra.mxu0 0.0
    %2858 = vmatprep.subr.mxu0 0.0
    %2859 = vmatpush1.msra.mxu0 0.0
    %2860 = vmatprep.subr.mxu0 0.0
    %2861 = vmatpush1.msra.mxu0 0.0
    %2862 = vmatprep.subr.mxu0 0.0
    %2863 = vmatpush1.msra.mxu0 0.0
    %2864 = vmatprep.subr.mxu0 0.0
    %2865 = vmatpush1.msra.mxu0 0.0
    %2866 = vmatprep.subr.mxu0 0.0
    %2867 = vmatpush1.msra.mxu0 0.0
    %2868 = vmatprep.subr.mxu0 0.0
    %2869 = vmatpush1.msra.mxu0 0.0
    %2870 = vmatprep.subr.mxu0 0.0
    %2871 = vmatpush1.msra.mxu0 0.0
    %2872 = vmatprep.subr.mxu0 0.0
    %2873 = vmatpush1.msra.mxu0 0.0
    %2874 = vmatprep.subr.mxu0 0.0
    %2875 = vmatpush1.msra.mxu0 0.0
    %2876 = vmatprep.subr.mxu0 0.0
    %2877 = vmatpush1.msra.mxu0 0.0
    %2878 = vmatprep.subr.mxu0 0.0
    %2879 = vmatpush1.msra.mxu0 0.0
    %2880 = vmatprep.mubr.f32.mxu0 0.0
    %2881 = vmatmul.mubr.f32.gmra.mrb[0].mxu0 %v2814
    %v2882 = vpop.f32.mrb[0].mxu0
    %v2883 = vadd.f32 %v2810, %v2882
    %v2884 = vpop.f32.mrb[0].mxu0
    %2885 = vdwg.mxu0
    %v2886 = vld [vmem:[%s364] sm:$0x1]
    %v2888 = vlaneseq
    %v2889 = vshrl.u32 %v2888, 7
    %v2890 = vsub.s32 0, %v2889
    %v2891 = vrot.slane %v2886, %v2890
    %v2893 = vadd.f32 %v2883, %v2891
    %v2894 = vtanh.pop %v2893
    %2895 = vst.msk [vmem:[%s211] sm:$0x3] %vm205, %v2894
    %v2898 = vunpack.c.l.s4 1966171168
    %v2899 = vunpack.c.0.s8 %v2898
    %v2900 = vlaneseq
    %v2901 = vshrl.u32 %v2900, 7
    %v2902 = vsub.s32 %v2899, %v2901
    %v2903 = vrot.slane %v2894, %v2902
    %v2904 = vcombine.high %v2903, %v2903
    %v2906 = vunpack.c.l.s4 1966171168
    %v2907 = vunpack.c.0.s8 %v2906
    %v2908 = vlaneseq
    %v2909 = vshrl.u32 %v2908, 7
    %v2910 = vsub.s32 %v2907, %v2909
    %v2911 = vrot.slane %v2903, %v2910
    %v2913 = vunpack.c.l.s4 1966171168
    %v2914 = vunpack.c.0.s8 %v2913
    %v2915 = vlaneseq
    %v2916 = vshrl.u32 %v2915, 7
    %v2917 = vsub.s32 %v2914, %v2916
    %v2918 = vrot.slane %v2904, %v2917
    %2921 = vst.msk [vmem:[%s6 + $0x7] sm:$0x1] %vm400, %v2911
    %2922 = vst.msk [vmem:[%s6 + $0xf] sm:$0x1] %vm400, %v2918
    // Predicated region
    $region30: #{_lambda_.2} parent=1 // pred_check
      _
    $region31: #{_lambda_.2} parent=1 // pred_check_branch
      %2924 = sbr.rel (0) target = $region33
    $region32: #{_lambda_.2} parent=1 // pred_region
      _
    $region33: #{_lambda_.2} parent=1 // pred_fallthru
      _
    // Predicated region
    $region34: #{_lambda_.2} parent=1 // pred_check
      _
    $region35: #{_lambda_.2} parent=1 // pred_check_branch
      %2926 = sbr.rel (0) target = $region37
    $region36: #{_lambda_.2} parent=1 // pred_region
      %s2928 = ssub.s32 64, 64
      %2929 = vsyncadd [#allocation3], %s2928
      %s2930 = sshll.u32 [#allocation2], 4
      %s2931 = int_to_ptr.vmem [resolvable:$true] %s2930
      %2936 = dma.vmem_to_hbm [thread:$0]  %s2931, 64, %s7, [#allocation3], 32, 32, 2
    $region37: #{_lambda_.2} parent=1 // pred_fallthru
      _
    // Predicated region
    $region38: #{_lambda_.2} parent=1 // pred_check
      _
    $region39: #{_lambda_.2} parent=1 // pred_check_branch
      %2938 = sbr.rel (0) target = $region41
    $region40: #{_lambda_.2} parent=1 // pred_region
      _
    $region41: #{_lambda_.2} parent=1 // pred_fallthru
      _
    // Predicated region
    $region42: #{_lambda_.2} parent=1 // pred_check
      _
    $region43: #{_lambda_.2} parent=1 // pred_check_branch
      %2940 = sbr.rel (0) target = $region45
    $region44: #{_lambda_.2} parent=1 // pred_region
      %2941 = dma.done [#allocation3], 64
    $region45: #{_lambda_.2} parent=1 // pred_fallthru
      _
    %2942 = vsyncpa [#allocation3], 1

</llo_original>
